<compile_context>
chip_gen: v7x
topology: tpu7x:2x2x1
jax: 0.10.0
libtpu: 0.0.40
codegen_flags: <defaults>
</compile_context>

<pallas_src>
import jax
import jax.numpy as jnp
import numpy as np
from jax import lax
from jax.experimental import pallas as pl
from jax.experimental.pallas import tpu as pltpu

# ----------------------------- model hyper-params -----------------------------
BATCH      = 2
SEQ_LEN    = 8          # d_key  (must satisfy SEQ_LEN * HEADS == EMBED)
HEADS      = 4
EMBED      = 32         # embed_size (d_model)
HEAD_DIM   = EMBED // HEADS
FWD_EXP    = 2
HIDDEN     = FWD_EXP * EMBED
NUM_LAYERS = 2
VOCAB      = 16
MAX_LEN    = 16         # >= VOCAB so pos_emb[x] (indexed by tokens!) is valid
LN_EPS     = 1e-5
BL         = BATCH * SEQ_LEN

assert SEQ_LEN * HEADS == EMBED, "reference module requires d_key * heads == embed_size"


# ------------------------------- Pallas kernel --------------------------------
def encoder_kernel(tok_ref, emb_ref, attw_ref, w1_ref, w2_ref, bias_ref, o_ref):
    """Whole Encoder stack in one invocation; activations stay vreg/VMEM resident.

    tok_ref:  (BL, 1)   int32   flattened token ids
    emb_ref:  (VOCAB, E)        word_emb + pos_emb[:VOCAB]  (token-indexed pos-emb quirk)
    attw_ref: (NL, 2H, E, E)    [l, h]       = A_h  (blockdiag(wq@wk.T)/sqrt(d_key))
                                [l, H + h]   = C_h  (pad_h(wv) @ wo)
    w1_ref:   (NL, E, HIDDEN)   feed-forward layer 1
    w2_ref:   (NL, HIDDEN, E)   feed-forward layer 2
    bias_ref: (NL, 8, 128)      sublane rows (lane-0 aligned): bo | gamma1 | beta1 | b1 | b2
    """
    # ---- fused embedding gather: one-hot MXU matmul (no dynamic sub-vreg loads) ----
    tok = tok_ref[...]                                               # [BL, 1] int32
    col = lax.broadcasted_iota(jnp.int32, (BL, VOCAB), 1)            # [BL, VOCAB]
    onehot = jnp.where(tok == col, 1.0, 0.0).astype(jnp.float32)
    x = jnp.dot(onehot, emb_ref[...], preferred_element_type=jnp.float32)   # [BL, E]

    for l in range(NUM_LAYERS):                                      # unrolled (NL == 2)
        # lane-aligned bias rows (all slices start at lane 0, never cross a 128-lane tile)
        bo  = bias_ref[l, 0:1, 0:EMBED]                              # [1, E]
        g1  = bias_ref[l, 1:2, 0:EMBED]
        be1 = bias_ref[l, 2:3, 0:EMBED]
        b1  = bias_ref[l, 3:4, 0:HIDDEN]                             # [1, HIDDEN]
        b2  = bias_ref[l, 4:5, 0:EMBED]

        x3 = x.reshape(BATCH, SEQ_LEN, EMBED)                        # [B, L, E]

        # ---- multi-head attention: full-width matmuls, heads unrolled, no lane slicing ----
        att = jnp.zeros((BL, EMBED), jnp.float32)
        for h in range(HEADS):
            A = attw_ref[l, h]                                       # [E, E]  (scale folded in)
            C = attw_ref[l, HEADS + h]                               # [E, E]
            t3 = jnp.dot(x, A, preferred_element_type=jnp.float32
                         ).reshape(BATCH, SEQ_LEN, EMBED)            # [B, L, E]
            # scores: e_h = (x A_h) x^T  -> proven 'bqd,bkd->bqk' pattern, no transpose
            e = jnp.einsum('bqf,bkf->bqk', t3, x3,
                           preferred_element_type=jnp.float32)       # [B, L, L]
            e = e - jnp.max(e, axis=-1, keepdims=True)
            p = jnp.exp(e)
            p = p * pl.reciprocal(jnp.sum(p, axis=-1, keepdims=True), approx=True)
            # context folded with fc_out:  (p x) @ C_h  accumulated over heads
            ctx = jnp.einsum('bqk,bkf->bqf', p, x3,
                             preferred_element_type=jnp.float32)     # [B, L, E]
            att = att + jnp.dot(ctx.reshape(BL, EMBED), C,
                                preferred_element_type=jnp.float32)

        out = att + bo                                               # fc_out (weights folded) + bias

        def layer_norm(y):
            mu = jnp.mean(y, axis=-1, keepdims=True)
            var = jnp.mean((y - mu) ** 2, axis=-1, keepdims=True)
            return (y - mu) * lax.rsqrt(var + LN_EPS) * g1 + be1

        # residual + norm1
        x1 = layer_norm(out + x)

        # feed-forward: Linear -> ReLU -> Linear
        hdn = jnp.maximum(
            jnp.dot(x1, w1_ref[l], preferred_element_type=jnp.float32) + b1, 0.0)
        ff = jnp.dot(hdn, w2_ref[l], preferred_element_type=jnp.float32) + b2

        # residual + norm1 AGAIN (reference reuses norm1; norm2 is dead weight)
        x = layer_norm(ff + x1)

    o_ref[...] = x.astype(o_ref.dtype)


@jax.jit
def encoder_forward(tokens, packed):
    """tokens: [B, L] int32 -> [B, L, E] float32."""
    B, L = tokens.shape
    tok2 = tokens.reshape(B * L, 1).astype(jnp.int32)

    vmem = pl.BlockSpec(memory_space=pltpu.MemorySpace.VMEM)
    out2 = pl.pallas_call(
        encoder_kernel,
        out_shape=jax.ShapeDtypeStruct((B * L, EMBED), jnp.float32),
        in_specs=[vmem] * 6,
        out_specs=vmem,
        # gridless: single invocation, whole arrays resident in VMEM, no double-buffering.
        # TODO(synk): if BL ever grows to >=128 rows, add a "parallel" row-tile grid axis
        #             so v7x's second TensorCore is used.
    )(tok2, packed["emb"], packed["attw"], packed["w1"], packed["w2"], packed["bias"])

    return out2.reshape(B, L, EMBED)


# ------------------------- parameter packing for the kernel --------------------
def pack_params(params):
    """Build kernel-side layouts: folded per-head operators, stacked layers, aligned biases."""
    scale = 1.0 / np.sqrt(np.float32(SEQ_LEN))       # d_key == seq len (reference quirk)
    # token-indexed position embedding quirk: pre-sum the two tables over the vocab range
    emb = (params["word_emb"] + params["pos_emb"][:VOCAB]).astype(jnp.float32)

    attw, w1s, w2s, biases = [], [], [], []
    for lp in params["layers"]:
        wq, wk, wv, wo = lp["wq"], lp["wk"], lp["wv"], lp["wo"]
        a_qk = (wq @ wk.T) * scale                   # [Dh, Dh], scale folded in
        A_list, C_list = [], []
        for h in range(HEADS):
            s = h * HEAD_DIM
            A = jnp.zeros((EMBED, EMBED), jnp.float32)
            A = A.at[s:s + HEAD_DIM, s:s + HEAD_DIM].set(a_qk)
            C = jnp.zeros((EMBED, EMBED), jnp.float32)
            C = C.at[s:s + HEAD_DIM, :].set(wv @ wo[s:s + HEAD_DIM, :])
            A_list.append(A)
            C_list.append(C)
        attw.append(jnp.stack(A_list + C_list))      # [2H, E, E]
        w1s.append(lp["w1"])
        w2s.append(lp["w2"])

        # lane-aligned bias slab: one segment per sublane row, starting at lane 0
        b = jnp.zeros((8, 128), jnp.float32)
        b = b.at[0, :EMBED].set(lp["bo"][0])
        b = b.at[1, :EMBED].set(lp["g1"][0])
        b = b.at[2, :EMBED].set(lp["be1"][0])
        b = b.at[3, :HIDDEN].set(lp["b1"][0])
        b = b.at[4, :EMBED].set(lp["b2"][0])
        biases.append(b)

    return {
        "emb":  emb,                                 # [VOCAB, E]
        "attw": jnp.stack(attw),                     # [NL, 2H, E, E]
        "w1":   jnp.stack(w1s),                      # [NL, E, HIDDEN]
        "w2":   jnp.stack(w2s),                      # [NL, HIDDEN, E]
        "bias": jnp.stack(biases),                   # [NL, 8, 128]
    }


# ------------------------- pure-JAX reference (for check) ----------------------
def _layer_norm_ref(y, g, b):
    mu = jnp.mean(y, axis=-1, keepdims=True)
    var = jnp.mean((y - mu) ** 2, axis=-1, keepdims=True)
    return (y - mu) / jnp.sqrt(var + LN_EPS) * g + b


def _block_ref(x, lp):
    B, L, E = x.shape
    H, Dh = HEADS, HEAD_DIM
    xh = x.reshape(B, L, H, Dh)
    q = xh @ lp["wq"]
    k = xh @ lp["wk"]
    v = xh @ lp["wv"]
    energy = jnp.einsum("nqhd,nkhd->nhqk", q, k)
    att = jax.nn.softmax(energy / jnp.sqrt(jnp.float32(L)), axis=3)
    att = jnp.einsum("nhqk,nkhd->nqhd", att, v).reshape(B, L, E)
    out = att @ lp["wo"] + lp["bo"]
    x1 = _layer_norm_ref(out + x, lp["g1"], lp["be1"])
    ff = jnp.maximum(x1 @ lp["w1"] + lp["b1"], 0.0) @ lp["w2"] + lp["b2"]
    return _layer_norm_ref(ff + x1, lp["g1"], lp["be1"])


def encoder_ref(tokens, params):
    # reference bug reproduced: position_embedding indexed by tokens, not positions
    x = (params["word_emb"][tokens] + params["pos_emb"][tokens]).astype(jnp.float32)
    for lp in params["layers"]:
        x = _block_ref(x, lp)
    return x


# ------------------------------ parameter init ---------------------------------
def init_params(key):
    def nrm(k, shape, scale=0.1):
        return (scale * jax.random.normal(k, shape)).astype(jnp.float32)

    keys = jax.random.split(key, 2 + NUM_LAYERS)
    params = {
        "word_emb": nrm(keys[0], (VOCAB, EMBED), 1.0),
        "pos_emb":  nrm(keys[1], (MAX_LEN, EMBED), 1.0),
        "layers": [],
    }
    for li in range(NUM_LAYERS):
        ks = jax.random.split(keys[2 + li], 12)
        lp = {
            # linear weights stored pre-transposed as [in, out]
            "wq":  nrm(ks[0], (HEAD_DIM, HEAD_DIM)),
            "wk":  nrm(ks[1], (HEAD_DIM, HEAD_DIM)),
            "wv":  nrm(ks[2], (HEAD_DIM, HEAD_DIM)),
            "wo":  nrm(ks[3], (EMBED, EMBED)),
            "bo":  nrm(ks[4], (1, EMBED)),
            "g1":  jnp.ones((1, EMBED), jnp.float32),   # LayerNorm affine init
            "be1": jnp.zeros((1, EMBED), jnp.float32),
            "w1":  nrm(ks[5], (EMBED, HIDDEN)),
            "b1":  nrm(ks[6], (1, HIDDEN)),
            "w2":  nrm(ks[7], (HIDDEN, EMBED)),
            "b2":  nrm(ks[8], (1, EMBED)),
        }
        params["layers"].append(lp)
    return params


# ------------------------------------ main --------------------------------------
if __name__ == "__main__":
    key = jax.random.PRNGKey(0)
    pkey, tkey = jax.random.split(key)

    params = init_params(pkey)
    tokens = jax.random.randint(tkey, (BATCH, SEQ_LEN), 0, VOCAB, dtype=jnp.int32)

    packed = pack_params(params)

    out = jax.block_until_ready(encoder_forward(tokens, packed))

    ref = jax.block_until_ready(encoder_ref(tokens, params))
    np.testing.assert_allclose(np.asarray(out), np.asarray(ref), rtol=1e-2, atol=1e-2)

    assert out.shape == (BATCH, SEQ_LEN, EMBED)
    print("KERNEL_OK")
</pallas_src>

<mosaic_0001>
module attributes {stable_mosaic.version = 11 : i64} {
  func.func @encoder_kernel(%arg0: memref<16x1xi32, #tpu.memory_space<vmem>>, %arg1: memref<16x32xf32, #tpu.memory_space<vmem>>, %arg2: memref<2x8x32x32xf32, #tpu.memory_space<vmem>>, %arg3: memref<2x32x64xf32, #tpu.memory_space<vmem>>, %arg4: memref<2x64x32xf32, #tpu.memory_space<vmem>>, %arg5: memref<2x8x128xf32, #tpu.memory_space<vmem>>, %arg6: memref<16x32xf32, #tpu.memory_space<vmem>>) attributes {dimension_semantics = [], scalar_prefetch = 0 : i64, scratch_operands = 0 : i64, tpu.core_type = #tpu.core_type<tc>} {
    %c0 = arith.constant 0 : index
    %c0_0 = arith.constant 0 : index
    %0 = vector.load %arg0[%c0, %c0_0] : memref<16x1xi32, #tpu.memory_space<vmem>>, vector<16x1xi32>
    %1 = tpu.iota {dimensions = array<i32: 1>} : vector<16x16xi32>
    %2 = vector.broadcast %0 : vector<16x1xi32> to vector<16x16xi32>
    %3 = arith.cmpi eq, %2, %1 : vector<16x16xi32>
    %cst = arith.constant 1.000000e+00 : f32
    %cst_1 = arith.constant 0.000000e+00 : f32
    %4 = vector.broadcast %cst : f32 to vector<16x16xf32>
    %5 = vector.broadcast %cst_1 : f32 to vector<16x16xf32>
    %6 = arith.select %3, %4, %5 : vector<16x16xi1>, vector<16x16xf32>
    %c0_2 = arith.constant 0 : index
    %c0_3 = arith.constant 0 : index
    %7 = vector.load %arg1[%c0_2, %c0_3] : memref<16x32xf32, #tpu.memory_space<vmem>>, vector<16x32xf32>
    %cst_4 = arith.constant dense<0.000000e+00> : vector<16x32xf32>
    %8 = tpu.matmul %6, %7, %cst_4 {dimension_numbers = #tpu.dot_dimension_numbers<[1], [0], [0], [1], [0, 0, 1, 1], [], []>} : vector<16x16xf32>, vector<16x32xf32>, vector<16x32xf32> -> vector<16x32xf32>
    %c0_5 = arith.constant 0 : index
    %c0_6 = arith.constant 0 : index
    %c0_7 = arith.constant 0 : index
    %9 = vector.load %arg5[%c0_5, %c0_6, %c0_7] : memref<2x8x128xf32, #tpu.memory_space<vmem>>, vector<1x1x32xf32>
    %10 = vector.shape_cast %9 : vector<1x1x32xf32> to vector<1x32xf32>
    %c0_8 = arith.constant 0 : index
    %c1 = arith.constant 1 : index
    %c0_9 = arith.constant 0 : index
    %11 = vector.load %arg5[%c0_8, %c1, %c0_9] : memref<2x8x128xf32, #tpu.memory_space<vmem>>, vector<1x1x32xf32>
    %12 = vector.shape_cast %11 : vector<1x1x32xf32> to vector<1x32xf32>
    %c0_10 = arith.constant 0 : index
    %c2 = arith.constant 2 : index
    %c0_11 = arith.constant 0 : index
    %13 = vector.load %arg5[%c0_10, %c2, %c0_11] : memref<2x8x128xf32, #tpu.memory_space<vmem>>, vector<1x1x32xf32>
    %14 = vector.shape_cast %13 : vector<1x1x32xf32> to vector<1x32xf32>
    %c0_12 = arith.constant 0 : index
    %c3 = arith.constant 3 : index
    %c0_13 = arith.constant 0 : index
    %15 = vector.load %arg5[%c0_12, %c3, %c0_13] : memref<2x8x128xf32, #tpu.memory_space<vmem>>, vector<1x1x64xf32>
    %16 = vector.shape_cast %15 : vector<1x1x64xf32> to vector<1x64xf32>
    %c0_14 = arith.constant 0 : index
    %c4 = arith.constant 4 : index
    %c0_15 = arith.constant 0 : index
    %17 = vector.load %arg5[%c0_14, %c4, %c0_15] : memref<2x8x128xf32, #tpu.memory_space<vmem>>, vector<1x1x32xf32>
    %18 = vector.shape_cast %17 : vector<1x1x32xf32> to vector<1x32xf32>
    %19 = vector.shape_cast %8 : vector<16x32xf32> to vector<2x8x32xf32>
    %cst_16 = arith.constant 0.000000e+00 : f32
    %20 = vector.broadcast %cst_16 : f32 to vector<16x32xf32>
    %c0_17 = arith.constant 0 : index
    %c0_18 = arith.constant 0 : index
    %c0_19 = arith.constant 0 : index
    %c0_20 = arith.constant 0 : index
    %21 = vector.load %arg2[%c0_17, %c0_18, %c0_19, %c0_20] : memref<2x8x32x32xf32, #tpu.memory_space<vmem>>, vector<1x1x32x32xf32>
    %22 = vector.shape_cast %21 : vector<1x1x32x32xf32> to vector<32x32xf32>
    %c0_21 = arith.constant 0 : index
    %c4_22 = arith.constant 4 : index
    %c0_23 = arith.constant 0 : index
    %c0_24 = arith.constant 0 : index
    %23 = vector.load %arg2[%c0_21, %c4_22, %c0_23, %c0_24] : memref<2x8x32x32xf32, #tpu.memory_space<vmem>>, vector<1x1x32x32xf32>
    %24 = vector.shape_cast %23 : vector<1x1x32x32xf32> to vector<32x32xf32>
    %cst_25 = arith.constant dense<0.000000e+00> : vector<16x32xf32>
    %25 = tpu.matmul %8, %22, %cst_25 {dimension_numbers = #tpu.dot_dimension_numbers<[1], [0], [0], [1], [0, 0, 1, 1], [], []>} : vector<16x32xf32>, vector<32x32xf32>, vector<16x32xf32> -> vector<16x32xf32>
    %26 = vector.shape_cast %25 : vector<16x32xf32> to vector<2x8x32xf32>
    "tpu.trace_start"() <{level = 10 : i32, message = "bqf,bkf->bqk"}> : () -> ()
    %cst_26 = arith.constant dense<0.000000e+00> : vector<2x8x8xf32>
    %27 = tpu.matmul %26, %19, %cst_26 {dimension_numbers = #tpu.dot_dimension_numbers<[2], [2], [1], [1], [0, 0, 0, 1, 1, 1], [0], [0]>} : vector<2x8x32xf32>, vector<2x8x32xf32>, vector<2x8x8xf32> -> vector<2x8x8xf32>
    "tpu.trace_stop"() : () -> ()
    %cst_27 = arith.constant dense<0xFF800000> : vector<2x8xf32>
    %28 = vector.multi_reduction <maximumf>, %27, %cst_27 [2] : vector<2x8x8xf32> to vector<2x8xf32>
    %29 = vector.shape_cast %28 : vector<2x8xf32> to vector<2x8x1xf32>
    %30 = vector.broadcast %29 : vector<2x8x1xf32> to vector<2x8x8xf32>
    %31 = arith.subf %27, %30 : vector<2x8x8xf32>
    %32 = math.exp %31 : vector<2x8x8xf32>
    %cst_28 = arith.constant dense<0.000000e+00> : vector<2x8xf32>
    %33 = vector.multi_reduction <add>, %32, %cst_28 [2] : vector<2x8x8xf32> to vector<2x8xf32>
    %34 = vector.shape_cast %33 : vector<2x8xf32> to vector<2x8x1xf32>
    %35 = tpu.reciprocal %34 {approx = true} : vector<2x8x1xf32> -> vector<2x8x1xf32>
    %36 = vector.broadcast %35 : vector<2x8x1xf32> to vector<2x8x8xf32>
    %37 = arith.mulf %32, %36 : vector<2x8x8xf32>
    "tpu.trace_start"() <{level = 10 : i32, message = "bqk,bkf->bqf"}> : () -> ()
    %cst_29 = arith.constant dense<0.000000e+00> : vector<2x8x32xf32>
    %38 = tpu.matmul %37, %19, %cst_29 {dimension_numbers = #tpu.dot_dimension_numbers<[2], [1], [1], [2], [0, 0, 0, 1, 1, 2], [0], [0]>} : vector<2x8x8xf32>, vector<2x8x32xf32>, vector<2x8x32xf32> -> vector<2x8x32xf32>
    "tpu.trace_stop"() : () -> ()
    %39 = vector.shape_cast %38 : vector<2x8x32xf32> to vector<16x32xf32>
    %cst_30 = arith.constant dense<0.000000e+00> : vector<16x32xf32>
    %40 = tpu.matmul %39, %24, %cst_30 {dimension_numbers = #tpu.dot_dimension_numbers<[1], [0], [0], [1], [0, 0, 1, 1], [], []>} : vector<16x32xf32>, vector<32x32xf32>, vector<16x32xf32> -> vector<16x32xf32>
    %41 = arith.addf %20, %40 : vector<16x32xf32>
    %c0_31 = arith.constant 0 : index
    %c1_32 = arith.constant 1 : index
    %c0_33 = arith.constant 0 : index
    %c0_34 = arith.constant 0 : index
    %42 = vector.load %arg2[%c0_31, %c1_32, %c0_33, %c0_34] : memref<2x8x32x32xf32, #tpu.memory_space<vmem>>, vector<1x1x32x32xf32>
    %43 = vector.shape_cast %42 : vector<1x1x32x32xf32> to vector<32x32xf32>
    %c0_35 = arith.constant 0 : index
    %c5 = arith.constant 5 : index
    %c0_36 = arith.constant 0 : index
    %c0_37 = arith.constant 0 : index
    %44 = vector.load %arg2[%c0_35, %c5, %c0_36, %c0_37] : memref<2x8x32x32xf32, #tpu.memory_space<vmem>>, vector<1x1x32x32xf32>
    %45 = vector.shape_cast %44 : vector<1x1x32x32xf32> to vector<32x32xf32>
    %cst_38 = arith.constant dense<0.000000e+00> : vector<16x32xf32>
    %46 = tpu.matmul %8, %43, %cst_38 {dimension_numbers = #tpu.dot_dimension_numbers<[1], [0], [0], [1], [0, 0, 1, 1], [], []>} : vector<16x32xf32>, vector<32x32xf32>, vector<16x32xf32> -> vector<16x32xf32>
    %47 = vector.shape_cast %46 : vector<16x32xf32> to vector<2x8x32xf32>
    "tpu.trace_start"() <{level = 10 : i32, message = "bqf,bkf->bqk"}> : () -> ()
    %cst_39 = arith.constant dense<0.000000e+00> : vector<2x8x8xf32>
    %48 = tpu.matmul %47, %19, %cst_39 {dimension_numbers = #tpu.dot_dimension_numbers<[2], [2], [1], [1], [0, 0, 0, 1, 1, 1], [0], [0]>} : vector<2x8x32xf32>, vector<2x8x32xf32>, vector<2x8x8xf32> -> vector<2x8x8xf32>
    "tpu.trace_stop"() : () -> ()
    %cst_40 = arith.constant dense<0xFF800000> : vector<2x8xf32>
    %49 = vector.multi_reduction <maximumf>, %48, %cst_40 [2] : vector<2x8x8xf32> to vector<2x8xf32>
    %50 = vector.shape_cast %49 : vector<2x8xf32> to vector<2x8x1xf32>
    %51 = vector.broadcast %50 : vector<2x8x1xf32> to vector<2x8x8xf32>
    %52 = arith.subf %48, %51 : vector<2x8x8xf32>
    %53 = math.exp %52 : vector<2x8x8xf32>
    %cst_41 = arith.constant dense<0.000000e+00> : vector<2x8xf32>
    %54 = vector.multi_reduction <add>, %53, %cst_41 [2] : vector<2x8x8xf32> to vector<2x8xf32>
    %55 = vector.shape_cast %54 : vector<2x8xf32> to vector<2x8x1xf32>
    %56 = tpu.reciprocal %55 {approx = true} : vector<2x8x1xf32> -> vector<2x8x1xf32>
    %57 = vector.broadcast %56 : vector<2x8x1xf32> to vector<2x8x8xf32>
    %58 = arith.mulf %53, %57 : vector<2x8x8xf32>
    "tpu.trace_start"() <{level = 10 : i32, message = "bqk,bkf->bqf"}> : () -> ()
    %cst_42 = arith.constant dense<0.000000e+00> : vector<2x8x32xf32>
    %59 = tpu.matmul %58, %19, %cst_42 {dimension_numbers = #tpu.dot_dimension_numbers<[2], [1], [1], [2], [0, 0, 0, 1, 1, 2], [0], [0]>} : vector<2x8x8xf32>, vector<2x8x32xf32>, vector<2x8x32xf32> -> vector<2x8x32xf32>
    "tpu.trace_stop"() : () -> ()
    %60 = vector.shape_cast %59 : vector<2x8x32xf32> to vector<16x32xf32>
    %cst_43 = arith.constant dense<0.000000e+00> : vector<16x32xf32>
    %61 = tpu.matmul %60, %45, %cst_43 {dimension_numbers = #tpu.dot_dimension_numbers<[1], [0], [0], [1], [0, 0, 1, 1], [], []>} : vector<16x32xf32>, vector<32x32xf32>, vector<16x32xf32> -> vector<16x32xf32>
    %62 = arith.addf %41, %61 : vector<16x32xf32>
    %c0_44 = arith.constant 0 : index
    %c2_45 = arith.constant 2 : index
    %c0_46 = arith.constant 0 : index
    %c0_47 = arith.constant 0 : index
    %63 = vector.load %arg2[%c0_44, %c2_45, %c0_46, %c0_47] : memref<2x8x32x32xf32, #tpu.memory_space<vmem>>, vector<1x1x32x32xf32>
    %64 = vector.shape_cast %63 : vector<1x1x32x32xf32> to vector<32x32xf32>
    %c0_48 = arith.constant 0 : index
    %c6 = arith.constant 6 : index
    %c0_49 = arith.constant 0 : index
    %c0_50 = arith.constant 0 : index
    %65 = vector.load %arg2[%c0_48, %c6, %c0_49, %c0_50] : memref<2x8x32x32xf32, #tpu.memory_space<vmem>>, vector<1x1x32x32xf32>
    %66 = vector.shape_cast %65 : vector<1x1x32x32xf32> to vector<32x32xf32>
    %cst_51 = arith.constant dense<0.000000e+00> : vector<16x32xf32>
    %67 = tpu.matmul %8, %64, %cst_51 {dimension_numbers = #tpu.dot_dimension_numbers<[1], [0], [0], [1], [0, 0, 1, 1], [], []>} : vector<16x32xf32>, vector<32x32xf32>, vector<16x32xf32> -> vector<16x32xf32>
    %68 = vector.shape_cast %67 : vector<16x32xf32> to vector<2x8x32xf32>
    "tpu.trace_start"() <{level = 10 : i32, message = "bqf,bkf->bqk"}> : () -> ()
    %cst_52 = arith.constant dense<0.000000e+00> : vector<2x8x8xf32>
    %69 = tpu.matmul %68, %19, %cst_52 {dimension_numbers = #tpu.dot_dimension_numbers<[2], [2], [1], [1], [0, 0, 0, 1, 1, 1], [0], [0]>} : vector<2x8x32xf32>, vector<2x8x32xf32>, vector<2x8x8xf32> -> vector<2x8x8xf32>
    "tpu.trace_stop"() : () -> ()
    %cst_53 = arith.constant dense<0xFF800000> : vector<2x8xf32>
    %70 = vector.multi_reduction <maximumf>, %69, %cst_53 [2] : vector<2x8x8xf32> to vector<2x8xf32>
    %71 = vector.shape_cast %70 : vector<2x8xf32> to vector<2x8x1xf32>
    %72 = vector.broadcast %71 : vector<2x8x1xf32> to vector<2x8x8xf32>
    %73 = arith.subf %69, %72 : vector<2x8x8xf32>
    %74 = math.exp %73 : vector<2x8x8xf32>
    %cst_54 = arith.constant dense<0.000000e+00> : vector<2x8xf32>
    %75 = vector.multi_reduction <add>, %74, %cst_54 [2] : vector<2x8x8xf32> to vector<2x8xf32>
    %76 = vector.shape_cast %75 : vector<2x8xf32> to vector<2x8x1xf32>
    %77 = tpu.reciprocal %76 {approx = true} : vector<2x8x1xf32> -> vector<2x8x1xf32>
    %78 = vector.broadcast %77 : vector<2x8x1xf32> to vector<2x8x8xf32>
    %79 = arith.mulf %74, %78 : vector<2x8x8xf32>
    "tpu.trace_start"() <{level = 10 : i32, message = "bqk,bkf->bqf"}> : () -> ()
    %cst_55 = arith.constant dense<0.000000e+00> : vector<2x8x32xf32>
    %80 = tpu.matmul %79, %19, %cst_55 {dimension_numbers = #tpu.dot_dimension_numbers<[2], [1], [1], [2], [0, 0, 0, 1, 1, 2], [0], [0]>} : vector<2x8x8xf32>, vector<2x8x32xf32>, vector<2x8x32xf32> -> vector<2x8x32xf32>
    "tpu.trace_stop"() : () -> ()
    %81 = vector.shape_cast %80 : vector<2x8x32xf32> to vector<16x32xf32>
    %cst_56 = arith.constant dense<0.000000e+00> : vector<16x32xf32>
    %82 = tpu.matmul %81, %66, %cst_56 {dimension_numbers = #tpu.dot_dimension_numbers<[1], [0], [0], [1], [0, 0, 1, 1], [], []>} : vector<16x32xf32>, vector<32x32xf32>, vector<16x32xf32> -> vector<16x32xf32>
    %83 = arith.addf %62, %82 : vector<16x32xf32>
    %c0_57 = arith.constant 0 : index
    %c3_58 = arith.constant 3 : index
    %c0_59 = arith.constant 0 : index
    %c0_60 = arith.constant 0 : index
    %84 = vector.load %arg2[%c0_57, %c3_58, %c0_59, %c0_60] : memref<2x8x32x32xf32, #tpu.memory_space<vmem>>, vector<1x1x32x32xf32>
    %85 = vector.shape_cast %84 : vector<1x1x32x32xf32> to vector<32x32xf32>
    %c0_61 = arith.constant 0 : index
    %c7 = arith.constant 7 : index
    %c0_62 = arith.constant 0 : index
    %c0_63 = arith.constant 0 : index
    %86 = vector.load %arg2[%c0_61, %c7, %c0_62, %c0_63] : memref<2x8x32x32xf32, #tpu.memory_space<vmem>>, vector<1x1x32x32xf32>
    %87 = vector.shape_cast %86 : vector<1x1x32x32xf32> to vector<32x32xf32>
    %cst_64 = arith.constant dense<0.000000e+00> : vector<16x32xf32>
    %88 = tpu.matmul %8, %85, %cst_64 {dimension_numbers = #tpu.dot_dimension_numbers<[1], [0], [0], [1], [0, 0, 1, 1], [], []>} : vector<16x32xf32>, vector<32x32xf32>, vector<16x32xf32> -> vector<16x32xf32>
    %89 = vector.shape_cast %88 : vector<16x32xf32> to vector<2x8x32xf32>
    "tpu.trace_start"() <{level = 10 : i32, message = "bqf,bkf->bqk"}> : () -> ()
    %cst_65 = arith.constant dense<0.000000e+00> : vector<2x8x8xf32>
    %90 = tpu.matmul %89, %19, %cst_65 {dimension_numbers = #tpu.dot_dimension_numbers<[2], [2], [1], [1], [0, 0, 0, 1, 1, 1], [0], [0]>} : vector<2x8x32xf32>, vector<2x8x32xf32>, vector<2x8x8xf32> -> vector<2x8x8xf32>
    "tpu.trace_stop"() : () -> ()
    %cst_66 = arith.constant dense<0xFF800000> : vector<2x8xf32>
    %91 = vector.multi_reduction <maximumf>, %90, %cst_66 [2] : vector<2x8x8xf32> to vector<2x8xf32>
    %92 = vector.shape_cast %91 : vector<2x8xf32> to vector<2x8x1xf32>
    %93 = vector.broadcast %92 : vector<2x8x1xf32> to vector<2x8x8xf32>
    %94 = arith.subf %90, %93 : vector<2x8x8xf32>
    %95 = math.exp %94 : vector<2x8x8xf32>
    %cst_67 = arith.constant dense<0.000000e+00> : vector<2x8xf32>
    %96 = vector.multi_reduction <add>, %95, %cst_67 [2] : vector<2x8x8xf32> to vector<2x8xf32>
    %97 = vector.shape_cast %96 : vector<2x8xf32> to vector<2x8x1xf32>
    %98 = tpu.reciprocal %97 {approx = true} : vector<2x8x1xf32> -> vector<2x8x1xf32>
    %99 = vector.broadcast %98 : vector<2x8x1xf32> to vector<2x8x8xf32>
    %100 = arith.mulf %95, %99 : vector<2x8x8xf32>
    "tpu.trace_start"() <{level = 10 : i32, message = "bqk,bkf->bqf"}> : () -> ()
    %cst_68 = arith.constant dense<0.000000e+00> : vector<2x8x32xf32>
    %101 = tpu.matmul %100, %19, %cst_68 {dimension_numbers = #tpu.dot_dimension_numbers<[2], [1], [1], [2], [0, 0, 0, 1, 1, 2], [0], [0]>} : vector<2x8x8xf32>, vector<2x8x32xf32>, vector<2x8x32xf32> -> vector<2x8x32xf32>
    "tpu.trace_stop"() : () -> ()
    %102 = vector.shape_cast %101 : vector<2x8x32xf32> to vector<16x32xf32>
    %cst_69 = arith.constant dense<0.000000e+00> : vector<16x32xf32>
    %103 = tpu.matmul %102, %87, %cst_69 {dimension_numbers = #tpu.dot_dimension_numbers<[1], [0], [0], [1], [0, 0, 1, 1], [], []>} : vector<16x32xf32>, vector<32x32xf32>, vector<16x32xf32> -> vector<16x32xf32>
    %104 = arith.addf %83, %103 : vector<16x32xf32>
    %105 = vector.broadcast %10 : vector<1x32xf32> to vector<16x32xf32>
    %106 = arith.addf %104, %105 : vector<16x32xf32>
    %107 = arith.addf %106, %8 : vector<16x32xf32>
    %cst_70 = arith.constant dense<0.000000e+00> : vector<16xf32>
    %108 = vector.multi_reduction <add>, %107, %cst_70 [1] : vector<16x32xf32> to vector<16xf32>
    %109 = vector.shape_cast %108 : vector<16xf32> to vector<16x1xf32>
    %cst_71 = arith.constant 3.200000e+01 : f32
    %110 = vector.broadcast %cst_71 : f32 to vector<16x1xf32>
    %111 = arith.divf %109, %110 : vector<16x1xf32>
    %112 = vector.broadcast %111 : vector<16x1xf32> to vector<16x32xf32>
    %113 = arith.subf %107, %112 : vector<16x32xf32>
    %114 = arith.mulf %113, %113 : vector<16x32xf32>
    %cst_72 = arith.constant dense<0.000000e+00> : vector<16xf32>
    %115 = vector.multi_reduction <add>, %114, %cst_72 [1] : vector<16x32xf32> to vector<16xf32>
    %116 = vector.shape_cast %115 : vector<16xf32> to vector<16x1xf32>
    %cst_73 = arith.constant 3.200000e+01 : f32
    %117 = vector.broadcast %cst_73 : f32 to vector<16x1xf32>
    %118 = arith.divf %116, %117 : vector<16x1xf32>
    %119 = vector.broadcast %111 : vector<16x1xf32> to vector<16x32xf32>
    %120 = arith.subf %107, %119 : vector<16x32xf32>
    %cst_74 = arith.constant 9.99999974E-6 : f32
    %121 = vector.broadcast %cst_74 : f32 to vector<16x1xf32>
    %122 = arith.addf %118, %121 : vector<16x1xf32>
    %123 = math.rsqrt %122 : vector<16x1xf32>
    %124 = vector.broadcast %123 : vector<16x1xf32> to vector<16x32xf32>
    %125 = arith.mulf %120, %124 : vector<16x32xf32>
    %126 = vector.broadcast %12 : vector<1x32xf32> to vector<16x32xf32>
    %127 = arith.mulf %125, %126 : vector<16x32xf32>
    %128 = vector.broadcast %14 : vector<1x32xf32> to vector<16x32xf32>
    %129 = arith.addf %127, %128 : vector<16x32xf32>
    %c0_75 = arith.constant 0 : index
    %c0_76 = arith.constant 0 : index
    %c0_77 = arith.constant 0 : index
    %130 = vector.load %arg3[%c0_75, %c0_76, %c0_77] : memref<2x32x64xf32, #tpu.memory_space<vmem>>, vector<1x32x64xf32>
    %131 = vector.shape_cast %130 : vector<1x32x64xf32> to vector<32x64xf32>
    %cst_78 = arith.constant dense<0.000000e+00> : vector<16x64xf32>
    %132 = tpu.matmul %129, %131, %cst_78 {dimension_numbers = #tpu.dot_dimension_numbers<[1], [0], [0], [1], [0, 0, 1, 1], [], []>} : vector<16x32xf32>, vector<32x64xf32>, vector<16x64xf32> -> vector<16x64xf32>
    %133 = vector.broadcast %16 : vector<1x64xf32> to vector<16x64xf32>
    %134 = arith.addf %132, %133 : vector<16x64xf32>
    %cst_79 = arith.constant 0.000000e+00 : f32
    %135 = vector.broadcast %cst_79 : f32 to vector<16x64xf32>
    %136 = arith.maximumf %134, %135 : vector<16x64xf32>
    %c0_80 = arith.constant 0 : index
    %c0_81 = arith.constant 0 : index
    %c0_82 = arith.constant 0 : index
    %137 = vector.load %arg4[%c0_80, %c0_81, %c0_82] : memref<2x64x32xf32, #tpu.memory_space<vmem>>, vector<1x64x32xf32>
    %138 = vector.shape_cast %137 : vector<1x64x32xf32> to vector<64x32xf32>
    %cst_83 = arith.constant dense<0.000000e+00> : vector<16x32xf32>
    %139 = tpu.matmul %136, %138, %cst_83 {dimension_numbers = #tpu.dot_dimension_numbers<[1], [0], [0], [1], [0, 0, 1, 1], [], []>} : vector<16x64xf32>, vector<64x32xf32>, vector<16x32xf32> -> vector<16x32xf32>
    %140 = vector.broadcast %18 : vector<1x32xf32> to vector<16x32xf32>
    %141 = arith.addf %139, %140 : vector<16x32xf32>
    %142 = arith.addf %141, %129 : vector<16x32xf32>
    %cst_84 = arith.constant dense<0.000000e+00> : vector<16xf32>
    %143 = vector.multi_reduction <add>, %142, %cst_84 [1] : vector<16x32xf32> to vector<16xf32>
    %144 = vector.shape_cast %143 : vector<16xf32> to vector<16x1xf32>
    %cst_85 = arith.constant 3.200000e+01 : f32
    %145 = vector.broadcast %cst_85 : f32 to vector<16x1xf32>
    %146 = arith.divf %144, %145 : vector<16x1xf32>
    %147 = vector.broadcast %146 : vector<16x1xf32> to vector<16x32xf32>
    %148 = arith.subf %142, %147 : vector<16x32xf32>
    %149 = arith.mulf %148, %148 : vector<16x32xf32>
    %cst_86 = arith.constant dense<0.000000e+00> : vector<16xf32>
    %150 = vector.multi_reduction <add>, %149, %cst_86 [1] : vector<16x32xf32> to vector<16xf32>
    %151 = vector.shape_cast %150 : vector<16xf32> to vector<16x1xf32>
    %cst_87 = arith.constant 3.200000e+01 : f32
    %152 = vector.broadcast %cst_87 : f32 to vector<16x1xf32>
    %153 = arith.divf %151, %152 : vector<16x1xf32>
    %154 = vector.broadcast %146 : vector<16x1xf32> to vector<16x32xf32>
    %155 = arith.subf %142, %154 : vector<16x32xf32>
    %cst_88 = arith.constant 9.99999974E-6 : f32
    %156 = vector.broadcast %cst_88 : f32 to vector<16x1xf32>
    %157 = arith.addf %153, %156 : vector<16x1xf32>
    %158 = math.rsqrt %157 : vector<16x1xf32>
    %159 = vector.broadcast %158 : vector<16x1xf32> to vector<16x32xf32>
    %160 = arith.mulf %155, %159 : vector<16x32xf32>
    %161 = vector.broadcast %12 : vector<1x32xf32> to vector<16x32xf32>
    %162 = arith.mulf %160, %161 : vector<16x32xf32>
    %163 = vector.broadcast %14 : vector<1x32xf32> to vector<16x32xf32>
    %164 = arith.addf %162, %163 : vector<16x32xf32>
    %c1_89 = arith.constant 1 : index
    %c0_90 = arith.constant 0 : index
    %c0_91 = arith.constant 0 : index
    %165 = vector.load %arg5[%c1_89, %c0_90, %c0_91] : memref<2x8x128xf32, #tpu.memory_space<vmem>>, vector<1x1x32xf32>
    %166 = vector.shape_cast %165 : vector<1x1x32xf32> to vector<1x32xf32>
    %c1_92 = arith.constant 1 : index
    %c1_93 = arith.constant 1 : index
    %c0_94 = arith.constant 0 : index
    %167 = vector.load %arg5[%c1_92, %c1_93, %c0_94] : memref<2x8x128xf32, #tpu.memory_space<vmem>>, vector<1x1x32xf32>
    %168 = vector.shape_cast %167 : vector<1x1x32xf32> to vector<1x32xf32>
    %c1_95 = arith.constant 1 : index
    %c2_96 = arith.constant 2 : index
    %c0_97 = arith.constant 0 : index
    %169 = vector.load %arg5[%c1_95, %c2_96, %c0_97] : memref<2x8x128xf32, #tpu.memory_space<vmem>>, vector<1x1x32xf32>
    %170 = vector.shape_cast %169 : vector<1x1x32xf32> to vector<1x32xf32>
    %c1_98 = arith.constant 1 : index
    %c3_99 = arith.constant 3 : index
    %c0_100 = arith.constant 0 : index
    %171 = vector.load %arg5[%c1_98, %c3_99, %c0_100] : memref<2x8x128xf32, #tpu.memory_space<vmem>>, vector<1x1x64xf32>
    %172 = vector.shape_cast %171 : vector<1x1x64xf32> to vector<1x64xf32>
    %c1_101 = arith.constant 1 : index
    %c4_102 = arith.constant 4 : index
    %c0_103 = arith.constant 0 : index
    %173 = vector.load %arg5[%c1_101, %c4_102, %c0_103] : memref<2x8x128xf32, #tpu.memory_space<vmem>>, vector<1x1x32xf32>
    %174 = vector.shape_cast %173 : vector<1x1x32xf32> to vector<1x32xf32>
    %175 = vector.shape_cast %164 : vector<16x32xf32> to vector<2x8x32xf32>
    %cst_104 = arith.constant 0.000000e+00 : f32
    %176 = vector.broadcast %cst_104 : f32 to vector<16x32xf32>
    %c1_105 = arith.constant 1 : index
    %c0_106 = arith.constant 0 : index
    %c0_107 = arith.constant 0 : index
    %c0_108 = arith.constant 0 : index
    %177 = vector.load %arg2[%c1_105, %c0_106, %c0_107, %c0_108] : memref<2x8x32x32xf32, #tpu.memory_space<vmem>>, vector<1x1x32x32xf32>
    %178 = vector.shape_cast %177 : vector<1x1x32x32xf32> to vector<32x32xf32>
    %c1_109 = arith.constant 1 : index
    %c4_110 = arith.constant 4 : index
    %c0_111 = arith.constant 0 : index
    %c0_112 = arith.constant 0 : index
    %179 = vector.load %arg2[%c1_109, %c4_110, %c0_111, %c0_112] : memref<2x8x32x32xf32, #tpu.memory_space<vmem>>, vector<1x1x32x32xf32>
    %180 = vector.shape_cast %179 : vector<1x1x32x32xf32> to vector<32x32xf32>
    %cst_113 = arith.constant dense<0.000000e+00> : vector<16x32xf32>
    %181 = tpu.matmul %164, %178, %cst_113 {dimension_numbers = #tpu.dot_dimension_numbers<[1], [0], [0], [1], [0, 0, 1, 1], [], []>} : vector<16x32xf32>, vector<32x32xf32>, vector<16x32xf32> -> vector<16x32xf32>
    %182 = vector.shape_cast %181 : vector<16x32xf32> to vector<2x8x32xf32>
    "tpu.trace_start"() <{level = 10 : i32, message = "bqf,bkf->bqk"}> : () -> ()
    %cst_114 = arith.constant dense<0.000000e+00> : vector<2x8x8xf32>
    %183 = tpu.matmul %182, %175, %cst_114 {dimension_numbers = #tpu.dot_dimension_numbers<[2], [2], [1], [1], [0, 0, 0, 1, 1, 1], [0], [0]>} : vector<2x8x32xf32>, vector<2x8x32xf32>, vector<2x8x8xf32> -> vector<2x8x8xf32>
    "tpu.trace_stop"() : () -> ()
    %cst_115 = arith.constant dense<0xFF800000> : vector<2x8xf32>
    %184 = vector.multi_reduction <maximumf>, %183, %cst_115 [2] : vector<2x8x8xf32> to vector<2x8xf32>
    %185 = vector.shape_cast %184 : vector<2x8xf32> to vector<2x8x1xf32>
    %186 = vector.broadcast %185 : vector<2x8x1xf32> to vector<2x8x8xf32>
    %187 = arith.subf %183, %186 : vector<2x8x8xf32>
    %188 = math.exp %187 : vector<2x8x8xf32>
    %cst_116 = arith.constant dense<0.000000e+00> : vector<2x8xf32>
    %189 = vector.multi_reduction <add>, %188, %cst_116 [2] : vector<2x8x8xf32> to vector<2x8xf32>
    %190 = vector.shape_cast %189 : vector<2x8xf32> to vector<2x8x1xf32>
    %191 = tpu.reciprocal %190 {approx = true} : vector<2x8x1xf32> -> vector<2x8x1xf32>
    %192 = vector.broadcast %191 : vector<2x8x1xf32> to vector<2x8x8xf32>
    %193 = arith.mulf %188, %192 : vector<2x8x8xf32>
    "tpu.trace_start"() <{level = 10 : i32, message = "bqk,bkf->bqf"}> : () -> ()
    %cst_117 = arith.constant dense<0.000000e+00> : vector<2x8x32xf32>
    %194 = tpu.matmul %193, %175, %cst_117 {dimension_numbers = #tpu.dot_dimension_numbers<[2], [1], [1], [2], [0, 0, 0, 1, 1, 2], [0], [0]>} : vector<2x8x8xf32>, vector<2x8x32xf32>, vector<2x8x32xf32> -> vector<2x8x32xf32>
    "tpu.trace_stop"() : () -> ()
    %195 = vector.shape_cast %194 : vector<2x8x32xf32> to vector<16x32xf32>
    %cst_118 = arith.constant dense<0.000000e+00> : vector<16x32xf32>
    %196 = tpu.matmul %195, %180, %cst_118 {dimension_numbers = #tpu.dot_dimension_numbers<[1], [0], [0], [1], [0, 0, 1, 1], [], []>} : vector<16x32xf32>, vector<32x32xf32>, vector<16x32xf32> -> vector<16x32xf32>
    %197 = arith.addf %176, %196 : vector<16x32xf32>
    %c1_119 = arith.constant 1 : index
    %c1_120 = arith.constant 1 : index
    %c0_121 = arith.constant 0 : index
    %c0_122 = arith.constant 0 : index
    %198 = vector.load %arg2[%c1_119, %c1_120, %c0_121, %c0_122] : memref<2x8x32x32xf32, #tpu.memory_space<vmem>>, vector<1x1x32x32xf32>
    %199 = vector.shape_cast %198 : vector<1x1x32x32xf32> to vector<32x32xf32>
    %c1_123 = arith.constant 1 : index
    %c5_124 = arith.constant 5 : index
    %c0_125 = arith.constant 0 : index
    %c0_126 = arith.constant 0 : index
    %200 = vector.load %arg2[%c1_123, %c5_124, %c0_125, %c0_126] : memref<2x8x32x32xf32, #tpu.memory_space<vmem>>, vector<1x1x32x32xf32>
    %201 = vector.shape_cast %200 : vector<1x1x32x32xf32> to vector<32x32xf32>
    %cst_127 = arith.constant dense<0.000000e+00> : vector<16x32xf32>
    %202 = tpu.matmul %164, %199, %cst_127 {dimension_numbers = #tpu.dot_dimension_numbers<[1], [0], [0], [1], [0, 0, 1, 1], [], []>} : vector<16x32xf32>, vector<32x32xf32>, vector<16x32xf32> -> vector<16x32xf32>
    %203 = vector.shape_cast %202 : vector<16x32xf32> to vector<2x8x32xf32>
    "tpu.trace_start"() <{level = 10 : i32, message = "bqf,bkf->bqk"}> : () -> ()
    %cst_128 = arith.constant dense<0.000000e+00> : vector<2x8x8xf32>
    %204 = tpu.matmul %203, %175, %cst_128 {dimension_numbers = #tpu.dot_dimension_numbers<[2], [2], [1], [1], [0, 0, 0, 1, 1, 1], [0], [0]>} : vector<2x8x32xf32>, vector<2x8x32xf32>, vector<2x8x8xf32> -> vector<2x8x8xf32>
    "tpu.trace_stop"() : () -> ()
    %cst_129 = arith.constant dense<0xFF800000> : vector<2x8xf32>
    %205 = vector.multi_reduction <maximumf>, %204, %cst_129 [2] : vector<2x8x8xf32> to vector<2x8xf32>
    %206 = vector.shape_cast %205 : vector<2x8xf32> to vector<2x8x1xf32>
    %207 = vector.broadcast %206 : vector<2x8x1xf32> to vector<2x8x8xf32>
    %208 = arith.subf %204, %207 : vector<2x8x8xf32>
    %209 = math.exp %208 : vector<2x8x8xf32>
    %cst_130 = arith.constant dense<0.000000e+00> : vector<2x8xf32>
    %210 = vector.multi_reduction <add>, %209, %cst_130 [2] : vector<2x8x8xf32> to vector<2x8xf32>
    %211 = vector.shape_cast %210 : vector<2x8xf32> to vector<2x8x1xf32>
    %212 = tpu.reciprocal %211 {approx = true} : vector<2x8x1xf32> -> vector<2x8x1xf32>
    %213 = vector.broadcast %212 : vector<2x8x1xf32> to vector<2x8x8xf32>
    %214 = arith.mulf %209, %213 : vector<2x8x8xf32>
    "tpu.trace_start"() <{level = 10 : i32, message = "bqk,bkf->bqf"}> : () -> ()
    %cst_131 = arith.constant dense<0.000000e+00> : vector<2x8x32xf32>
    %215 = tpu.matmul %214, %175, %cst_131 {dimension_numbers = #tpu.dot_dimension_numbers<[2], [1], [1], [2], [0, 0, 0, 1, 1, 2], [0], [0]>} : vector<2x8x8xf32>, vector<2x8x32xf32>, vector<2x8x32xf32> -> vector<2x8x32xf32>
    "tpu.trace_stop"() : () -> ()
    %216 = vector.shape_cast %215 : vector<2x8x32xf32> to vector<16x32xf32>
    %cst_132 = arith.constant dense<0.000000e+00> : vector<16x32xf32>
    %217 = tpu.matmul %216, %201, %cst_132 {dimension_numbers = #tpu.dot_dimension_numbers<[1], [0], [0], [1], [0, 0, 1, 1], [], []>} : vector<16x32xf32>, vector<32x32xf32>, vector<16x32xf32> -> vector<16x32xf32>
    %218 = arith.addf %197, %217 : vector<16x32xf32>
    %c1_133 = arith.constant 1 : index
    %c2_134 = arith.constant 2 : index
    %c0_135 = arith.constant 0 : index
    %c0_136 = arith.constant 0 : index
    %219 = vector.load %arg2[%c1_133, %c2_134, %c0_135, %c0_136] : memref<2x8x32x32xf32, #tpu.memory_space<vmem>>, vector<1x1x32x32xf32>
    %220 = vector.shape_cast %219 : vector<1x1x32x32xf32> to vector<32x32xf32>
    %c1_137 = arith.constant 1 : index
    %c6_138 = arith.constant 6 : index
    %c0_139 = arith.constant 0 : index
    %c0_140 = arith.constant 0 : index
    %221 = vector.load %arg2[%c1_137, %c6_138, %c0_139, %c0_140] : memref<2x8x32x32xf32, #tpu.memory_space<vmem>>, vector<1x1x32x32xf32>
    %222 = vector.shape_cast %221 : vector<1x1x32x32xf32> to vector<32x32xf32>
    %cst_141 = arith.constant dense<0.000000e+00> : vector<16x32xf32>
    %223 = tpu.matmul %164, %220, %cst_141 {dimension_numbers = #tpu.dot_dimension_numbers<[1], [0], [0], [1], [0, 0, 1, 1], [], []>} : vector<16x32xf32>, vector<32x32xf32>, vector<16x32xf32> -> vector<16x32xf32>
    %224 = vector.shape_cast %223 : vector<16x32xf32> to vector<2x8x32xf32>
    "tpu.trace_start"() <{level = 10 : i32, message = "bqf,bkf->bqk"}> : () -> ()
    %cst_142 = arith.constant dense<0.000000e+00> : vector<2x8x8xf32>
    %225 = tpu.matmul %224, %175, %cst_142 {dimension_numbers = #tpu.dot_dimension_numbers<[2], [2], [1], [1], [0, 0, 0, 1, 1, 1], [0], [0]>} : vector<2x8x32xf32>, vector<2x8x32xf32>, vector<2x8x8xf32> -> vector<2x8x8xf32>
    "tpu.trace_stop"() : () -> ()
    %cst_143 = arith.constant dense<0xFF800000> : vector<2x8xf32>
    %226 = vector.multi_reduction <maximumf>, %225, %cst_143 [2] : vector<2x8x8xf32> to vector<2x8xf32>
    %227 = vector.shape_cast %226 : vector<2x8xf32> to vector<2x8x1xf32>
    %228 = vector.broadcast %227 : vector<2x8x1xf32> to vector<2x8x8xf32>
    %229 = arith.subf %225, %228 : vector<2x8x8xf32>
    %230 = math.exp %229 : vector<2x8x8xf32>
    %cst_144 = arith.constant dense<0.000000e+00> : vector<2x8xf32>
    %231 = vector.multi_reduction <add>, %230, %cst_144 [2] : vector<2x8x8xf32> to vector<2x8xf32>
    %232 = vector.shape_cast %231 : vector<2x8xf32> to vector<2x8x1xf32>
    %233 = tpu.reciprocal %232 {approx = true} : vector<2x8x1xf32> -> vector<2x8x1xf32>
    %234 = vector.broadcast %233 : vector<2x8x1xf32> to vector<2x8x8xf32>
    %235 = arith.mulf %230, %234 : vector<2x8x8xf32>
    "tpu.trace_start"() <{level = 10 : i32, message = "bqk,bkf->bqf"}> : () -> ()
    %cst_145 = arith.constant dense<0.000000e+00> : vector<2x8x32xf32>
    %236 = tpu.matmul %235, %175, %cst_145 {dimension_numbers = #tpu.dot_dimension_numbers<[2], [1], [1], [2], [0, 0, 0, 1, 1, 2], [0], [0]>} : vector<2x8x8xf32>, vector<2x8x32xf32>, vector<2x8x32xf32> -> vector<2x8x32xf32>
    "tpu.trace_stop"() : () -> ()
    %237 = vector.shape_cast %236 : vector<2x8x32xf32> to vector<16x32xf32>
    %cst_146 = arith.constant dense<0.000000e+00> : vector<16x32xf32>
    %238 = tpu.matmul %237, %222, %cst_146 {dimension_numbers = #tpu.dot_dimension_numbers<[1], [0], [0], [1], [0, 0, 1, 1], [], []>} : vector<16x32xf32>, vector<32x32xf32>, vector<16x32xf32> -> vector<16x32xf32>
    %239 = arith.addf %218, %238 : vector<16x32xf32>
    %c1_147 = arith.constant 1 : index
    %c3_148 = arith.constant 3 : index
    %c0_149 = arith.constant 0 : index
    %c0_150 = arith.constant 0 : index
    %240 = vector.load %arg2[%c1_147, %c3_148, %c0_149, %c0_150] : memref<2x8x32x32xf32, #tpu.memory_space<vmem>>, vector<1x1x32x32xf32>
    %241 = vector.shape_cast %240 : vector<1x1x32x32xf32> to vector<32x32xf32>
    %c1_151 = arith.constant 1 : index
    %c7_152 = arith.constant 7 : index
    %c0_153 = arith.constant 0 : index
    %c0_154 = arith.constant 0 : index
    %242 = vector.load %arg2[%c1_151, %c7_152, %c0_153, %c0_154] : memref<2x8x32x32xf32, #tpu.memory_space<vmem>>, vector<1x1x32x32xf32>
    %243 = vector.shape_cast %242 : vector<1x1x32x32xf32> to vector<32x32xf32>
    %cst_155 = arith.constant dense<0.000000e+00> : vector<16x32xf32>
    %244 = tpu.matmul %164, %241, %cst_155 {dimension_numbers = #tpu.dot_dimension_numbers<[1], [0], [0], [1], [0, 0, 1, 1], [], []>} : vector<16x32xf32>, vector<32x32xf32>, vector<16x32xf32> -> vector<16x32xf32>
    %245 = vector.shape_cast %244 : vector<16x32xf32> to vector<2x8x32xf32>
    "tpu.trace_start"() <{level = 10 : i32, message = "bqf,bkf->bqk"}> : () -> ()
    %cst_156 = arith.constant dense<0.000000e+00> : vector<2x8x8xf32>
    %246 = tpu.matmul %245, %175, %cst_156 {dimension_numbers = #tpu.dot_dimension_numbers<[2], [2], [1], [1], [0, 0, 0, 1, 1, 1], [0], [0]>} : vector<2x8x32xf32>, vector<2x8x32xf32>, vector<2x8x8xf32> -> vector<2x8x8xf32>
    "tpu.trace_stop"() : () -> ()
    %cst_157 = arith.constant dense<0xFF800000> : vector<2x8xf32>
    %247 = vector.multi_reduction <maximumf>, %246, %cst_157 [2] : vector<2x8x8xf32> to vector<2x8xf32>
    %248 = vector.shape_cast %247 : vector<2x8xf32> to vector<2x8x1xf32>
    %249 = vector.broadcast %248 : vector<2x8x1xf32> to vector<2x8x8xf32>
    %250 = arith.subf %246, %249 : vector<2x8x8xf32>
    %251 = math.exp %250 : vector<2x8x8xf32>
    %cst_158 = arith.constant dense<0.000000e+00> : vector<2x8xf32>
    %252 = vector.multi_reduction <add>, %251, %cst_158 [2] : vector<2x8x8xf32> to vector<2x8xf32>
    %253 = vector.shape_cast %252 : vector<2x8xf32> to vector<2x8x1xf32>
    %254 = tpu.reciprocal %253 {approx = true} : vector<2x8x1xf32> -> vector<2x8x1xf32>
    %255 = vector.broadcast %254 : vector<2x8x1xf32> to vector<2x8x8xf32>
    %256 = arith.mulf %251, %255 : vector<2x8x8xf32>
    "tpu.trace_start"() <{level = 10 : i32, message = "bqk,bkf->bqf"}> : () -> ()
    %cst_159 = arith.constant dense<0.000000e+00> : vector<2x8x32xf32>
    %257 = tpu.matmul %256, %175, %cst_159 {dimension_numbers = #tpu.dot_dimension_numbers<[2], [1], [1], [2], [0, 0, 0, 1, 1, 2], [0], [0]>} : vector<2x8x8xf32>, vector<2x8x32xf32>, vector<2x8x32xf32> -> vector<2x8x32xf32>
    "tpu.trace_stop"() : () -> ()
    %258 = vector.shape_cast %257 : vector<2x8x32xf32> to vector<16x32xf32>
    %cst_160 = arith.constant dense<0.000000e+00> : vector<16x32xf32>
    %259 = tpu.matmul %258, %243, %cst_160 {dimension_numbers = #tpu.dot_dimension_numbers<[1], [0], [0], [1], [0, 0, 1, 1], [], []>} : vector<16x32xf32>, vector<32x32xf32>, vector<16x32xf32> -> vector<16x32xf32>
    %260 = arith.addf %239, %259 : vector<16x32xf32>
    %261 = vector.broadcast %166 : vector<1x32xf32> to vector<16x32xf32>
    %262 = arith.addf %260, %261 : vector<16x32xf32>
    %263 = arith.addf %262, %164 : vector<16x32xf32>
    %cst_161 = arith.constant dense<0.000000e+00> : vector<16xf32>
    %264 = vector.multi_reduction <add>, %263, %cst_161 [1] : vector<16x32xf32> to vector<16xf32>
    %265 = vector.shape_cast %264 : vector<16xf32> to vector<16x1xf32>
    %cst_162 = arith.constant 3.200000e+01 : f32
    %266 = vector.broadcast %cst_162 : f32 to vector<16x1xf32>
    %267 = arith.divf %265, %266 : vector<16x1xf32>
    %268 = vector.broadcast %267 : vector<16x1xf32> to vector<16x32xf32>
    %269 = arith.subf %263, %268 : vector<16x32xf32>
    %270 = arith.mulf %269, %269 : vector<16x32xf32>
    %cst_163 = arith.constant dense<0.000000e+00> : vector<16xf32>
    %271 = vector.multi_reduction <add>, %270, %cst_163 [1] : vector<16x32xf32> to vector<16xf32>
    %272 = vector.shape_cast %271 : vector<16xf32> to vector<16x1xf32>
    %cst_164 = arith.constant 3.200000e+01 : f32
    %273 = vector.broadcast %cst_164 : f32 to vector<16x1xf32>
    %274 = arith.divf %272, %273 : vector<16x1xf32>
    %275 = vector.broadcast %267 : vector<16x1xf32> to vector<16x32xf32>
    %276 = arith.subf %263, %275 : vector<16x32xf32>
    %cst_165 = arith.constant 9.99999974E-6 : f32
    %277 = vector.broadcast %cst_165 : f32 to vector<16x1xf32>
    %278 = arith.addf %274, %277 : vector<16x1xf32>
    %279 = math.rsqrt %278 : vector<16x1xf32>
    %280 = vector.broadcast %279 : vector<16x1xf32> to vector<16x32xf32>
    %281 = arith.mulf %276, %280 : vector<16x32xf32>
    %282 = vector.broadcast %168 : vector<1x32xf32> to vector<16x32xf32>
    %283 = arith.mulf %281, %282 : vector<16x32xf32>
    %284 = vector.broadcast %170 : vector<1x32xf32> to vector<16x32xf32>
    %285 = arith.addf %283, %284 : vector<16x32xf32>
    %c1_166 = arith.constant 1 : index
    %c0_167 = arith.constant 0 : index
    %c0_168 = arith.constant 0 : index
    %286 = vector.load %arg3[%c1_166, %c0_167, %c0_168] : memref<2x32x64xf32, #tpu.memory_space<vmem>>, vector<1x32x64xf32>
    %287 = vector.shape_cast %286 : vector<1x32x64xf32> to vector<32x64xf32>
    %cst_169 = arith.constant dense<0.000000e+00> : vector<16x64xf32>
    %288 = tpu.matmul %285, %287, %cst_169 {dimension_numbers = #tpu.dot_dimension_numbers<[1], [0], [0], [1], [0, 0, 1, 1], [], []>} : vector<16x32xf32>, vector<32x64xf32>, vector<16x64xf32> -> vector<16x64xf32>
    %289 = vector.broadcast %172 : vector<1x64xf32> to vector<16x64xf32>
    %290 = arith.addf %288, %289 : vector<16x64xf32>
    %cst_170 = arith.constant 0.000000e+00 : f32
    %291 = vector.broadcast %cst_170 : f32 to vector<16x64xf32>
    %292 = arith.maximumf %290, %291 : vector<16x64xf32>
    %c1_171 = arith.constant 1 : index
    %c0_172 = arith.constant 0 : index
    %c0_173 = arith.constant 0 : index
    %293 = vector.load %arg4[%c1_171, %c0_172, %c0_173] : memref<2x64x32xf32, #tpu.memory_space<vmem>>, vector<1x64x32xf32>
    %294 = vector.shape_cast %293 : vector<1x64x32xf32> to vector<64x32xf32>
    %cst_174 = arith.constant dense<0.000000e+00> : vector<16x32xf32>
    %295 = tpu.matmul %292, %294, %cst_174 {dimension_numbers = #tpu.dot_dimension_numbers<[1], [0], [0], [1], [0, 0, 1, 1], [], []>} : vector<16x64xf32>, vector<64x32xf32>, vector<16x32xf32> -> vector<16x32xf32>
    %296 = vector.broadcast %174 : vector<1x32xf32> to vector<16x32xf32>
    %297 = arith.addf %295, %296 : vector<16x32xf32>
    %298 = arith.addf %297, %285 : vector<16x32xf32>
    %cst_175 = arith.constant dense<0.000000e+00> : vector<16xf32>
    %299 = vector.multi_reduction <add>, %298, %cst_175 [1] : vector<16x32xf32> to vector<16xf32>
    %300 = vector.shape_cast %299 : vector<16xf32> to vector<16x1xf32>
    %cst_176 = arith.constant 3.200000e+01 : f32
    %301 = vector.broadcast %cst_176 : f32 to vector<16x1xf32>
    %302 = arith.divf %300, %301 : vector<16x1xf32>
    %303 = vector.broadcast %302 : vector<16x1xf32> to vector<16x32xf32>
    %304 = arith.subf %298, %303 : vector<16x32xf32>
    %305 = arith.mulf %304, %304 : vector<16x32xf32>
    %cst_177 = arith.constant dense<0.000000e+00> : vector<16xf32>
    %306 = vector.multi_reduction <add>, %305, %cst_177 [1] : vector<16x32xf32> to vector<16xf32>
    %307 = vector.shape_cast %306 : vector<16xf32> to vector<16x1xf32>
    %cst_178 = arith.constant 3.200000e+01 : f32
    %308 = vector.broadcast %cst_178 : f32 to vector<16x1xf32>
    %309 = arith.divf %307, %308 : vector<16x1xf32>
    %310 = vector.broadcast %302 : vector<16x1xf32> to vector<16x32xf32>
    %311 = arith.subf %298, %310 : vector<16x32xf32>
    %cst_179 = arith.constant 9.99999974E-6 : f32
    %312 = vector.broadcast %cst_179 : f32 to vector<16x1xf32>
    %313 = arith.addf %309, %312 : vector<16x1xf32>
    %314 = math.rsqrt %313 : vector<16x1xf32>
    %315 = vector.broadcast %314 : vector<16x1xf32> to vector<16x32xf32>
    %316 = arith.mulf %311, %315 : vector<16x32xf32>
    %317 = vector.broadcast %168 : vector<1x32xf32> to vector<16x32xf32>
    %318 = arith.mulf %316, %317 : vector<16x32xf32>
    %319 = vector.broadcast %170 : vector<1x32xf32> to vector<16x32xf32>
    %320 = arith.addf %318, %319 : vector<16x32xf32>
    %c0_180 = arith.constant 0 : index
    %c0_181 = arith.constant 0 : index
    %321 = vector.load %arg6[%c0_180, %c0_181] : memref<16x32xf32, #tpu.memory_space<vmem>>, vector<16x32xf32>
    tpu.vector_store %arg6[%c0_180, %c0_181], %320 {strides = array<i32>} : memref<16x32xf32, #tpu.memory_space<vmem>>, vector<16x32xf32>,
    return
  }
}

</mosaic_0001>

<llo_original>
// kernel: encoder_forward.1
$region0: #{encoder_forward.1}
  #allocation0 [shape = 'u32[]', space=smem, size = 0x4, offset = 0x4, fixed_abs, tag = 'smem constant byte address 0x4 - core index']
  #allocation1 [shape = 'u32[144,128]{1,0:T(1,128)}', space=vmem, size = 0x12000, scoped, tag = 'internal scratch']
  %s0 = inlined_call_operand.vmem [shape: s32[16,1], index: 0, kind: input, shape index: {}]
  %s1 = inlined_call_operand.vmem [shape: f32[16,32], index: 1, kind: input, shape index: {}]
  %s2 = inlined_call_operand.hbm [shape: f32[2,8,32,32], index: 2, kind: input, shape index: {}]
  %s3 = inlined_call_operand.vmem [shape: f32[2,32,64], index: 3, kind: input, shape index: {}]
  %s4 = inlined_call_operand.vmem [shape: f32[2,64,32], index: 4, kind: input, shape index: {}]
  %s5 = inlined_call_operand.vmem [shape: f32[2,8,128], index: 5, kind: input, shape index: {}]
  %s6 = inlined_call_operand.hbm [shape: f32[16,32], index: 6, kind: output, shape index: {}]
  %s7 = sld [smem:[#allocation0]]
  $region38: #{encoder_forward.1} parent=0
    _
  %s9 = ssub.s32 1, %s7
  %s10 = scalar_select 0, %s9, %s7
  $region1: #{encoder_forward.1} parent=0
    #allocation2 [shape = 'u8[262144]{0}', space=vmem, size = 0x40000, scoped, tag = 'input window, operand 2, single buffered']
    #allocation3 [shape = 's32[1]{0}', space=sflag, size = 0x4, scoped, tag = 'scoped memory for encoder_forward.1']
    #allocation4 [shape = 's32[1]{0}', space=sflag, size = 0x4, scoped, tag = 'scoped memory for encoder_forward.1']
    #allocation5 [shape = 'u8[8192]{0}', space=vmem, size = 0x2000, scoped, tag = 'output window, operand 0, single buffered']
    %11 = vsyncpa [#allocation3], 0
    %12 = vsyncpa [#allocation4], 0
    // Predicated region
    $region2: #{encoder_forward.1} parent=1 // pred_check
      _
    $region3: #{encoder_forward.1} parent=1 // pred_check_branch
      %14 = sbr.rel (0) target = $region5
    $region4: #{encoder_forward.1} parent=1 // pred_region
      _
    $region5: #{encoder_forward.1} parent=1 // pred_fallthru
      _
    // Predicated region
    $region6: #{encoder_forward.1} parent=1 // pred_check
      _
    $region7: #{encoder_forward.1} parent=1 // pred_check_branch
      %16 = sbr.rel (0) target = $region9
    $region8: #{encoder_forward.1} parent=1 // pred_region
      _
    $region9: #{encoder_forward.1} parent=1 // pred_fallthru
      _
    // Predicated region
    $region10: #{encoder_forward.1} parent=1 // pred_check
      _
    $region11: #{encoder_forward.1} parent=1 // pred_check_branch
      %18 = sbr.rel (0) target = $region13
    $region12: #{encoder_forward.1} parent=1 // pred_region
      %s20 = ssub.s32 8192, 8192
      %21 = vsyncadd [#allocation3], %s20
      %s22 = sshll.u32 [#allocation2], 4
      %s23 = int_to_ptr.vmem [resolvable:$true] %s22
      %28 = dma.hbm_to_vmem [thread:$0]  %s2, 8192, %s23, [#allocation3], 128, 128, 8
    $region13: #{encoder_forward.1} parent=1 // pred_fallthru
      _
    // Predicated region
    $region14: #{encoder_forward.1} parent=1 // pred_check
      _
    $region15: #{encoder_forward.1} parent=1 // pred_check_branch
      %30 = sbr.rel (0) target = $region17
    $region16: #{encoder_forward.1} parent=1 // pred_region
      _
    $region17: #{encoder_forward.1} parent=1 // pred_fallthru
      _
    // Predicated region
    $region18: #{encoder_forward.1} parent=1 // pred_check
      _
    $region19: #{encoder_forward.1} parent=1 // pred_check_branch
      %32 = sbr.rel (0) target = $region21
    $region20: #{encoder_forward.1} parent=1 // pred_region
      _
    $region21: #{encoder_forward.1} parent=1 // pred_fallthru
      _
    // Predicated region
    $region22: #{encoder_forward.1} parent=1 // pred_check
      _
    $region23: #{encoder_forward.1} parent=1 // pred_check_branch
      %34 = sbr.rel (0) target = $region25
    $region24: #{encoder_forward.1} parent=1 // pred_region
      _
    $region25: #{encoder_forward.1} parent=1 // pred_fallthru
      _
    // Predicated region
    $region26: #{encoder_forward.1} parent=1 // pred_check
      _
    $region27: #{encoder_forward.1} parent=1 // pred_check_branch
      %36 = sbr.rel (0) target = $region29
    $region28: #{encoder_forward.1} parent=1 // pred_region
      %37 = dma.done [#allocation3], 8192
    $region29: #{encoder_forward.1} parent=1 // pred_fallthru
      _
    %v38 = vld [vmem:[%s0] sm:$0xff]
    %v39 = vld [vmem:[%s0 + $0x8] sm:$0xff]
    %v40 = vlaneseq
    %v41 = vand.u32 %v40, 127
    %42 = vset.pattern.permute.xlu0 0
    %43 = vperm.xlu0 %42, %v38
    %v44 = vpop.permute.xlu0 %43
    %45 = vset.pattern.permute.xlu0 0
    %46 = vperm.xlu0 %45, %v39
    %v47 = vpop.permute.xlu0 %46
    %vm48 = vcmp.eq.s32.totalorder %v44, %v41
    %vm49 = vcmp.eq.s32.totalorder %v47, %v41
    %v50 = vsel %vm48, 1.0, 0.0
    %v51 = vsel %vm49, 1.0, 0.0
    %v52 = vld [vmem:[%s1] sm:$0xff]
    %v53 = vld [vmem:[%s1 + $0x8] sm:$0xff]
    %vm54 = vcmask 130048
    %v56 = vsel %vm54, %v50, 0
    %v59 = vsel %vm54, %v51, 0
    %61 = vmatprep.subr.mxu0 0.0
    %62 = vmatpush1.msra.mxu0 %v52
    %63 = vmatprep.subr.mxu0 0.0
    %64 = vmatpush1.msra.mxu0 %v53
    %65 = vmatprep.subr.mxu0 0.0
    %66 = vmatpush1.msra.mxu0 0.0
    %67 = vmatprep.subr.mxu0 0.0
    %68 = vmatpush1.msra.mxu0 0.0
    %69 = vmatprep.subr.mxu0 0.0
    %70 = vmatpush1.msra.mxu0 0.0
    %71 = vmatprep.subr.mxu0 0.0
    %72 = vmatpush1.msra.mxu0 0.0
    %73 = vmatprep.subr.mxu0 0.0
    %74 = vmatpush1.msra.mxu0 0.0
    %75 = vmatprep.subr.mxu0 0.0
    %76 = vmatpush1.msra.mxu0 0.0
    %77 = vmatprep.subr.mxu0 0.0
    %78 = vmatpush1.msra.mxu0 0.0
    %79 = vmatprep.subr.mxu0 0.0
    %80 = vmatpush1.msra.mxu0 0.0
    %81 = vmatprep.subr.mxu0 0.0
    %82 = vmatpush1.msra.mxu0 0.0
    %83 = vmatprep.subr.mxu0 0.0
    %84 = vmatpush1.msra.mxu0 0.0
    %85 = vmatprep.subr.mxu0 0.0
    %86 = vmatpush1.msra.mxu0 0.0
    %87 = vmatprep.subr.mxu0 0.0
    %88 = vmatpush1.msra.mxu0 0.0
    %89 = vmatprep.subr.mxu0 0.0
    %90 = vmatpush1.msra.mxu0 0.0
    %91 = vmatprep.subr.mxu0 0.0
    %92 = vmatpush1.msra.mxu0 0.0
    %93 = vmatprep.subr.mxu0 0.0
    %94 = vmatpush1.msra.mxu0 0.0
    %95 = vmatprep.subr.mxu0 0.0
    %96 = vmatpush1.msra.mxu0 0.0
    %97 = vmatprep.subr.mxu0 0.0
    %98 = vmatpush1.msra.mxu0 0.0
    %99 = vmatprep.subr.mxu0 0.0
    %100 = vmatpush1.msra.mxu0 0.0
    %101 = vmatprep.subr.mxu0 0.0
    %102 = vmatpush1.msra.mxu0 0.0
    %103 = vmatprep.subr.mxu0 0.0
    %104 = vmatpush1.msra.mxu0 0.0
    %105 = vmatprep.subr.mxu0 0.0
    %106 = vmatpush1.msra.mxu0 0.0
    %107 = vmatprep.subr.mxu0 0.0
    %108 = vmatpush1.msra.mxu0 0.0
    %109 = vmatprep.subr.mxu0 0.0
    %110 = vmatpush1.msra.mxu0 0.0
    %111 = vmatprep.subr.mxu0 0.0
    %112 = vmatpush1.msra.mxu0 0.0
    %113 = vmatprep.subr.mxu0 0.0
    %114 = vmatpush1.msra.mxu0 0.0
    %115 = vmatprep.subr.mxu0 0.0
    %116 = vmatpush1.msra.mxu0 0.0
    %117 = vmatprep.subr.mxu0 0.0
    %118 = vmatpush1.msra.mxu0 0.0
    %119 = vmatprep.subr.mxu0 0.0
    %120 = vmatpush1.msra.mxu0 0.0
    %121 = vmatprep.subr.mxu0 0.0
    %122 = vmatpush1.msra.mxu0 0.0
    %123 = vmatprep.subr.mxu0 0.0
    %124 = vmatpush1.msra.mxu0 0.0
    %125 = vmatprep.mubr.f32.mxu0 0.0
    %126 = vmatmul.mubr.f32.gmra.mrb[0].mxu0 %v56
    %v127 = vpop.f32.mrb[0].mxu0
    %v128 = vadd.f32 0.0, %v127
    %v129 = vpop.f32.mrb[0].mxu0
    %130 = vmatprep.mubr.f32.mxu0 0.0
    %131 = vmatmul.mubr.f32.gmra.mrb[0].mxu0 %v59
    %v132 = vpop.f32.mrb[0].mxu0
    %v133 = vadd.f32 0.0, %v132
    %v134 = vpop.f32.mrb[0].mxu0
    %135 = vdwg.mxu0
    %v136 = vld [vmem:[%s5] sm:$0x1]
    %v137 = vld [vmem:[%s5 + $0x1] sm:$0x1]
    %v138 = vld [vmem:[%s5 + $0x2] sm:$0x1]
    %v139 = vld [vmem:[%s5 + $0x3] sm:$0x1]
    %v140 = vld [vmem:[%s5 + $0x4] sm:$0x1]
    %v141 = vld [vmem:[#allocation2] sm:$0xff]
    %v142 = vld [vmem:[#allocation2 + $0x8] sm:$0xff]
    %v143 = vld [vmem:[#allocation2 + $0x10] sm:$0xff]
    %v144 = vld [vmem:[#allocation2 + $0x18] sm:$0xff]
    %s145 = scalar_lea.vmem [#allocation2], 128
    %v146 = vld [vmem:[%s145] sm:$0xff]
    %v147 = vld [vmem:[%s145 + $0x8] sm:$0xff]
    %v148 = vld [vmem:[%s145 + $0x10] sm:$0xff]
    %v149 = vld [vmem:[%s145 + $0x18] sm:$0xff]
    %vm150 = vcmask 261120
    %v152 = vsel %vm150, %v128, 0
    %v155 = vsel %vm150, %v133, 0
    %157 = vmatprep.subr.mxu0 0.0
    %158 = vmatpush1.msra.mxu0 %v141
    %159 = vmatprep.subr.mxu0 0.0
    %160 = vmatpush1.msra.mxu0 %v142
    %161 = vmatprep.subr.mxu0 0.0
    %162 = vmatpush1.msra.mxu0 %v143
    %163 = vmatprep.subr.mxu0 0.0
    %164 = vmatpush1.msra.mxu0 %v144
    %165 = vmatprep.subr.mxu0 0.0
    %166 = vmatpush1.msra.mxu0 0.0
    %167 = vmatprep.subr.mxu0 0.0
    %168 = vmatpush1.msra.mxu0 0.0
    %169 = vmatprep.subr.mxu0 0.0
    %170 = vmatpush1.msra.mxu0 0.0
    %171 = vmatprep.subr.mxu0 0.0
    %172 = vmatpush1.msra.mxu0 0.0
    %173 = vmatprep.subr.mxu0 0.0
    %174 = vmatpush1.msra.mxu0 0.0
    %175 = vmatprep.subr.mxu0 0.0
    %176 = vmatpush1.msra.mxu0 0.0
    %177 = vmatprep.subr.mxu0 0.0
    %178 = vmatpush1.msra.mxu0 0.0
    %179 = vmatprep.subr.mxu0 0.0
    %180 = vmatpush1.msra.mxu0 0.0
    %181 = vmatprep.subr.mxu0 0.0
    %182 = vmatpush1.msra.mxu0 0.0
    %183 = vmatprep.subr.mxu0 0.0
    %184 = vmatpush1.msra.mxu0 0.0
    %185 = vmatprep.subr.mxu0 0.0
    %186 = vmatpush1.msra.mxu0 0.0
    %187 = vmatprep.subr.mxu0 0.0
    %188 = vmatpush1.msra.mxu0 0.0
    %189 = vmatprep.subr.mxu0 0.0
    %190 = vmatpush1.msra.mxu0 0.0
    %191 = vmatprep.subr.mxu0 0.0
    %192 = vmatpush1.msra.mxu0 0.0
    %193 = vmatprep.subr.mxu0 0.0
    %194 = vmatpush1.msra.mxu0 0.0
    %195 = vmatprep.subr.mxu0 0.0
    %196 = vmatpush1.msra.mxu0 0.0
    %197 = vmatprep.subr.mxu0 0.0
    %198 = vmatpush1.msra.mxu0 0.0
    %199 = vmatprep.subr.mxu0 0.0
    %200 = vmatpush1.msra.mxu0 0.0
    %201 = vmatprep.subr.mxu0 0.0
    %202 = vmatpush1.msra.mxu0 0.0
    %203 = vmatprep.subr.mxu0 0.0
    %204 = vmatpush1.msra.mxu0 0.0
    %205 = vmatprep.subr.mxu0 0.0
    %206 = vmatpush1.msra.mxu0 0.0
    %207 = vmatprep.subr.mxu0 0.0
    %208 = vmatpush1.msra.mxu0 0.0
    %209 = vmatprep.subr.mxu0 0.0
    %210 = vmatpush1.msra.mxu0 0.0
    %211 = vmatprep.subr.mxu0 0.0
    %212 = vmatpush1.msra.mxu0 0.0
    %213 = vmatprep.subr.mxu0 0.0
    %214 = vmatpush1.msra.mxu0 0.0
    %215 = vmatprep.subr.mxu0 0.0
    %216 = vmatpush1.msra.mxu0 0.0
    %217 = vmatprep.subr.mxu0 0.0
    %218 = vmatpush1.msra.mxu0 0.0
    %219 = vmatprep.subr.mxu0 0.0
    %220 = vmatpush1.msra.mxu0 0.0
    %221 = vmatprep.mubr.f32.mxu0 0.0
    %222 = vmatmul.mubr.f32.gmra.mrb[0].mxu0 %v152
    %v223 = vpop.f32.mrb[0].mxu0
    %v224 = vadd.f32 0.0, %v223
    %v225 = vpop.f32.mrb[0].mxu0
    %226 = vmatprep.mubr.f32.mxu0 0.0
    %227 = vmatmul.mubr.f32.gmra.mrb[0].mxu0 %v155
    %v228 = vpop.f32.mrb[0].mxu0
    %v229 = vadd.f32 0.0, %v228
    %v230 = vpop.f32.mrb[0].mxu0
    %231 = vdwg.mxu0
    %v233 = vsel %vm150, %v224, 0
    %235 = vmatprep.subr.mxu0 0.0
    %236 = vmatpush1.xpose.msra.mxu0 %v152
    %237 = vmatprep.subr.mxu0 0.0
    %238 = vmatpush1.xpose.msra.mxu0 0.0
    %239 = vmatprep.subr.mxu0 0.0
    %240 = vmatpush1.xpose.msra.mxu0 0.0
    %241 = vmatprep.subr.mxu0 0.0
    %242 = vmatpush1.xpose.msra.mxu0 0.0
    %243 = vmatprep.subr.mxu0 0.0
    %244 = vmatpush1.xpose.msra.mxu0 0.0
    %245 = vmatprep.subr.mxu0 0.0
    %246 = vmatpush1.xpose.msra.mxu0 0.0
    %247 = vmatprep.subr.mxu0 0.0
    %248 = vmatpush1.xpose.msra.mxu0 0.0
    %249 = vmatprep.subr.mxu0 0.0
    %250 = vmatpush1.xpose.msra.mxu0 0.0
    %251 = vmatprep.subr.mxu0 0.0
    %252 = vmatpush1.xpose.msra.mxu0 0.0
    %253 = vmatprep.subr.mxu0 0.0
    %254 = vmatpush1.xpose.msra.mxu0 0.0
    %255 = vmatprep.subr.mxu0 0.0
    %256 = vmatpush1.xpose.msra.mxu0 0.0
    %257 = vmatprep.subr.mxu0 0.0
    %258 = vmatpush1.xpose.msra.mxu0 0.0
    %259 = vmatprep.subr.mxu0 0.0
    %260 = vmatpush1.xpose.msra.mxu0 0.0
    %261 = vmatprep.subr.mxu0 0.0
    %262 = vmatpush1.xpose.msra.mxu0 0.0
    %263 = vmatprep.subr.mxu0 0.0
    %264 = vmatpush1.xpose.msra.mxu0 0.0
    %265 = vmatprep.subr.mxu0 0.0
    %266 = vmatpush1.xpose.msra.mxu0 0.0
    %267 = vmatprep.subr.mxu0 0.0
    %268 = vmatpush1.xpose.msra.mxu0 0.0
    %269 = vmatprep.subr.mxu0 0.0
    %270 = vmatpush1.xpose.msra.mxu0 0.0
    %271 = vmatprep.subr.mxu0 0.0
    %272 = vmatpush1.xpose.msra.mxu0 0.0
    %273 = vmatprep.subr.mxu0 0.0
    %274 = vmatpush1.xpose.msra.mxu0 0.0
    %275 = vmatprep.subr.mxu0 0.0
    %276 = vmatpush1.xpose.msra.mxu0 0.0
    %277 = vmatprep.subr.mxu0 0.0
    %278 = vmatpush1.xpose.msra.mxu0 0.0
    %279 = vmatprep.subr.mxu0 0.0
    %280 = vmatpush1.xpose.msra.mxu0 0.0
    %281 = vmatprep.subr.mxu0 0.0
    %282 = vmatpush1.xpose.msra.mxu0 0.0
    %283 = vmatprep.subr.mxu0 0.0
    %284 = vmatpush1.xpose.msra.mxu0 0.0
    %285 = vmatprep.subr.mxu0 0.0
    %286 = vmatpush1.xpose.msra.mxu0 0.0
    %287 = vmatprep.subr.mxu0 0.0
    %288 = vmatpush1.xpose.msra.mxu0 0.0
    %289 = vmatprep.subr.mxu0 0.0
    %290 = vmatpush1.xpose.msra.mxu0 0.0
    %291 = vmatprep.subr.mxu0 0.0
    %292 = vmatpush1.xpose.msra.mxu0 0.0
    %293 = vmatprep.subr.mxu0 0.0
    %294 = vmatpush1.xpose.msra.mxu0 0.0
    %295 = vmatprep.subr.mxu0 0.0
    %296 = vmatpush1.xpose.msra.mxu0 0.0
    %297 = vmatprep.subr.mxu0 0.0
    %298 = vmatpush1.xpose.msra.mxu0 0.0
    %299 = vmatprep.mubr.f32.mxu0 0.0
    %300 = vmatmul.mubr.f32.gmra.mrb[0].mxu0 %v233
    %v301 = vpop.f32.mrb[0].mxu0
    %v302 = vadd.f32 0.0, %v301
    %v303 = vpop.f32.mrb[0].mxu0
    %304 = vdwg.mxu0
    %v306 = vsel %vm150, %v229, 0
    %308 = vmatprep.subr.mxu0 0.0
    %309 = vmatpush1.xpose.msra.mxu0 %v155
    %310 = vmatprep.subr.mxu0 0.0
    %311 = vmatpush1.xpose.msra.mxu0 0.0
    %312 = vmatprep.subr.mxu0 0.0
    %313 = vmatpush1.xpose.msra.mxu0 0.0
    %314 = vmatprep.subr.mxu0 0.0
    %315 = vmatpush1.xpose.msra.mxu0 0.0
    %316 = vmatprep.subr.mxu0 0.0
    %317 = vmatpush1.xpose.msra.mxu0 0.0
    %318 = vmatprep.subr.mxu0 0.0
    %319 = vmatpush1.xpose.msra.mxu0 0.0
    %320 = vmatprep.subr.mxu0 0.0
    %321 = vmatpush1.xpose.msra.mxu0 0.0
    %322 = vmatprep.subr.mxu0 0.0
    %323 = vmatpush1.xpose.msra.mxu0 0.0
    %324 = vmatprep.subr.mxu0 0.0
    %325 = vmatpush1.xpose.msra.mxu0 0.0
    %326 = vmatprep.subr.mxu0 0.0
    %327 = vmatpush1.xpose.msra.mxu0 0.0
    %328 = vmatprep.subr.mxu0 0.0
    %329 = vmatpush1.xpose.msra.mxu0 0.0
    %330 = vmatprep.subr.mxu0 0.0
    %331 = vmatpush1.xpose.msra.mxu0 0.0
    %332 = vmatprep.subr.mxu0 0.0
    %333 = vmatpush1.xpose.msra.mxu0 0.0
    %334 = vmatprep.subr.mxu0 0.0
    %335 = vmatpush1.xpose.msra.mxu0 0.0
    %336 = vmatprep.subr.mxu0 0.0
    %337 = vmatpush1.xpose.msra.mxu0 0.0
    %338 = vmatprep.subr.mxu0 0.0
    %339 = vmatpush1.xpose.msra.mxu0 0.0
    %340 = vmatprep.subr.mxu0 0.0
    %341 = vmatpush1.xpose.msra.mxu0 0.0
    %342 = vmatprep.subr.mxu0 0.0
    %343 = vmatpush1.xpose.msra.mxu0 0.0
    %344 = vmatprep.subr.mxu0 0.0
    %345 = vmatpush1.xpose.msra.mxu0 0.0
    %346 = vmatprep.subr.mxu0 0.0
    %347 = vmatpush1.xpose.msra.mxu0 0.0
    %348 = vmatprep.subr.mxu0 0.0
    %349 = vmatpush1.xpose.msra.mxu0 0.0
    %350 = vmatprep.subr.mxu0 0.0
    %351 = vmatpush1.xpose.msra.mxu0 0.0
    %352 = vmatprep.subr.mxu0 0.0
    %353 = vmatpush1.xpose.msra.mxu0 0.0
    %354 = vmatprep.subr.mxu0 0.0
    %355 = vmatpush1.xpose.msra.mxu0 0.0
    %356 = vmatprep.subr.mxu0 0.0
    %357 = vmatpush1.xpose.msra.mxu0 0.0
    %358 = vmatprep.subr.mxu0 0.0
    %359 = vmatpush1.xpose.msra.mxu0 0.0
    %360 = vmatprep.subr.mxu0 0.0
    %361 = vmatpush1.xpose.msra.mxu0 0.0
    %362 = vmatprep.subr.mxu0 0.0
    %363 = vmatpush1.xpose.msra.mxu0 0.0
    %364 = vmatprep.subr.mxu0 0.0
    %365 = vmatpush1.xpose.msra.mxu0 0.0
    %366 = vmatprep.subr.mxu0 0.0
    %367 = vmatpush1.xpose.msra.mxu0 0.0
    %368 = vmatprep.subr.mxu0 0.0
    %369 = vmatpush1.xpose.msra.mxu0 0.0
    %370 = vmatprep.subr.mxu0 0.0
    %371 = vmatpush1.xpose.msra.mxu0 0.0
    %372 = vmatprep.mubr.f32.mxu0 0.0
    %373 = vmatmul.mubr.f32.gmra.mrb[0].mxu0 %v306
    %v374 = vpop.f32.mrb[0].mxu0
    %v375 = vadd.f32 0.0, %v374
    %v376 = vpop.f32.mrb[0].mxu0
    %377 = vdwg.mxu0
    %vm378 = vcmask 64512
    %v379 = vsel %vm378, %v302, -inf
    %380 = vmax.xlane.f32.xlu0 %v379
    %v381 = vpop.xlane.xlu0 %380
    %v382 = vsel %vm378, %v375, -inf
    %383 = vmax.xlane.f32.xlu0 %v382
    %v384 = vpop.xlane.xlu0 %383
    %v385 = vsub.f32 %v302, %v381
    %v386 = vsub.f32 %v375, %v384
    %v387 = vmul.f32 %v385, 1.442695
    %v388 = vpow.pop %v387
    %v389 = vmul.f32 %v386, 1.442695
    %v390 = vpow.pop %v389
    %v391 = vsel %vm378, %v388, 0.0
    %392 = vadd.xlane.f32.xlu0 %v391
    %v393 = vpop.xlane.xlu0 %392
    %v394 = vsel %vm378, %v390, 0.0
    %395 = vadd.xlane.f32.xlu0 %v394
    %v396 = vpop.xlane.xlu0 %395
    %v397 = vrcp.pop %v393
    %v398 = vrcp.pop %v396
    %v399 = vmul.f32 %v388, %v397
    %v400 = vmul.f32 %v390, %v398
    %v402 = vsel %vm378, %v399, 0
    %404 = vmatprep.subr.mxu0 0.0
    %405 = vmatpush1.msra.mxu0 %v128
    %406 = vmatprep.subr.mxu0 0.0
    %407 = vmatpush1.msra.mxu0 0.0
    %408 = vmatprep.subr.mxu0 0.0
    %409 = vmatpush1.msra.mxu0 0.0
    %410 = vmatprep.subr.mxu0 0.0
    %411 = vmatpush1.msra.mxu0 0.0
    %412 = vmatprep.subr.mxu0 0.0
    %413 = vmatpush1.msra.mxu0 0.0
    %414 = vmatprep.subr.mxu0 0.0
    %415 = vmatpush1.msra.mxu0 0.0
    %416 = vmatprep.subr.mxu0 0.0
    %417 = vmatpush1.msra.mxu0 0.0
    %418 = vmatprep.subr.mxu0 0.0
    %419 = vmatpush1.msra.mxu0 0.0
    %420 = vmatprep.subr.mxu0 0.0
    %421 = vmatpush1.msra.mxu0 0.0
    %422 = vmatprep.subr.mxu0 0.0
    %423 = vmatpush1.msra.mxu0 0.0
    %424 = vmatprep.subr.mxu0 0.0
    %425 = vmatpush1.msra.mxu0 0.0
    %426 = vmatprep.subr.mxu0 0.0
    %427 = vmatpush1.msra.mxu0 0.0
    %428 = vmatprep.subr.mxu0 0.0
    %429 = vmatpush1.msra.mxu0 0.0
    %430 = vmatprep.subr.mxu0 0.0
    %431 = vmatpush1.msra.mxu0 0.0
    %432 = vmatprep.subr.mxu0 0.0
    %433 = vmatpush1.msra.mxu0 0.0
    %434 = vmatprep.subr.mxu0 0.0
    %435 = vmatpush1.msra.mxu0 0.0
    %436 = vmatprep.subr.mxu0 0.0
    %437 = vmatpush1.msra.mxu0 0.0
    %438 = vmatprep.subr.mxu0 0.0
    %439 = vmatpush1.msra.mxu0 0.0
    %440 = vmatprep.subr.mxu0 0.0
    %441 = vmatpush1.msra.mxu0 0.0
    %442 = vmatprep.subr.mxu0 0.0
    %443 = vmatpush1.msra.mxu0 0.0
    %444 = vmatprep.subr.mxu0 0.0
    %445 = vmatpush1.msra.mxu0 0.0
    %446 = vmatprep.subr.mxu0 0.0
    %447 = vmatpush1.msra.mxu0 0.0
    %448 = vmatprep.subr.mxu0 0.0
    %449 = vmatpush1.msra.mxu0 0.0
    %450 = vmatprep.subr.mxu0 0.0
    %451 = vmatpush1.msra.mxu0 0.0
    %452 = vmatprep.subr.mxu0 0.0
    %453 = vmatpush1.msra.mxu0 0.0
    %454 = vmatprep.subr.mxu0 0.0
    %455 = vmatpush1.msra.mxu0 0.0
    %456 = vmatprep.subr.mxu0 0.0
    %457 = vmatpush1.msra.mxu0 0.0
    %458 = vmatprep.subr.mxu0 0.0
    %459 = vmatpush1.msra.mxu0 0.0
    %460 = vmatprep.subr.mxu0 0.0
    %461 = vmatpush1.msra.mxu0 0.0
    %462 = vmatprep.subr.mxu0 0.0
    %463 = vmatpush1.msra.mxu0 0.0
    %464 = vmatprep.subr.mxu0 0.0
    %465 = vmatpush1.msra.mxu0 0.0
    %466 = vmatprep.subr.mxu0 0.0
    %467 = vmatpush1.msra.mxu0 0.0
    %468 = vmatprep.mubr.f32.mxu0 0.0
    %469 = vmatmul.mubr.f32.gmra.mrb[0].mxu0 %v402
    %v470 = vpop.f32.mrb[0].mxu0
    %v471 = vadd.f32 0.0, %v470
    %v472 = vpop.f32.mrb[0].mxu0
    %473 = vdwg.mxu0
    %v475 = vsel %vm378, %v400, 0
    %477 = vmatprep.subr.mxu0 0.0
    %478 = vmatpush1.msra.mxu0 %v133
    %479 = vmatprep.subr.mxu0 0.0
    %480 = vmatpush1.msra.mxu0 0.0
    %481 = vmatprep.subr.mxu0 0.0
    %482 = vmatpush1.msra.mxu0 0.0
    %483 = vmatprep.subr.mxu0 0.0
    %484 = vmatpush1.msra.mxu0 0.0
    %485 = vmatprep.subr.mxu0 0.0
    %486 = vmatpush1.msra.mxu0 0.0
    %487 = vmatprep.subr.mxu0 0.0
    %488 = vmatpush1.msra.mxu0 0.0
    %489 = vmatprep.subr.mxu0 0.0
    %490 = vmatpush1.msra.mxu0 0.0
    %491 = vmatprep.subr.mxu0 0.0
    %492 = vmatpush1.msra.mxu0 0.0
    %493 = vmatprep.subr.mxu0 0.0
    %494 = vmatpush1.msra.mxu0 0.0
    %495 = vmatprep.subr.mxu0 0.0
    %496 = vmatpush1.msra.mxu0 0.0
    %497 = vmatprep.subr.mxu0 0.0
    %498 = vmatpush1.msra.mxu0 0.0
    %499 = vmatprep.subr.mxu0 0.0
    %500 = vmatpush1.msra.mxu0 0.0
    %501 = vmatprep.subr.mxu0 0.0
    %502 = vmatpush1.msra.mxu0 0.0
    %503 = vmatprep.subr.mxu0 0.0
    %504 = vmatpush1.msra.mxu0 0.0
    %505 = vmatprep.subr.mxu0 0.0
    %506 = vmatpush1.msra.mxu0 0.0
    %507 = vmatprep.subr.mxu0 0.0
    %508 = vmatpush1.msra.mxu0 0.0
    %509 = vmatprep.subr.mxu0 0.0
    %510 = vmatpush1.msra.mxu0 0.0
    %511 = vmatprep.subr.mxu0 0.0
    %512 = vmatpush1.msra.mxu0 0.0
    %513 = vmatprep.subr.mxu0 0.0
    %514 = vmatpush1.msra.mxu0 0.0
    %515 = vmatprep.subr.mxu0 0.0
    %516 = vmatpush1.msra.mxu0 0.0
    %517 = vmatprep.subr.mxu0 0.0
    %518 = vmatpush1.msra.mxu0 0.0
    %519 = vmatprep.subr.mxu0 0.0
    %520 = vmatpush1.msra.mxu0 0.0
    %521 = vmatprep.subr.mxu0 0.0
    %522 = vmatpush1.msra.mxu0 0.0
    %523 = vmatprep.subr.mxu0 0.0
    %524 = vmatpush1.msra.mxu0 0.0
    %525 = vmatprep.subr.mxu0 0.0
    %526 = vmatpush1.msra.mxu0 0.0
    %527 = vmatprep.subr.mxu0 0.0
    %528 = vmatpush1.msra.mxu0 0.0
    %529 = vmatprep.subr.mxu0 0.0
    %530 = vmatpush1.msra.mxu0 0.0
    %531 = vmatprep.subr.mxu0 0.0
    %532 = vmatpush1.msra.mxu0 0.0
    %533 = vmatprep.subr.mxu0 0.0
    %534 = vmatpush1.msra.mxu0 0.0
    %535 = vmatprep.subr.mxu0 0.0
    %536 = vmatpush1.msra.mxu0 0.0
    %537 = vmatprep.subr.mxu0 0.0
    %538 = vmatpush1.msra.mxu0 0.0
    %539 = vmatprep.subr.mxu0 0.0
    %540 = vmatpush1.msra.mxu0 0.0
    %541 = vmatprep.mubr.f32.mxu0 0.0
    %542 = vmatmul.mubr.f32.gmra.mrb[0].mxu0 %v475
    %v543 = vpop.f32.mrb[0].mxu0
    %v544 = vadd.f32 0.0, %v543
    %v545 = vpop.f32.mrb[0].mxu0
    %546 = vdwg.mxu0
    %s547 = scalar_lea.vmem [#allocation2], 32
    %v548 = vld [vmem:[%s547] sm:$0xff]
    %v549 = vld [vmem:[%s547 + $0x8] sm:$0xff]
    %v550 = vld [vmem:[%s547 + $0x10] sm:$0xff]
    %v551 = vld [vmem:[%s547 + $0x18] sm:$0xff]
    %s552 = scalar_lea.vmem [#allocation2], 160
    %v553 = vld [vmem:[%s552] sm:$0xff]
    %v554 = vld [vmem:[%s552 + $0x8] sm:$0xff]
    %v555 = vld [vmem:[%s552 + $0x10] sm:$0xff]
    %v556 = vld [vmem:[%s552 + $0x18] sm:$0xff]
    %557 = vmatprep.subr.mxu0 0.0
    %558 = vmatpush1.msra.mxu0 %v548
    %559 = vmatprep.subr.mxu0 0.0
    %560 = vmatpush1.msra.mxu0 %v549
    %561 = vmatprep.subr.mxu0 0.0
    %562 = vmatpush1.msra.mxu0 %v550
    %563 = vmatprep.subr.mxu0 0.0
    %564 = vmatpush1.msra.mxu0 %v551
    %565 = vmatprep.subr.mxu0 0.0
    %566 = vmatpush1.msra.mxu0 0.0
    %567 = vmatprep.subr.mxu0 0.0
    %568 = vmatpush1.msra.mxu0 0.0
    %569 = vmatprep.subr.mxu0 0.0
    %570 = vmatpush1.msra.mxu0 0.0
    %571 = vmatprep.subr.mxu0 0.0
    %572 = vmatpush1.msra.mxu0 0.0
    %573 = vmatprep.subr.mxu0 0.0
    %574 = vmatpush1.msra.mxu0 0.0
    %575 = vmatprep.subr.mxu0 0.0
    %576 = vmatpush1.msra.mxu0 0.0
    %577 = vmatprep.subr.mxu0 0.0
    %578 = vmatpush1.msra.mxu0 0.0
    %579 = vmatprep.subr.mxu0 0.0
    %580 = vmatpush1.msra.mxu0 0.0
    %581 = vmatprep.subr.mxu0 0.0
    %582 = vmatpush1.msra.mxu0 0.0
    %583 = vmatprep.subr.mxu0 0.0
    %584 = vmatpush1.msra.mxu0 0.0
    %585 = vmatprep.subr.mxu0 0.0
    %586 = vmatpush1.msra.mxu0 0.0
    %587 = vmatprep.subr.mxu0 0.0
    %588 = vmatpush1.msra.mxu0 0.0
    %589 = vmatprep.subr.mxu0 0.0
    %590 = vmatpush1.msra.mxu0 0.0
    %591 = vmatprep.subr.mxu0 0.0
    %592 = vmatpush1.msra.mxu0 0.0
    %593 = vmatprep.subr.mxu0 0.0
    %594 = vmatpush1.msra.mxu0 0.0
    %595 = vmatprep.subr.mxu0 0.0
    %596 = vmatpush1.msra.mxu0 0.0
    %597 = vmatprep.subr.mxu0 0.0
    %598 = vmatpush1.msra.mxu0 0.0
    %599 = vmatprep.subr.mxu0 0.0
    %600 = vmatpush1.msra.mxu0 0.0
    %601 = vmatprep.subr.mxu0 0.0
    %602 = vmatpush1.msra.mxu0 0.0
    %603 = vmatprep.subr.mxu0 0.0
    %604 = vmatpush1.msra.mxu0 0.0
    %605 = vmatprep.subr.mxu0 0.0
    %606 = vmatpush1.msra.mxu0 0.0
    %607 = vmatprep.subr.mxu0 0.0
    %608 = vmatpush1.msra.mxu0 0.0
    %609 = vmatprep.subr.mxu0 0.0
    %610 = vmatpush1.msra.mxu0 0.0
    %611 = vmatprep.subr.mxu0 0.0
    %612 = vmatpush1.msra.mxu0 0.0
    %613 = vmatprep.subr.mxu0 0.0
    %614 = vmatpush1.msra.mxu0 0.0
    %615 = vmatprep.subr.mxu0 0.0
    %616 = vmatpush1.msra.mxu0 0.0
    %617 = vmatprep.subr.mxu0 0.0
    %618 = vmatpush1.msra.mxu0 0.0
    %619 = vmatprep.subr.mxu0 0.0
    %620 = vmatpush1.msra.mxu0 0.0
    %621 = vmatprep.mubr.f32.mxu0 0.0
    %622 = vmatmul.mubr.f32.gmra.mrb[0].mxu0 %v152
    %v623 = vpop.f32.mrb[0].mxu0
    %v624 = vadd.f32 0.0, %v623
    %v625 = vpop.f32.mrb[0].mxu0
    %626 = vmatprep.mubr.f32.mxu0 0.0
    %627 = vmatmul.mubr.f32.gmra.mrb[0].mxu0 %v155
    %v628 = vpop.f32.mrb[0].mxu0
    %v629 = vadd.f32 0.0, %v628
    %v630 = vpop.f32.mrb[0].mxu0
    %631 = vdwg.mxu0
    %v633 = vsel %vm150, %v624, 0
    %635 = vmatprep.subr.mxu0 0.0
    %636 = vmatpush1.xpose.msra.mxu0 %v152
    %637 = vmatprep.subr.mxu0 0.0
    %638 = vmatpush1.xpose.msra.mxu0 0.0
    %639 = vmatprep.subr.mxu0 0.0
    %640 = vmatpush1.xpose.msra.mxu0 0.0
    %641 = vmatprep.subr.mxu0 0.0
    %642 = vmatpush1.xpose.msra.mxu0 0.0
    %643 = vmatprep.subr.mxu0 0.0
    %644 = vmatpush1.xpose.msra.mxu0 0.0
    %645 = vmatprep.subr.mxu0 0.0
    %646 = vmatpush1.xpose.msra.mxu0 0.0
    %647 = vmatprep.subr.mxu0 0.0
    %648 = vmatpush1.xpose.msra.mxu0 0.0
    %649 = vmatprep.subr.mxu0 0.0
    %650 = vmatpush1.xpose.msra.mxu0 0.0
    %651 = vmatprep.subr.mxu0 0.0
    %652 = vmatpush1.xpose.msra.mxu0 0.0
    %653 = vmatprep.subr.mxu0 0.0
    %654 = vmatpush1.xpose.msra.mxu0 0.0
    %655 = vmatprep.subr.mxu0 0.0
    %656 = vmatpush1.xpose.msra.mxu0 0.0
    %657 = vmatprep.subr.mxu0 0.0
    %658 = vmatpush1.xpose.msra.mxu0 0.0
    %659 = vmatprep.subr.mxu0 0.0
    %660 = vmatpush1.xpose.msra.mxu0 0.0
    %661 = vmatprep.subr.mxu0 0.0
    %662 = vmatpush1.xpose.msra.mxu0 0.0
    %663 = vmatprep.subr.mxu0 0.0
    %664 = vmatpush1.xpose.msra.mxu0 0.0
    %665 = vmatprep.subr.mxu0 0.0
    %666 = vmatpush1.xpose.msra.mxu0 0.0
    %667 = vmatprep.subr.mxu0 0.0
    %668 = vmatpush1.xpose.msra.mxu0 0.0
    %669 = vmatprep.subr.mxu0 0.0
    %670 = vmatpush1.xpose.msra.mxu0 0.0
    %671 = vmatprep.subr.mxu0 0.0
    %672 = vmatpush1.xpose.msra.mxu0 0.0
    %673 = vmatprep.subr.mxu0 0.0
    %674 = vmatpush1.xpose.msra.mxu0 0.0
    %675 = vmatprep.subr.mxu0 0.0
    %676 = vmatpush1.xpose.msra.mxu0 0.0
    %677 = vmatprep.subr.mxu0 0.0
    %678 = vmatpush1.xpose.msra.mxu0 0.0
    %679 = vmatprep.subr.mxu0 0.0
    %680 = vmatpush1.xpose.msra.mxu0 0.0
    %681 = vmatprep.subr.mxu0 0.0
    %682 = vmatpush1.xpose.msra.mxu0 0.0
    %683 = vmatprep.subr.mxu0 0.0
    %684 = vmatpush1.xpose.msra.mxu0 0.0
    %685 = vmatprep.subr.mxu0 0.0
    %686 = vmatpush1.xpose.msra.mxu0 0.0
    %687 = vmatprep.subr.mxu0 0.0
    %688 = vmatpush1.xpose.msra.mxu0 0.0
    %689 = vmatprep.subr.mxu0 0.0
    %690 = vmatpush1.xpose.msra.mxu0 0.0
    %691 = vmatprep.subr.mxu0 0.0
    %692 = vmatpush1.xpose.msra.mxu0 0.0
    %693 = vmatprep.subr.mxu0 0.0
    %694 = vmatpush1.xpose.msra.mxu0 0.0
    %695 = vmatprep.subr.mxu0 0.0
    %696 = vmatpush1.xpose.msra.mxu0 0.0
    %697 = vmatprep.subr.mxu0 0.0
    %698 = vmatpush1.xpose.msra.mxu0 0.0
    %699 = vmatprep.mubr.f32.mxu0 0.0
    %700 = vmatmul.mubr.f32.gmra.mrb[0].mxu0 %v633
    %v701 = vpop.f32.mrb[0].mxu0
    %v702 = vadd.f32 0.0, %v701
    %v703 = vpop.f32.mrb[0].mxu0
    %704 = vdwg.mxu0
    %v706 = vsel %vm150, %v629, 0
    %708 = vmatprep.subr.mxu0 0.0
    %709 = vmatpush1.xpose.msra.mxu0 %v155
    %710 = vmatprep.subr.mxu0 0.0
    %711 = vmatpush1.xpose.msra.mxu0 0.0
    %712 = vmatprep.subr.mxu0 0.0
    %713 = vmatpush1.xpose.msra.mxu0 0.0
    %714 = vmatprep.subr.mxu0 0.0
    %715 = vmatpush1.xpose.msra.mxu0 0.0
    %716 = vmatprep.subr.mxu0 0.0
    %717 = vmatpush1.xpose.msra.mxu0 0.0
    %718 = vmatprep.subr.mxu0 0.0
    %719 = vmatpush1.xpose.msra.mxu0 0.0
    %720 = vmatprep.subr.mxu0 0.0
    %721 = vmatpush1.xpose.msra.mxu0 0.0
    %722 = vmatprep.subr.mxu0 0.0
    %723 = vmatpush1.xpose.msra.mxu0 0.0
    %724 = vmatprep.subr.mxu0 0.0
    %725 = vmatpush1.xpose.msra.mxu0 0.0
    %726 = vmatprep.subr.mxu0 0.0
    %727 = vmatpush1.xpose.msra.mxu0 0.0
    %728 = vmatprep.subr.mxu0 0.0
    %729 = vmatpush1.xpose.msra.mxu0 0.0
    %730 = vmatprep.subr.mxu0 0.0
    %731 = vmatpush1.xpose.msra.mxu0 0.0
    %732 = vmatprep.subr.mxu0 0.0
    %733 = vmatpush1.xpose.msra.mxu0 0.0
    %734 = vmatprep.subr.mxu0 0.0
    %735 = vmatpush1.xpose.msra.mxu0 0.0
    %736 = vmatprep.subr.mxu0 0.0
    %737 = vmatpush1.xpose.msra.mxu0 0.0
    %738 = vmatprep.subr.mxu0 0.0
    %739 = vmatpush1.xpose.msra.mxu0 0.0
    %740 = vmatprep.subr.mxu0 0.0
    %741 = vmatpush1.xpose.msra.mxu0 0.0
    %742 = vmatprep.subr.mxu0 0.0
    %743 = vmatpush1.xpose.msra.mxu0 0.0
    %744 = vmatprep.subr.mxu0 0.0
    %745 = vmatpush1.xpose.msra.mxu0 0.0
    %746 = vmatprep.subr.mxu0 0.0
    %747 = vmatpush1.xpose.msra.mxu0 0.0
    %748 = vmatprep.subr.mxu0 0.0
    %749 = vmatpush1.xpose.msra.mxu0 0.0
    %750 = vmatprep.subr.mxu0 0.0
    %751 = vmatpush1.xpose.msra.mxu0 0.0
    %752 = vmatprep.subr.mxu0 0.0
    %753 = vmatpush1.xpose.msra.mxu0 0.0
    %754 = vmatprep.subr.mxu0 0.0
    %755 = vmatpush1.xpose.msra.mxu0 0.0
    %756 = vmatprep.subr.mxu0 0.0
    %757 = vmatpush1.xpose.msra.mxu0 0.0
    %758 = vmatprep.subr.mxu0 0.0
    %759 = vmatpush1.xpose.msra.mxu0 0.0
    %760 = vmatprep.subr.mxu0 0.0
    %761 = vmatpush1.xpose.msra.mxu0 0.0
    %762 = vmatprep.subr.mxu0 0.0
    %763 = vmatpush1.xpose.msra.mxu0 0.0
    %764 = vmatprep.subr.mxu0 0.0
    %765 = vmatpush1.xpose.msra.mxu0 0.0
    %766 = vmatprep.subr.mxu0 0.0
    %767 = vmatpush1.xpose.msra.mxu0 0.0
    %768 = vmatprep.subr.mxu0 0.0
    %769 = vmatpush1.xpose.msra.mxu0 0.0
    %770 = vmatprep.subr.mxu0 0.0
    %771 = vmatpush1.xpose.msra.mxu0 0.0
    %772 = vmatprep.mubr.f32.mxu0 0.0
    %773 = vmatmul.mubr.f32.gmra.mrb[0].mxu0 %v706
    %v774 = vpop.f32.mrb[0].mxu0
    %v775 = vadd.f32 0.0, %v774
    %v776 = vpop.f32.mrb[0].mxu0
    %777 = vdwg.mxu0
    %v778 = vsel %vm378, %v702, -inf
    %779 = vmax.xlane.f32.xlu0 %v778
    %v780 = vpop.xlane.xlu0 %779
    %v781 = vsel %vm378, %v775, -inf
    %782 = vmax.xlane.f32.xlu0 %v781
    %v783 = vpop.xlane.xlu0 %782
    %v784 = vsub.f32 %v702, %v780
    %v785 = vsub.f32 %v775, %v783
    %v786 = vmul.f32 %v784, 1.442695
    %v787 = vpow.pop %v786
    %v788 = vmul.f32 %v785, 1.442695
    %v789 = vpow.pop %v788
    %v790 = vsel %vm378, %v787, 0.0
    %791 = vadd.xlane.f32.xlu0 %v790
    %v792 = vpop.xlane.xlu0 %791
    %v793 = vsel %vm378, %v789, 0.0
    %794 = vadd.xlane.f32.xlu0 %v793
    %v795 = vpop.xlane.xlu0 %794
    %v796 = vrcp.pop %v792
    %v797 = vrcp.pop %v795
    %v798 = vmul.f32 %v787, %v796
    %v799 = vmul.f32 %v789, %v797
    %v801 = vsel %vm378, %v798, 0
    %803 = vmatprep.subr.mxu0 0.0
    %804 = vmatpush1.msra.mxu0 %v128
    %805 = vmatprep.subr.mxu0 0.0
    %806 = vmatpush1.msra.mxu0 0.0
    %807 = vmatprep.subr.mxu0 0.0
    %808 = vmatpush1.msra.mxu0 0.0
    %809 = vmatprep.subr.mxu0 0.0
    %810 = vmatpush1.msra.mxu0 0.0
    %811 = vmatprep.subr.mxu0 0.0
    %812 = vmatpush1.msra.mxu0 0.0
    %813 = vmatprep.subr.mxu0 0.0
    %814 = vmatpush1.msra.mxu0 0.0
    %815 = vmatprep.subr.mxu0 0.0
    %816 = vmatpush1.msra.mxu0 0.0
    %817 = vmatprep.subr.mxu0 0.0
    %818 = vmatpush1.msra.mxu0 0.0
    %819 = vmatprep.subr.mxu0 0.0
    %820 = vmatpush1.msra.mxu0 0.0
    %821 = vmatprep.subr.mxu0 0.0
    %822 = vmatpush1.msra.mxu0 0.0
    %823 = vmatprep.subr.mxu0 0.0
    %824 = vmatpush1.msra.mxu0 0.0
    %825 = vmatprep.subr.mxu0 0.0
    %826 = vmatpush1.msra.mxu0 0.0
    %827 = vmatprep.subr.mxu0 0.0
    %828 = vmatpush1.msra.mxu0 0.0
    %829 = vmatprep.subr.mxu0 0.0
    %830 = vmatpush1.msra.mxu0 0.0
    %831 = vmatprep.subr.mxu0 0.0
    %832 = vmatpush1.msra.mxu0 0.0
    %833 = vmatprep.subr.mxu0 0.0
    %834 = vmatpush1.msra.mxu0 0.0
    %835 = vmatprep.subr.mxu0 0.0
    %836 = vmatpush1.msra.mxu0 0.0
    %837 = vmatprep.subr.mxu0 0.0
    %838 = vmatpush1.msra.mxu0 0.0
    %839 = vmatprep.subr.mxu0 0.0
    %840 = vmatpush1.msra.mxu0 0.0
    %841 = vmatprep.subr.mxu0 0.0
    %842 = vmatpush1.msra.mxu0 0.0
    %843 = vmatprep.subr.mxu0 0.0
    %844 = vmatpush1.msra.mxu0 0.0
    %845 = vmatprep.subr.mxu0 0.0
    %846 = vmatpush1.msra.mxu0 0.0
    %847 = vmatprep.subr.mxu0 0.0
    %848 = vmatpush1.msra.mxu0 0.0
    %849 = vmatprep.subr.mxu0 0.0
    %850 = vmatpush1.msra.mxu0 0.0
    %851 = vmatprep.subr.mxu0 0.0
    %852 = vmatpush1.msra.mxu0 0.0
    %853 = vmatprep.subr.mxu0 0.0
    %854 = vmatpush1.msra.mxu0 0.0
    %855 = vmatprep.subr.mxu0 0.0
    %856 = vmatpush1.msra.mxu0 0.0
    %857 = vmatprep.subr.mxu0 0.0
    %858 = vmatpush1.msra.mxu0 0.0
    %859 = vmatprep.subr.mxu0 0.0
    %860 = vmatpush1.msra.mxu0 0.0
    %861 = vmatprep.subr.mxu0 0.0
    %862 = vmatpush1.msra.mxu0 0.0
    %863 = vmatprep.subr.mxu0 0.0
    %864 = vmatpush1.msra.mxu0 0.0
    %865 = vmatprep.subr.mxu0 0.0
    %866 = vmatpush1.msra.mxu0 0.0
    %867 = vmatprep.mubr.f32.mxu0 0.0
    %868 = vmatmul.mubr.f32.gmra.mrb[0].mxu0 %v801
    %v869 = vpop.f32.mrb[0].mxu0
    %v870 = vadd.f32 0.0, %v869
    %v871 = vpop.f32.mrb[0].mxu0
    %872 = vdwg.mxu0
    %v874 = vsel %vm378, %v799, 0
    %876 = vmatprep.subr.mxu0 0.0
    %877 = vmatpush1.msra.mxu0 %v133
    %878 = vmatprep.subr.mxu0 0.0
    %879 = vmatpush1.msra.mxu0 0.0
    %880 = vmatprep.subr.mxu0 0.0
    %881 = vmatpush1.msra.mxu0 0.0
    %882 = vmatprep.subr.mxu0 0.0
    %883 = vmatpush1.msra.mxu0 0.0
    %884 = vmatprep.subr.mxu0 0.0
    %885 = vmatpush1.msra.mxu0 0.0
    %886 = vmatprep.subr.mxu0 0.0
    %887 = vmatpush1.msra.mxu0 0.0
    %888 = vmatprep.subr.mxu0 0.0
    %889 = vmatpush1.msra.mxu0 0.0
    %890 = vmatprep.subr.mxu0 0.0
    %891 = vmatpush1.msra.mxu0 0.0
    %892 = vmatprep.subr.mxu0 0.0
    %893 = vmatpush1.msra.mxu0 0.0
    %894 = vmatprep.subr.mxu0 0.0
    %895 = vmatpush1.msra.mxu0 0.0
    %896 = vmatprep.subr.mxu0 0.0
    %897 = vmatpush1.msra.mxu0 0.0
    %898 = vmatprep.subr.mxu0 0.0
    %899 = vmatpush1.msra.mxu0 0.0
    %900 = vmatprep.subr.mxu0 0.0
    %901 = vmatpush1.msra.mxu0 0.0
    %902 = vmatprep.subr.mxu0 0.0
    %903 = vmatpush1.msra.mxu0 0.0
    %904 = vmatprep.subr.mxu0 0.0
    %905 = vmatpush1.msra.mxu0 0.0
    %906 = vmatprep.subr.mxu0 0.0
    %907 = vmatpush1.msra.mxu0 0.0
    %908 = vmatprep.subr.mxu0 0.0
    %909 = vmatpush1.msra.mxu0 0.0
    %910 = vmatprep.subr.mxu0 0.0
    %911 = vmatpush1.msra.mxu0 0.0
    %912 = vmatprep.subr.mxu0 0.0
    %913 = vmatpush1.msra.mxu0 0.0
    %914 = vmatprep.subr.mxu0 0.0
    %915 = vmatpush1.msra.mxu0 0.0
    %916 = vmatprep.subr.mxu0 0.0
    %917 = vmatpush1.msra.mxu0 0.0
    %918 = vmatprep.subr.mxu0 0.0
    %919 = vmatpush1.msra.mxu0 0.0
    %920 = vmatprep.subr.mxu0 0.0
    %921 = vmatpush1.msra.mxu0 0.0
    %922 = vmatprep.subr.mxu0 0.0
    %923 = vmatpush1.msra.mxu0 0.0
    %924 = vmatprep.subr.mxu0 0.0
    %925 = vmatpush1.msra.mxu0 0.0
    %926 = vmatprep.subr.mxu0 0.0
    %927 = vmatpush1.msra.mxu0 0.0
    %928 = vmatprep.subr.mxu0 0.0
    %929 = vmatpush1.msra.mxu0 0.0
    %930 = vmatprep.subr.mxu0 0.0
    %931 = vmatpush1.msra.mxu0 0.0
    %932 = vmatprep.subr.mxu0 0.0
    %933 = vmatpush1.msra.mxu0 0.0
    %934 = vmatprep.subr.mxu0 0.0
    %935 = vmatpush1.msra.mxu0 0.0
    %936 = vmatprep.subr.mxu0 0.0
    %937 = vmatpush1.msra.mxu0 0.0
    %938 = vmatprep.subr.mxu0 0.0
    %939 = vmatpush1.msra.mxu0 0.0
    %940 = vmatprep.mubr.f32.mxu0 0.0
    %941 = vmatmul.mubr.f32.gmra.mrb[0].mxu0 %v874
    %v942 = vpop.f32.mrb[0].mxu0
    %v943 = vadd.f32 0.0, %v942
    %v944 = vpop.f32.mrb[0].mxu0
    %945 = vdwg.mxu0
    %v947 = vsel %vm150, %v870, 0
    %v950 = vsel %vm150, %v943, 0
    %952 = vmatprep.subr.mxu0 0.0
    %953 = vmatpush1.msra.mxu0 %v553
    %954 = vmatprep.subr.mxu0 0.0
    %955 = vmatpush1.msra.mxu0 %v554
    %956 = vmatprep.subr.mxu0 0.0
    %957 = vmatpush1.msra.mxu0 %v555
    %958 = vmatprep.subr.mxu0 0.0
    %959 = vmatpush1.msra.mxu0 %v556
    %960 = vmatprep.subr.mxu0 0.0
    %961 = vmatpush1.msra.mxu0 0.0
    %962 = vmatprep.subr.mxu0 0.0
    %963 = vmatpush1.msra.mxu0 0.0
    %964 = vmatprep.subr.mxu0 0.0
    %965 = vmatpush1.msra.mxu0 0.0
    %966 = vmatprep.subr.mxu0 0.0
    %967 = vmatpush1.msra.mxu0 0.0
    %968 = vmatprep.subr.mxu0 0.0
    %969 = vmatpush1.msra.mxu0 0.0
    %970 = vmatprep.subr.mxu0 0.0
    %971 = vmatpush1.msra.mxu0 0.0
    %972 = vmatprep.subr.mxu0 0.0
    %973 = vmatpush1.msra.mxu0 0.0
    %974 = vmatprep.subr.mxu0 0.0
    %975 = vmatpush1.msra.mxu0 0.0
    %976 = vmatprep.subr.mxu0 0.0
    %977 = vmatpush1.msra.mxu0 0.0
    %978 = vmatprep.subr.mxu0 0.0
    %979 = vmatpush1.msra.mxu0 0.0
    %980 = vmatprep.subr.mxu0 0.0
    %981 = vmatpush1.msra.mxu0 0.0
    %982 = vmatprep.subr.mxu0 0.0
    %983 = vmatpush1.msra.mxu0 0.0
    %984 = vmatprep.subr.mxu0 0.0
    %985 = vmatpush1.msra.mxu0 0.0
    %986 = vmatprep.subr.mxu0 0.0
    %987 = vmatpush1.msra.mxu0 0.0
    %988 = vmatprep.subr.mxu0 0.0
    %989 = vmatpush1.msra.mxu0 0.0
    %990 = vmatprep.subr.mxu0 0.0
    %991 = vmatpush1.msra.mxu0 0.0
    %992 = vmatprep.subr.mxu0 0.0
    %993 = vmatpush1.msra.mxu0 0.0
    %994 = vmatprep.subr.mxu0 0.0
    %995 = vmatpush1.msra.mxu0 0.0
    %996 = vmatprep.subr.mxu0 0.0
    %997 = vmatpush1.msra.mxu0 0.0
    %998 = vmatprep.subr.mxu0 0.0
    %999 = vmatpush1.msra.mxu0 0.0
    %1000 = vmatprep.subr.mxu0 0.0
    %1001 = vmatpush1.msra.mxu0 0.0
    %1002 = vmatprep.subr.mxu0 0.0
    %1003 = vmatpush1.msra.mxu0 0.0
    %1004 = vmatprep.subr.mxu0 0.0
    %1005 = vmatpush1.msra.mxu0 0.0
    %1006 = vmatprep.subr.mxu0 0.0
    %1007 = vmatpush1.msra.mxu0 0.0
    %1008 = vmatprep.subr.mxu0 0.0
    %1009 = vmatpush1.msra.mxu0 0.0
    %1010 = vmatprep.subr.mxu0 0.0
    %1011 = vmatpush1.msra.mxu0 0.0
    %1012 = vmatprep.subr.mxu0 0.0
    %1013 = vmatpush1.msra.mxu0 0.0
    %1014 = vmatprep.subr.mxu0 0.0
    %1015 = vmatpush1.msra.mxu0 0.0
    %1016 = vmatprep.mubr.f32.mxu0 0.0
    %1017 = vmatmul.mubr.f32.gmra.mrb[0].mxu0 %v947
    %v1018 = vpop.f32.mrb[0].mxu0
    %v1019 = vadd.f32 0.0, %v1018
    %v1020 = vpop.f32.mrb[0].mxu0
    %1021 = vmatprep.mubr.f32.mxu0 0.0
    %1022 = vmatmul.mubr.f32.gmra.mrb[0].mxu0 %v950
    %v1023 = vpop.f32.mrb[0].mxu0
    %v1024 = vadd.f32 0.0, %v1023
    %v1025 = vpop.f32.mrb[0].mxu0
    %1026 = vdwg.mxu0
    %v1028 = vsel %vm150, %v471, 0
    %v1031 = vsel %vm150, %v544, 0
    %1033 = vmatprep.subr.mxu0 0.0
    %1034 = vmatpush1.msra.mxu0 %v146
    %1035 = vmatprep.subr.mxu0 0.0
    %1036 = vmatpush1.msra.mxu0 %v147
    %1037 = vmatprep.subr.mxu0 0.0
    %1038 = vmatpush1.msra.mxu0 %v148
    %1039 = vmatprep.subr.mxu0 0.0
    %1040 = vmatpush1.msra.mxu0 %v149
    %1041 = vmatprep.subr.mxu0 0.0
    %1042 = vmatpush1.msra.mxu0 0.0
    %1043 = vmatprep.subr.mxu0 0.0
    %1044 = vmatpush1.msra.mxu0 0.0
    %1045 = vmatprep.subr.mxu0 0.0
    %1046 = vmatpush1.msra.mxu0 0.0
    %1047 = vmatprep.subr.mxu0 0.0
    %1048 = vmatpush1.msra.mxu0 0.0
    %1049 = vmatprep.subr.mxu0 0.0
    %1050 = vmatpush1.msra.mxu0 0.0
    %1051 = vmatprep.subr.mxu0 0.0
    %1052 = vmatpush1.msra.mxu0 0.0
    %1053 = vmatprep.subr.mxu0 0.0
    %1054 = vmatpush1.msra.mxu0 0.0
    %1055 = vmatprep.subr.mxu0 0.0
    %1056 = vmatpush1.msra.mxu0 0.0
    %1057 = vmatprep.subr.mxu0 0.0
    %1058 = vmatpush1.msra.mxu0 0.0
    %1059 = vmatprep.subr.mxu0 0.0
    %1060 = vmatpush1.msra.mxu0 0.0
    %1061 = vmatprep.subr.mxu0 0.0
    %1062 = vmatpush1.msra.mxu0 0.0
    %1063 = vmatprep.subr.mxu0 0.0
    %1064 = vmatpush1.msra.mxu0 0.0
    %1065 = vmatprep.subr.mxu0 0.0
    %1066 = vmatpush1.msra.mxu0 0.0
    %1067 = vmatprep.subr.mxu0 0.0
    %1068 = vmatpush1.msra.mxu0 0.0
    %1069 = vmatprep.subr.mxu0 0.0
    %1070 = vmatpush1.msra.mxu0 0.0
    %1071 = vmatprep.subr.mxu0 0.0
    %1072 = vmatpush1.msra.mxu0 0.0
    %1073 = vmatprep.subr.mxu0 0.0
    %1074 = vmatpush1.msra.mxu0 0.0
    %1075 = vmatprep.subr.mxu0 0.0
    %1076 = vmatpush1.msra.mxu0 0.0
    %1077 = vmatprep.subr.mxu0 0.0
    %1078 = vmatpush1.msra.mxu0 0.0
    %1079 = vmatprep.subr.mxu0 0.0
    %1080 = vmatpush1.msra.mxu0 0.0
    %1081 = vmatprep.subr.mxu0 0.0
    %1082 = vmatpush1.msra.mxu0 0.0
    %1083 = vmatprep.subr.mxu0 0.0
    %1084 = vmatpush1.msra.mxu0 0.0
    %1085 = vmatprep.subr.mxu0 0.0
    %1086 = vmatpush1.msra.mxu0 0.0
    %1087 = vmatprep.subr.mxu0 0.0
    %1088 = vmatpush1.msra.mxu0 0.0
    %1089 = vmatprep.subr.mxu0 0.0
    %1090 = vmatpush1.msra.mxu0 0.0
    %1091 = vmatprep.subr.mxu0 0.0
    %1092 = vmatpush1.msra.mxu0 0.0
    %1093 = vmatprep.subr.mxu0 0.0
    %1094 = vmatpush1.msra.mxu0 0.0
    %1095 = vmatprep.subr.mxu0 0.0
    %1096 = vmatpush1.msra.mxu0 0.0
    %1097 = vmatprep.mubr.f32.mxu0 0.0
    %1098 = vmatmul.mubr.f32.gmra.mrb[0].mxu0 %v1028
    %v1099 = vpop.f32.mrb[0].mxu0
    %v1100 = vadd.f32 %v1019, %v1099
    %v1101 = vpop.f32.mrb[0].mxu0
    %1102 = vmatprep.mubr.f32.mxu0 0.0
    %1103 = vmatmul.mubr.f32.gmra.mrb[0].mxu0 %v1031
    %v1104 = vpop.f32.mrb[0].mxu0
    %v1105 = vadd.f32 %v1024, %v1104
    %v1106 = vpop.f32.mrb[0].mxu0
    %1107 = vdwg.mxu0
    %s1108 = scalar_lea.vmem [#allocation2], 64
    %v1109 = vld [vmem:[%s1108] sm:$0xff]
    %v1110 = vld [vmem:[%s1108 + $0x8] sm:$0xff]
    %v1111 = vld [vmem:[%s1108 + $0x10] sm:$0xff]
    %v1112 = vld [vmem:[%s1108 + $0x18] sm:$0xff]
    %s1113 = scalar_lea.vmem [#allocation2], 192
    %v1114 = vld [vmem:[%s1113] sm:$0xff]
    %v1115 = vld [vmem:[%s1113 + $0x8] sm:$0xff]
    %v1116 = vld [vmem:[%s1113 + $0x10] sm:$0xff]
    %v1117 = vld [vmem:[%s1113 + $0x18] sm:$0xff]
    %1118 = vmatprep.subr.mxu0 0.0
    %1119 = vmatpush1.msra.mxu0 %v1109
    %1120 = vmatprep.subr.mxu0 0.0
    %1121 = vmatpush1.msra.mxu0 %v1110
    %1122 = vmatprep.subr.mxu0 0.0
    %1123 = vmatpush1.msra.mxu0 %v1111
    %1124 = vmatprep.subr.mxu0 0.0
    %1125 = vmatpush1.msra.mxu0 %v1112
    %1126 = vmatprep.subr.mxu0 0.0
    %1127 = vmatpush1.msra.mxu0 0.0
    %1128 = vmatprep.subr.mxu0 0.0
    %1129 = vmatpush1.msra.mxu0 0.0
    %1130 = vmatprep.subr.mxu0 0.0
    %1131 = vmatpush1.msra.mxu0 0.0
    %1132 = vmatprep.subr.mxu0 0.0
    %1133 = vmatpush1.msra.mxu0 0.0
    %1134 = vmatprep.subr.mxu0 0.0
    %1135 = vmatpush1.msra.mxu0 0.0
    %1136 = vmatprep.subr.mxu0 0.0
    %1137 = vmatpush1.msra.mxu0 0.0
    %1138 = vmatprep.subr.mxu0 0.0
    %1139 = vmatpush1.msra.mxu0 0.0
    %1140 = vmatprep.subr.mxu0 0.0
    %1141 = vmatpush1.msra.mxu0 0.0
    %1142 = vmatprep.subr.mxu0 0.0
    %1143 = vmatpush1.msra.mxu0 0.0
    %1144 = vmatprep.subr.mxu0 0.0
    %1145 = vmatpush1.msra.mxu0 0.0
    %1146 = vmatprep.subr.mxu0 0.0
    %1147 = vmatpush1.msra.mxu0 0.0
    %1148 = vmatprep.subr.mxu0 0.0
    %1149 = vmatpush1.msra.mxu0 0.0
    %1150 = vmatprep.subr.mxu0 0.0
    %1151 = vmatpush1.msra.mxu0 0.0
    %1152 = vmatprep.subr.mxu0 0.0
    %1153 = vmatpush1.msra.mxu0 0.0
    %1154 = vmatprep.subr.mxu0 0.0
    %1155 = vmatpush1.msra.mxu0 0.0
    %1156 = vmatprep.subr.mxu0 0.0
    %1157 = vmatpush1.msra.mxu0 0.0
    %1158 = vmatprep.subr.mxu0 0.0
    %1159 = vmatpush1.msra.mxu0 0.0
    %1160 = vmatprep.subr.mxu0 0.0
    %1161 = vmatpush1.msra.mxu0 0.0
    %1162 = vmatprep.subr.mxu0 0.0
    %1163 = vmatpush1.msra.mxu0 0.0
    %1164 = vmatprep.subr.mxu0 0.0
    %1165 = vmatpush1.msra.mxu0 0.0
    %1166 = vmatprep.subr.mxu0 0.0
    %1167 = vmatpush1.msra.mxu0 0.0
    %1168 = vmatprep.subr.mxu0 0.0
    %1169 = vmatpush1.msra.mxu0 0.0
    %1170 = vmatprep.subr.mxu0 0.0
    %1171 = vmatpush1.msra.mxu0 0.0
    %1172 = vmatprep.subr.mxu0 0.0
    %1173 = vmatpush1.msra.mxu0 0.0
    %1174 = vmatprep.subr.mxu0 0.0
    %1175 = vmatpush1.msra.mxu0 0.0
    %1176 = vmatprep.subr.mxu0 0.0
    %1177 = vmatpush1.msra.mxu0 0.0
    %1178 = vmatprep.subr.mxu0 0.0
    %1179 = vmatpush1.msra.mxu0 0.0
    %1180 = vmatprep.subr.mxu0 0.0
    %1181 = vmatpush1.msra.mxu0 0.0
    %1182 = vmatprep.mubr.f32.mxu0 0.0
    %1183 = vmatmul.mubr.f32.gmra.mrb[0].mxu0 %v152
    %v1184 = vpop.f32.mrb[0].mxu0
    %v1185 = vadd.f32 0.0, %v1184
    %v1186 = vpop.f32.mrb[0].mxu0
    %1187 = vmatprep.mubr.f32.mxu0 0.0
    %1188 = vmatmul.mubr.f32.gmra.mrb[0].mxu0 %v155
    %v1189 = vpop.f32.mrb[0].mxu0
    %v1190 = vadd.f32 0.0, %v1189
    %v1191 = vpop.f32.mrb[0].mxu0
    %1192 = vdwg.mxu0
    %v1194 = vsel %vm150, %v1185, 0
    %1196 = vmatprep.subr.mxu0 0.0
    %1197 = vmatpush1.xpose.msra.mxu0 %v152
    %1198 = vmatprep.subr.mxu0 0.0
    %1199 = vmatpush1.xpose.msra.mxu0 0.0
    %1200 = vmatprep.subr.mxu0 0.0
    %1201 = vmatpush1.xpose.msra.mxu0 0.0
    %1202 = vmatprep.subr.mxu0 0.0
    %1203 = vmatpush1.xpose.msra.mxu0 0.0
    %1204 = vmatprep.subr.mxu0 0.0
    %1205 = vmatpush1.xpose.msra.mxu0 0.0
    %1206 = vmatprep.subr.mxu0 0.0
    %1207 = vmatpush1.xpose.msra.mxu0 0.0
    %1208 = vmatprep.subr.mxu0 0.0
    %1209 = vmatpush1.xpose.msra.mxu0 0.0
    %1210 = vmatprep.subr.mxu0 0.0
    %1211 = vmatpush1.xpose.msra.mxu0 0.0
    %1212 = vmatprep.subr.mxu0 0.0
    %1213 = vmatpush1.xpose.msra.mxu0 0.0
    %1214 = vmatprep.subr.mxu0 0.0
    %1215 = vmatpush1.xpose.msra.mxu0 0.0
    %1216 = vmatprep.subr.mxu0 0.0
    %1217 = vmatpush1.xpose.msra.mxu0 0.0
    %1218 = vmatprep.subr.mxu0 0.0
    %1219 = vmatpush1.xpose.msra.mxu0 0.0
    %1220 = vmatprep.subr.mxu0 0.0
    %1221 = vmatpush1.xpose.msra.mxu0 0.0
    %1222 = vmatprep.subr.mxu0 0.0
    %1223 = vmatpush1.xpose.msra.mxu0 0.0
    %1224 = vmatprep.subr.mxu0 0.0
    %1225 = vmatpush1.xpose.msra.mxu0 0.0
    %1226 = vmatprep.subr.mxu0 0.0
    %1227 = vmatpush1.xpose.msra.mxu0 0.0
    %1228 = vmatprep.subr.mxu0 0.0
    %1229 = vmatpush1.xpose.msra.mxu0 0.0
    %1230 = vmatprep.subr.mxu0 0.0
    %1231 = vmatpush1.xpose.msra.mxu0 0.0
    %1232 = vmatprep.subr.mxu0 0.0
    %1233 = vmatpush1.xpose.msra.mxu0 0.0
    %1234 = vmatprep.subr.mxu0 0.0
    %1235 = vmatpush1.xpose.msra.mxu0 0.0
    %1236 = vmatprep.subr.mxu0 0.0
    %1237 = vmatpush1.xpose.msra.mxu0 0.0
    %1238 = vmatprep.subr.mxu0 0.0
    %1239 = vmatpush1.xpose.msra.mxu0 0.0
    %1240 = vmatprep.subr.mxu0 0.0
    %1241 = vmatpush1.xpose.msra.mxu0 0.0
    %1242 = vmatprep.subr.mxu0 0.0
    %1243 = vmatpush1.xpose.msra.mxu0 0.0
    %1244 = vmatprep.subr.mxu0 0.0
    %1245 = vmatpush1.xpose.msra.mxu0 0.0
    %1246 = vmatprep.subr.mxu0 0.0
    %1247 = vmatpush1.xpose.msra.mxu0 0.0
    %1248 = vmatprep.subr.mxu0 0.0
    %1249 = vmatpush1.xpose.msra.mxu0 0.0
    %1250 = vmatprep.subr.mxu0 0.0
    %1251 = vmatpush1.xpose.msra.mxu0 0.0
    %1252 = vmatprep.subr.mxu0 0.0
    %1253 = vmatpush1.xpose.msra.mxu0 0.0
    %1254 = vmatprep.subr.mxu0 0.0
    %1255 = vmatpush1.xpose.msra.mxu0 0.0
    %1256 = vmatprep.subr.mxu0 0.0
    %1257 = vmatpush1.xpose.msra.mxu0 0.0
    %1258 = vmatprep.subr.mxu0 0.0
    %1259 = vmatpush1.xpose.msra.mxu0 0.0
    %1260 = vmatprep.mubr.f32.mxu0 0.0
    %1261 = vmatmul.mubr.f32.gmra.mrb[0].mxu0 %v1194
    %v1262 = vpop.f32.mrb[0].mxu0
    %v1263 = vadd.f32 0.0, %v1262
    %v1264 = vpop.f32.mrb[0].mxu0
    %1265 = vdwg.mxu0
    %v1267 = vsel %vm150, %v1190, 0
    %1269 = vmatprep.subr.mxu0 0.0
    %1270 = vmatpush1.xpose.msra.mxu0 %v155
    %1271 = vmatprep.subr.mxu0 0.0
    %1272 = vmatpush1.xpose.msra.mxu0 0.0
    %1273 = vmatprep.subr.mxu0 0.0
    %1274 = vmatpush1.xpose.msra.mxu0 0.0
    %1275 = vmatprep.subr.mxu0 0.0
    %1276 = vmatpush1.xpose.msra.mxu0 0.0
    %1277 = vmatprep.subr.mxu0 0.0
    %1278 = vmatpush1.xpose.msra.mxu0 0.0
    %1279 = vmatprep.subr.mxu0 0.0
    %1280 = vmatpush1.xpose.msra.mxu0 0.0
    %1281 = vmatprep.subr.mxu0 0.0
    %1282 = vmatpush1.xpose.msra.mxu0 0.0
    %1283 = vmatprep.subr.mxu0 0.0
    %1284 = vmatpush1.xpose.msra.mxu0 0.0
    %1285 = vmatprep.subr.mxu0 0.0
    %1286 = vmatpush1.xpose.msra.mxu0 0.0
    %1287 = vmatprep.subr.mxu0 0.0
    %1288 = vmatpush1.xpose.msra.mxu0 0.0
    %1289 = vmatprep.subr.mxu0 0.0
    %1290 = vmatpush1.xpose.msra.mxu0 0.0
    %1291 = vmatprep.subr.mxu0 0.0
    %1292 = vmatpush1.xpose.msra.mxu0 0.0
    %1293 = vmatprep.subr.mxu0 0.0
    %1294 = vmatpush1.xpose.msra.mxu0 0.0
    %1295 = vmatprep.subr.mxu0 0.0
    %1296 = vmatpush1.xpose.msra.mxu0 0.0
    %1297 = vmatprep.subr.mxu0 0.0
    %1298 = vmatpush1.xpose.msra.mxu0 0.0
    %1299 = vmatprep.subr.mxu0 0.0
    %1300 = vmatpush1.xpose.msra.mxu0 0.0
    %1301 = vmatprep.subr.mxu0 0.0
    %1302 = vmatpush1.xpose.msra.mxu0 0.0
    %1303 = vmatprep.subr.mxu0 0.0
    %1304 = vmatpush1.xpose.msra.mxu0 0.0
    %1305 = vmatprep.subr.mxu0 0.0
    %1306 = vmatpush1.xpose.msra.mxu0 0.0
    %1307 = vmatprep.subr.mxu0 0.0
    %1308 = vmatpush1.xpose.msra.mxu0 0.0
    %1309 = vmatprep.subr.mxu0 0.0
    %1310 = vmatpush1.xpose.msra.mxu0 0.0
    %1311 = vmatprep.subr.mxu0 0.0
    %1312 = vmatpush1.xpose.msra.mxu0 0.0
    %1313 = vmatprep.subr.mxu0 0.0
    %1314 = vmatpush1.xpose.msra.mxu0 0.0
    %1315 = vmatprep.subr.mxu0 0.0
    %1316 = vmatpush1.xpose.msra.mxu0 0.0
    %1317 = vmatprep.subr.mxu0 0.0
    %1318 = vmatpush1.xpose.msra.mxu0 0.0
    %1319 = vmatprep.subr.mxu0 0.0
    %1320 = vmatpush1.xpose.msra.mxu0 0.0
    %1321 = vmatprep.subr.mxu0 0.0
    %1322 = vmatpush1.xpose.msra.mxu0 0.0
    %1323 = vmatprep.subr.mxu0 0.0
    %1324 = vmatpush1.xpose.msra.mxu0 0.0
    %1325 = vmatprep.subr.mxu0 0.0
    %1326 = vmatpush1.xpose.msra.mxu0 0.0
    %1327 = vmatprep.subr.mxu0 0.0
    %1328 = vmatpush1.xpose.msra.mxu0 0.0
    %1329 = vmatprep.subr.mxu0 0.0
    %1330 = vmatpush1.xpose.msra.mxu0 0.0
    %1331 = vmatprep.subr.mxu0 0.0
    %1332 = vmatpush1.xpose.msra.mxu0 0.0
    %1333 = vmatprep.mubr.f32.mxu0 0.0
    %1334 = vmatmul.mubr.f32.gmra.mrb[0].mxu0 %v1267
    %v1335 = vpop.f32.mrb[0].mxu0
    %v1336 = vadd.f32 0.0, %v1335
    %v1337 = vpop.f32.mrb[0].mxu0
    %1338 = vdwg.mxu0
    %v1339 = vsel %vm378, %v1263, -inf
    %1340 = vmax.xlane.f32.xlu0 %v1339
    %v1341 = vpop.xlane.xlu0 %1340
    %v1342 = vsel %vm378, %v1336, -inf
    %1343 = vmax.xlane.f32.xlu0 %v1342
    %v1344 = vpop.xlane.xlu0 %1343
    %v1345 = vsub.f32 %v1263, %v1341
    %v1346 = vsub.f32 %v1336, %v1344
    %v1347 = vmul.f32 %v1345, 1.442695
    %v1348 = vpow.pop %v1347
    %v1349 = vmul.f32 %v1346, 1.442695
    %v1350 = vpow.pop %v1349
    %v1351 = vsel %vm378, %v1348, 0.0
    %1352 = vadd.xlane.f32.xlu0 %v1351
    %v1353 = vpop.xlane.xlu0 %1352
    %v1354 = vsel %vm378, %v1350, 0.0
    %1355 = vadd.xlane.f32.xlu0 %v1354
    %v1356 = vpop.xlane.xlu0 %1355
    %v1357 = vrcp.pop %v1353
    %v1358 = vrcp.pop %v1356
    %v1359 = vmul.f32 %v1348, %v1357
    %v1360 = vmul.f32 %v1350, %v1358
    %v1362 = vsel %vm378, %v1359, 0
    %1364 = vmatprep.subr.mxu0 0.0
    %1365 = vmatpush1.msra.mxu0 %v128
    %1366 = vmatprep.subr.mxu0 0.0
    %1367 = vmatpush1.msra.mxu0 0.0
    %1368 = vmatprep.subr.mxu0 0.0
    %1369 = vmatpush1.msra.mxu0 0.0
    %1370 = vmatprep.subr.mxu0 0.0
    %1371 = vmatpush1.msra.mxu0 0.0
    %1372 = vmatprep.subr.mxu0 0.0
    %1373 = vmatpush1.msra.mxu0 0.0
    %1374 = vmatprep.subr.mxu0 0.0
    %1375 = vmatpush1.msra.mxu0 0.0
    %1376 = vmatprep.subr.mxu0 0.0
    %1377 = vmatpush1.msra.mxu0 0.0
    %1378 = vmatprep.subr.mxu0 0.0
    %1379 = vmatpush1.msra.mxu0 0.0
    %1380 = vmatprep.subr.mxu0 0.0
    %1381 = vmatpush1.msra.mxu0 0.0
    %1382 = vmatprep.subr.mxu0 0.0
    %1383 = vmatpush1.msra.mxu0 0.0
    %1384 = vmatprep.subr.mxu0 0.0
    %1385 = vmatpush1.msra.mxu0 0.0
    %1386 = vmatprep.subr.mxu0 0.0
    %1387 = vmatpush1.msra.mxu0 0.0
    %1388 = vmatprep.subr.mxu0 0.0
    %1389 = vmatpush1.msra.mxu0 0.0
    %1390 = vmatprep.subr.mxu0 0.0
    %1391 = vmatpush1.msra.mxu0 0.0
    %1392 = vmatprep.subr.mxu0 0.0
    %1393 = vmatpush1.msra.mxu0 0.0
    %1394 = vmatprep.subr.mxu0 0.0
    %1395 = vmatpush1.msra.mxu0 0.0
    %1396 = vmatprep.subr.mxu0 0.0
    %1397 = vmatpush1.msra.mxu0 0.0
    %1398 = vmatprep.subr.mxu0 0.0
    %1399 = vmatpush1.msra.mxu0 0.0
    %1400 = vmatprep.subr.mxu0 0.0
    %1401 = vmatpush1.msra.mxu0 0.0
    %1402 = vmatprep.subr.mxu0 0.0
    %1403 = vmatpush1.msra.mxu0 0.0
    %1404 = vmatprep.subr.mxu0 0.0
    %1405 = vmatpush1.msra.mxu0 0.0
    %1406 = vmatprep.subr.mxu0 0.0
    %1407 = vmatpush1.msra.mxu0 0.0
    %1408 = vmatprep.subr.mxu0 0.0
    %1409 = vmatpush1.msra.mxu0 0.0
    %1410 = vmatprep.subr.mxu0 0.0
    %1411 = vmatpush1.msra.mxu0 0.0
    %1412 = vmatprep.subr.mxu0 0.0
    %1413 = vmatpush1.msra.mxu0 0.0
    %1414 = vmatprep.subr.mxu0 0.0
    %1415 = vmatpush1.msra.mxu0 0.0
    %1416 = vmatprep.subr.mxu0 0.0
    %1417 = vmatpush1.msra.mxu0 0.0
    %1418 = vmatprep.subr.mxu0 0.0
    %1419 = vmatpush1.msra.mxu0 0.0
    %1420 = vmatprep.subr.mxu0 0.0
    %1421 = vmatpush1.msra.mxu0 0.0
    %1422 = vmatprep.subr.mxu0 0.0
    %1423 = vmatpush1.msra.mxu0 0.0
    %1424 = vmatprep.subr.mxu0 0.0
    %1425 = vmatpush1.msra.mxu0 0.0
    %1426 = vmatprep.subr.mxu0 0.0
    %1427 = vmatpush1.msra.mxu0 0.0
    %1428 = vmatprep.mubr.f32.mxu0 0.0
    %1429 = vmatmul.mubr.f32.gmra.mrb[0].mxu0 %v1362
    %v1430 = vpop.f32.mrb[0].mxu0
    %v1431 = vadd.f32 0.0, %v1430
    %v1432 = vpop.f32.mrb[0].mxu0
    %1433 = vdwg.mxu0
    %v1435 = vsel %vm378, %v1360, 0
    %1437 = vmatprep.subr.mxu0 0.0
    %1438 = vmatpush1.msra.mxu0 %v133
    %1439 = vmatprep.subr.mxu0 0.0
    %1440 = vmatpush1.msra.mxu0 0.0
    %1441 = vmatprep.subr.mxu0 0.0
    %1442 = vmatpush1.msra.mxu0 0.0
    %1443 = vmatprep.subr.mxu0 0.0
    %1444 = vmatpush1.msra.mxu0 0.0
    %1445 = vmatprep.subr.mxu0 0.0
    %1446 = vmatpush1.msra.mxu0 0.0
    %1447 = vmatprep.subr.mxu0 0.0
    %1448 = vmatpush1.msra.mxu0 0.0
    %1449 = vmatprep.subr.mxu0 0.0
    %1450 = vmatpush1.msra.mxu0 0.0
    %1451 = vmatprep.subr.mxu0 0.0
    %1452 = vmatpush1.msra.mxu0 0.0
    %1453 = vmatprep.subr.mxu0 0.0
    %1454 = vmatpush1.msra.mxu0 0.0
    %1455 = vmatprep.subr.mxu0 0.0
    %1456 = vmatpush1.msra.mxu0 0.0
    %1457 = vmatprep.subr.mxu0 0.0
    %1458 = vmatpush1.msra.mxu0 0.0
    %1459 = vmatprep.subr.mxu0 0.0
    %1460 = vmatpush1.msra.mxu0 0.0
    %1461 = vmatprep.subr.mxu0 0.0
    %1462 = vmatpush1.msra.mxu0 0.0
    %1463 = vmatprep.subr.mxu0 0.0
    %1464 = vmatpush1.msra.mxu0 0.0
    %1465 = vmatprep.subr.mxu0 0.0
    %1466 = vmatpush1.msra.mxu0 0.0
    %1467 = vmatprep.subr.mxu0 0.0
    %1468 = vmatpush1.msra.mxu0 0.0
    %1469 = vmatprep.subr.mxu0 0.0
    %1470 = vmatpush1.msra.mxu0 0.0
    %1471 = vmatprep.subr.mxu0 0.0
    %1472 = vmatpush1.msra.mxu0 0.0
    %1473 = vmatprep.subr.mxu0 0.0
    %1474 = vmatpush1.msra.mxu0 0.0
    %1475 = vmatprep.subr.mxu0 0.0
    %1476 = vmatpush1.msra.mxu0 0.0
    %1477 = vmatprep.subr.mxu0 0.0
    %1478 = vmatpush1.msra.mxu0 0.0
    %1479 = vmatprep.subr.mxu0 0.0
    %1480 = vmatpush1.msra.mxu0 0.0
    %1481 = vmatprep.subr.mxu0 0.0
    %1482 = vmatpush1.msra.mxu0 0.0
    %1483 = vmatprep.subr.mxu0 0.0
    %1484 = vmatpush1.msra.mxu0 0.0
    %1485 = vmatprep.subr.mxu0 0.0
    %1486 = vmatpush1.msra.mxu0 0.0
    %1487 = vmatprep.subr.mxu0 0.0
    %1488 = vmatpush1.msra.mxu0 0.0
    %1489 = vmatprep.subr.mxu0 0.0
    %1490 = vmatpush1.msra.mxu0 0.0
    %1491 = vmatprep.subr.mxu0 0.0
    %1492 = vmatpush1.msra.mxu0 0.0
    %1493 = vmatprep.subr.mxu0 0.0
    %1494 = vmatpush1.msra.mxu0 0.0
    %1495 = vmatprep.subr.mxu0 0.0
    %1496 = vmatpush1.msra.mxu0 0.0
    %1497 = vmatprep.subr.mxu0 0.0
    %1498 = vmatpush1.msra.mxu0 0.0
    %1499 = vmatprep.subr.mxu0 0.0
    %1500 = vmatpush1.msra.mxu0 0.0
    %1501 = vmatprep.mubr.f32.mxu0 0.0
    %1502 = vmatmul.mubr.f32.gmra.mrb[0].mxu0 %v1435
    %v1503 = vpop.f32.mrb[0].mxu0
    %v1504 = vadd.f32 0.0, %v1503
    %v1505 = vpop.f32.mrb[0].mxu0
    %1506 = vdwg.mxu0
    %v1508 = vsel %vm150, %v1431, 0
    %v1511 = vsel %vm150, %v1504, 0
    %1513 = vmatprep.subr.mxu0 0.0
    %1514 = vmatpush1.msra.mxu0 %v1114
    %1515 = vmatprep.subr.mxu0 0.0
    %1516 = vmatpush1.msra.mxu0 %v1115
    %1517 = vmatprep.subr.mxu0 0.0
    %1518 = vmatpush1.msra.mxu0 %v1116
    %1519 = vmatprep.subr.mxu0 0.0
    %1520 = vmatpush1.msra.mxu0 %v1117
    %1521 = vmatprep.subr.mxu0 0.0
    %1522 = vmatpush1.msra.mxu0 0.0
    %1523 = vmatprep.subr.mxu0 0.0
    %1524 = vmatpush1.msra.mxu0 0.0
    %1525 = vmatprep.subr.mxu0 0.0
    %1526 = vmatpush1.msra.mxu0 0.0
    %1527 = vmatprep.subr.mxu0 0.0
    %1528 = vmatpush1.msra.mxu0 0.0
    %1529 = vmatprep.subr.mxu0 0.0
    %1530 = vmatpush1.msra.mxu0 0.0
    %1531 = vmatprep.subr.mxu0 0.0
    %1532 = vmatpush1.msra.mxu0 0.0
    %1533 = vmatprep.subr.mxu0 0.0
    %1534 = vmatpush1.msra.mxu0 0.0
    %1535 = vmatprep.subr.mxu0 0.0
    %1536 = vmatpush1.msra.mxu0 0.0
    %1537 = vmatprep.subr.mxu0 0.0
    %1538 = vmatpush1.msra.mxu0 0.0
    %1539 = vmatprep.subr.mxu0 0.0
    %1540 = vmatpush1.msra.mxu0 0.0
    %1541 = vmatprep.subr.mxu0 0.0
    %1542 = vmatpush1.msra.mxu0 0.0
    %1543 = vmatprep.subr.mxu0 0.0
    %1544 = vmatpush1.msra.mxu0 0.0
    %1545 = vmatprep.subr.mxu0 0.0
    %1546 = vmatpush1.msra.mxu0 0.0
    %1547 = vmatprep.subr.mxu0 0.0
    %1548 = vmatpush1.msra.mxu0 0.0
    %1549 = vmatprep.subr.mxu0 0.0
    %1550 = vmatpush1.msra.mxu0 0.0
    %1551 = vmatprep.subr.mxu0 0.0
    %1552 = vmatpush1.msra.mxu0 0.0
    %1553 = vmatprep.subr.mxu0 0.0
    %1554 = vmatpush1.msra.mxu0 0.0
    %1555 = vmatprep.subr.mxu0 0.0
    %1556 = vmatpush1.msra.mxu0 0.0
    %1557 = vmatprep.subr.mxu0 0.0
    %1558 = vmatpush1.msra.mxu0 0.0
    %1559 = vmatprep.subr.mxu0 0.0
    %1560 = vmatpush1.msra.mxu0 0.0
    %1561 = vmatprep.subr.mxu0 0.0
    %1562 = vmatpush1.msra.mxu0 0.0
    %1563 = vmatprep.subr.mxu0 0.0
    %1564 = vmatpush1.msra.mxu0 0.0
    %1565 = vmatprep.subr.mxu0 0.0
    %1566 = vmatpush1.msra.mxu0 0.0
    %1567 = vmatprep.subr.mxu0 0.0
    %1568 = vmatpush1.msra.mxu0 0.0
    %1569 = vmatprep.subr.mxu0 0.0
    %1570 = vmatpush1.msra.mxu0 0.0
    %1571 = vmatprep.subr.mxu0 0.0
    %1572 = vmatpush1.msra.mxu0 0.0
    %1573 = vmatprep.subr.mxu0 0.0
    %1574 = vmatpush1.msra.mxu0 0.0
    %1575 = vmatprep.subr.mxu0 0.0
    %1576 = vmatpush1.msra.mxu0 0.0
    %1577 = vmatprep.mubr.f32.mxu0 0.0
    %1578 = vmatmul.mubr.f32.gmra.mrb[0].mxu0 %v1508
    %v1579 = vpop.f32.mrb[0].mxu0
    %v1580 = vadd.f32 0.0, %v1579
    %v1581 = vpop.f32.mrb[0].mxu0
    %1582 = vmatprep.mubr.f32.mxu0 0.0
    %1583 = vmatmul.mubr.f32.gmra.mrb[0].mxu0 %v1511
    %v1584 = vpop.f32.mrb[0].mxu0
    %v1585 = vadd.f32 0.0, %v1584
    %v1586 = vpop.f32.mrb[0].mxu0
    %1587 = vdwg.mxu0
    %v1588 = vadd.f32 %v1100, %v1580
    %v1589 = vadd.f32 %v1105, %v1585
    %s1590 = scalar_lea.vmem [#allocation2], 96
    %v1591 = vld [vmem:[%s1590] sm:$0xff]
    %v1592 = vld [vmem:[%s1590 + $0x8] sm:$0xff]
    %v1593 = vld [vmem:[%s1590 + $0x10] sm:$0xff]
    %v1594 = vld [vmem:[%s1590 + $0x18] sm:$0xff]
    %s1595 = scalar_lea.vmem [#allocation2], 224
    %v1596 = vld [vmem:[%s1595] sm:$0xff]
    %v1597 = vld [vmem:[%s1595 + $0x8] sm:$0xff]
    %v1598 = vld [vmem:[%s1595 + $0x10] sm:$0xff]
    %v1599 = vld [vmem:[%s1595 + $0x18] sm:$0xff]
    %1600 = vmatprep.subr.mxu0 0.0
    %1601 = vmatpush1.msra.mxu0 %v1591
    %1602 = vmatprep.subr.mxu0 0.0
    %1603 = vmatpush1.msra.mxu0 %v1592
    %1604 = vmatprep.subr.mxu0 0.0
    %1605 = vmatpush1.msra.mxu0 %v1593
    %1606 = vmatprep.subr.mxu0 0.0
    %1607 = vmatpush1.msra.mxu0 %v1594
    %1608 = vmatprep.subr.mxu0 0.0
    %1609 = vmatpush1.msra.mxu0 0.0
    %1610 = vmatprep.subr.mxu0 0.0
    %1611 = vmatpush1.msra.mxu0 0.0
    %1612 = vmatprep.subr.mxu0 0.0
    %1613 = vmatpush1.msra.mxu0 0.0
    %1614 = vmatprep.subr.mxu0 0.0
    %1615 = vmatpush1.msra.mxu0 0.0
    %1616 = vmatprep.subr.mxu0 0.0
    %1617 = vmatpush1.msra.mxu0 0.0
    %1618 = vmatprep.subr.mxu0 0.0
    %1619 = vmatpush1.msra.mxu0 0.0
    %1620 = vmatprep.subr.mxu0 0.0
    %1621 = vmatpush1.msra.mxu0 0.0
    %1622 = vmatprep.subr.mxu0 0.0
    %1623 = vmatpush1.msra.mxu0 0.0
    %1624 = vmatprep.subr.mxu0 0.0
    %1625 = vmatpush1.msra.mxu0 0.0
    %1626 = vmatprep.subr.mxu0 0.0
    %1627 = vmatpush1.msra.mxu0 0.0
    %1628 = vmatprep.subr.mxu0 0.0
    %1629 = vmatpush1.msra.mxu0 0.0
    %1630 = vmatprep.subr.mxu0 0.0
    %1631 = vmatpush1.msra.mxu0 0.0
    %1632 = vmatprep.subr.mxu0 0.0
    %1633 = vmatpush1.msra.mxu0 0.0
    %1634 = vmatprep.subr.mxu0 0.0
    %1635 = vmatpush1.msra.mxu0 0.0
    %1636 = vmatprep.subr.mxu0 0.0
    %1637 = vmatpush1.msra.mxu0 0.0
    %1638 = vmatprep.subr.mxu0 0.0
    %1639 = vmatpush1.msra.mxu0 0.0
    %1640 = vmatprep.subr.mxu0 0.0
    %1641 = vmatpush1.msra.mxu0 0.0
    %1642 = vmatprep.subr.mxu0 0.0
    %1643 = vmatpush1.msra.mxu0 0.0
    %1644 = vmatprep.subr.mxu0 0.0
    %1645 = vmatpush1.msra.mxu0 0.0
    %1646 = vmatprep.subr.mxu0 0.0
    %1647 = vmatpush1.msra.mxu0 0.0
    %1648 = vmatprep.subr.mxu0 0.0
    %1649 = vmatpush1.msra.mxu0 0.0
    %1650 = vmatprep.subr.mxu0 0.0
    %1651 = vmatpush1.msra.mxu0 0.0
    %1652 = vmatprep.subr.mxu0 0.0
    %1653 = vmatpush1.msra.mxu0 0.0
    %1654 = vmatprep.subr.mxu0 0.0
    %1655 = vmatpush1.msra.mxu0 0.0
    %1656 = vmatprep.subr.mxu0 0.0
    %1657 = vmatpush1.msra.mxu0 0.0
    %1658 = vmatprep.subr.mxu0 0.0
    %1659 = vmatpush1.msra.mxu0 0.0
    %1660 = vmatprep.subr.mxu0 0.0
    %1661 = vmatpush1.msra.mxu0 0.0
    %1662 = vmatprep.subr.mxu0 0.0
    %1663 = vmatpush1.msra.mxu0 0.0
    %1664 = vmatprep.mubr.f32.mxu0 0.0
    %1665 = vmatmul.mubr.f32.gmra.mrb[0].mxu0 %v152
    %v1666 = vpop.f32.mrb[0].mxu0
    %v1667 = vadd.f32 0.0, %v1666
    %v1668 = vpop.f32.mrb[0].mxu0
    %1669 = vmatprep.mubr.f32.mxu0 0.0
    %1670 = vmatmul.mubr.f32.gmra.mrb[0].mxu0 %v155
    %v1671 = vpop.f32.mrb[0].mxu0
    %v1672 = vadd.f32 0.0, %v1671
    %v1673 = vpop.f32.mrb[0].mxu0
    %1674 = vdwg.mxu0
    %v1676 = vsel %vm150, %v1667, 0
    %1678 = vmatprep.subr.mxu0 0.0
    %1679 = vmatpush1.xpose.msra.mxu0 %v152
    %1680 = vmatprep.subr.mxu0 0.0
    %1681 = vmatpush1.xpose.msra.mxu0 0.0
    %1682 = vmatprep.subr.mxu0 0.0
    %1683 = vmatpush1.xpose.msra.mxu0 0.0
    %1684 = vmatprep.subr.mxu0 0.0
    %1685 = vmatpush1.xpose.msra.mxu0 0.0
    %1686 = vmatprep.subr.mxu0 0.0
    %1687 = vmatpush1.xpose.msra.mxu0 0.0
    %1688 = vmatprep.subr.mxu0 0.0
    %1689 = vmatpush1.xpose.msra.mxu0 0.0
    %1690 = vmatprep.subr.mxu0 0.0
    %1691 = vmatpush1.xpose.msra.mxu0 0.0
    %1692 = vmatprep.subr.mxu0 0.0
    %1693 = vmatpush1.xpose.msra.mxu0 0.0
    %1694 = vmatprep.subr.mxu0 0.0
    %1695 = vmatpush1.xpose.msra.mxu0 0.0
    %1696 = vmatprep.subr.mxu0 0.0
    %1697 = vmatpush1.xpose.msra.mxu0 0.0
    %1698 = vmatprep.subr.mxu0 0.0
    %1699 = vmatpush1.xpose.msra.mxu0 0.0
    %1700 = vmatprep.subr.mxu0 0.0
    %1701 = vmatpush1.xpose.msra.mxu0 0.0
    %1702 = vmatprep.subr.mxu0 0.0
    %1703 = vmatpush1.xpose.msra.mxu0 0.0
    %1704 = vmatprep.subr.mxu0 0.0
    %1705 = vmatpush1.xpose.msra.mxu0 0.0
    %1706 = vmatprep.subr.mxu0 0.0
    %1707 = vmatpush1.xpose.msra.mxu0 0.0
    %1708 = vmatprep.subr.mxu0 0.0
    %1709 = vmatpush1.xpose.msra.mxu0 0.0
    %1710 = vmatprep.subr.mxu0 0.0
    %1711 = vmatpush1.xpose.msra.mxu0 0.0
    %1712 = vmatprep.subr.mxu0 0.0
    %1713 = vmatpush1.xpose.msra.mxu0 0.0
    %1714 = vmatprep.subr.mxu0 0.0
    %1715 = vmatpush1.xpose.msra.mxu0 0.0
    %1716 = vmatprep.subr.mxu0 0.0
    %1717 = vmatpush1.xpose.msra.mxu0 0.0
    %1718 = vmatprep.subr.mxu0 0.0
    %1719 = vmatpush1.xpose.msra.mxu0 0.0
    %1720 = vmatprep.subr.mxu0 0.0
    %1721 = vmatpush1.xpose.msra.mxu0 0.0
    %1722 = vmatprep.subr.mxu0 0.0
    %1723 = vmatpush1.xpose.msra.mxu0 0.0
    %1724 = vmatprep.subr.mxu0 0.0
    %1725 = vmatpush1.xpose.msra.mxu0 0.0
    %1726 = vmatprep.subr.mxu0 0.0
    %1727 = vmatpush1.xpose.msra.mxu0 0.0
    %1728 = vmatprep.subr.mxu0 0.0
    %1729 = vmatpush1.xpose.msra.mxu0 0.0
    %1730 = vmatprep.subr.mxu0 0.0
    %1731 = vmatpush1.xpose.msra.mxu0 0.0
    %1732 = vmatprep.subr.mxu0 0.0
    %1733 = vmatpush1.xpose.msra.mxu0 0.0
    %1734 = vmatprep.subr.mxu0 0.0
    %1735 = vmatpush1.xpose.msra.mxu0 0.0
    %1736 = vmatprep.subr.mxu0 0.0
    %1737 = vmatpush1.xpose.msra.mxu0 0.0
    %1738 = vmatprep.subr.mxu0 0.0
    %1739 = vmatpush1.xpose.msra.mxu0 0.0
    %1740 = vmatprep.subr.mxu0 0.0
    %1741 = vmatpush1.xpose.msra.mxu0 0.0
    %1742 = vmatprep.mubr.f32.mxu0 0.0
    %1743 = vmatmul.mubr.f32.gmra.mrb[0].mxu0 %v1676
    %v1744 = vpop.f32.mrb[0].mxu0
    %v1745 = vadd.f32 0.0, %v1744
    %v1746 = vpop.f32.mrb[0].mxu0
    %1747 = vdwg.mxu0
    %v1749 = vsel %vm150, %v1672, 0
    %1751 = vmatprep.subr.mxu0 0.0
    %1752 = vmatpush1.xpose.msra.mxu0 %v155
    %1753 = vmatprep.subr.mxu0 0.0
    %1754 = vmatpush1.xpose.msra.mxu0 0.0
    %1755 = vmatprep.subr.mxu0 0.0
    %1756 = vmatpush1.xpose.msra.mxu0 0.0
    %1757 = vmatprep.subr.mxu0 0.0
    %1758 = vmatpush1.xpose.msra.mxu0 0.0
    %1759 = vmatprep.subr.mxu0 0.0
    %1760 = vmatpush1.xpose.msra.mxu0 0.0
    %1761 = vmatprep.subr.mxu0 0.0
    %1762 = vmatpush1.xpose.msra.mxu0 0.0
    %1763 = vmatprep.subr.mxu0 0.0
    %1764 = vmatpush1.xpose.msra.mxu0 0.0
    %1765 = vmatprep.subr.mxu0 0.0
    %1766 = vmatpush1.xpose.msra.mxu0 0.0
    %1767 = vmatprep.subr.mxu0 0.0
    %1768 = vmatpush1.xpose.msra.mxu0 0.0
    %1769 = vmatprep.subr.mxu0 0.0
    %1770 = vmatpush1.xpose.msra.mxu0 0.0
    %1771 = vmatprep.subr.mxu0 0.0
    %1772 = vmatpush1.xpose.msra.mxu0 0.0
    %1773 = vmatprep.subr.mxu0 0.0
    %1774 = vmatpush1.xpose.msra.mxu0 0.0
    %1775 = vmatprep.subr.mxu0 0.0
    %1776 = vmatpush1.xpose.msra.mxu0 0.0
    %1777 = vmatprep.subr.mxu0 0.0
    %1778 = vmatpush1.xpose.msra.mxu0 0.0
    %1779 = vmatprep.subr.mxu0 0.0
    %1780 = vmatpush1.xpose.msra.mxu0 0.0
    %1781 = vmatprep.subr.mxu0 0.0
    %1782 = vmatpush1.xpose.msra.mxu0 0.0
    %1783 = vmatprep.subr.mxu0 0.0
    %1784 = vmatpush1.xpose.msra.mxu0 0.0
    %1785 = vmatprep.subr.mxu0 0.0
    %1786 = vmatpush1.xpose.msra.mxu0 0.0
    %1787 = vmatprep.subr.mxu0 0.0
    %1788 = vmatpush1.xpose.msra.mxu0 0.0
    %1789 = vmatprep.subr.mxu0 0.0
    %1790 = vmatpush1.xpose.msra.mxu0 0.0
    %1791 = vmatprep.subr.mxu0 0.0
    %1792 = vmatpush1.xpose.msra.mxu0 0.0
    %1793 = vmatprep.subr.mxu0 0.0
    %1794 = vmatpush1.xpose.msra.mxu0 0.0
    %1795 = vmatprep.subr.mxu0 0.0
    %1796 = vmatpush1.xpose.msra.mxu0 0.0
    %1797 = vmatprep.subr.mxu0 0.0
    %1798 = vmatpush1.xpose.msra.mxu0 0.0
    %1799 = vmatprep.subr.mxu0 0.0
    %1800 = vmatpush1.xpose.msra.mxu0 0.0
    %1801 = vmatprep.subr.mxu0 0.0
    %1802 = vmatpush1.xpose.msra.mxu0 0.0
    %1803 = vmatprep.subr.mxu0 0.0
    %1804 = vmatpush1.xpose.msra.mxu0 0.0
    %1805 = vmatprep.subr.mxu0 0.0
    %1806 = vmatpush1.xpose.msra.mxu0 0.0
    %1807 = vmatprep.subr.mxu0 0.0
    %1808 = vmatpush1.xpose.msra.mxu0 0.0
    %1809 = vmatprep.subr.mxu0 0.0
    %1810 = vmatpush1.xpose.msra.mxu0 0.0
    %1811 = vmatprep.subr.mxu0 0.0
    %1812 = vmatpush1.xpose.msra.mxu0 0.0
    %1813 = vmatprep.subr.mxu0 0.0
    %1814 = vmatpush1.xpose.msra.mxu0 0.0
    %1815 = vmatprep.mubr.f32.mxu0 0.0
    %1816 = vmatmul.mubr.f32.gmra.mrb[0].mxu0 %v1749
    %v1817 = vpop.f32.mrb[0].mxu0
    %v1818 = vadd.f32 0.0, %v1817
    %v1819 = vpop.f32.mrb[0].mxu0
    %1820 = vdwg.mxu0
    %v1821 = vsel %vm378, %v1745, -inf
    %1822 = vmax.xlane.f32.xlu0 %v1821
    %v1823 = vpop.xlane.xlu0 %1822
    %v1824 = vsel %vm378, %v1818, -inf
    %1825 = vmax.xlane.f32.xlu0 %v1824
    %v1826 = vpop.xlane.xlu0 %1825
    %v1827 = vsub.f32 %v1745, %v1823
    %v1828 = vsub.f32 %v1818, %v1826
    %v1829 = vmul.f32 %v1827, 1.442695
    %v1830 = vpow.pop %v1829
    %v1831 = vmul.f32 %v1828, 1.442695
    %v1832 = vpow.pop %v1831
    %v1833 = vsel %vm378, %v1830, 0.0
    %1834 = vadd.xlane.f32.xlu0 %v1833
    %v1835 = vpop.xlane.xlu0 %1834
    %v1836 = vsel %vm378, %v1832, 0.0
    %1837 = vadd.xlane.f32.xlu0 %v1836
    %v1838 = vpop.xlane.xlu0 %1837
    %v1839 = vrcp.pop %v1835
    %v1840 = vrcp.pop %v1838
    %v1841 = vmul.f32 %v1830, %v1839
    %v1842 = vmul.f32 %v1832, %v1840
    %v1844 = vsel %vm378, %v1841, 0
    %1846 = vmatprep.subr.mxu0 0.0
    %1847 = vmatpush1.msra.mxu0 %v128
    %1848 = vmatprep.subr.mxu0 0.0
    %1849 = vmatpush1.msra.mxu0 0.0
    %1850 = vmatprep.subr.mxu0 0.0
    %1851 = vmatpush1.msra.mxu0 0.0
    %1852 = vmatprep.subr.mxu0 0.0
    %1853 = vmatpush1.msra.mxu0 0.0
    %1854 = vmatprep.subr.mxu0 0.0
    %1855 = vmatpush1.msra.mxu0 0.0
    %1856 = vmatprep.subr.mxu0 0.0
    %1857 = vmatpush1.msra.mxu0 0.0
    %1858 = vmatprep.subr.mxu0 0.0
    %1859 = vmatpush1.msra.mxu0 0.0
    %1860 = vmatprep.subr.mxu0 0.0
    %1861 = vmatpush1.msra.mxu0 0.0
    %1862 = vmatprep.subr.mxu0 0.0
    %1863 = vmatpush1.msra.mxu0 0.0
    %1864 = vmatprep.subr.mxu0 0.0
    %1865 = vmatpush1.msra.mxu0 0.0
    %1866 = vmatprep.subr.mxu0 0.0
    %1867 = vmatpush1.msra.mxu0 0.0
    %1868 = vmatprep.subr.mxu0 0.0
    %1869 = vmatpush1.msra.mxu0 0.0
    %1870 = vmatprep.subr.mxu0 0.0
    %1871 = vmatpush1.msra.mxu0 0.0
    %1872 = vmatprep.subr.mxu0 0.0
    %1873 = vmatpush1.msra.mxu0 0.0
    %1874 = vmatprep.subr.mxu0 0.0
    %1875 = vmatpush1.msra.mxu0 0.0
    %1876 = vmatprep.subr.mxu0 0.0
    %1877 = vmatpush1.msra.mxu0 0.0
    %1878 = vmatprep.subr.mxu0 0.0
    %1879 = vmatpush1.msra.mxu0 0.0
    %1880 = vmatprep.subr.mxu0 0.0
    %1881 = vmatpush1.msra.mxu0 0.0
    %1882 = vmatprep.subr.mxu0 0.0
    %1883 = vmatpush1.msra.mxu0 0.0
    %1884 = vmatprep.subr.mxu0 0.0
    %1885 = vmatpush1.msra.mxu0 0.0
    %1886 = vmatprep.subr.mxu0 0.0
    %1887 = vmatpush1.msra.mxu0 0.0
    %1888 = vmatprep.subr.mxu0 0.0
    %1889 = vmatpush1.msra.mxu0 0.0
    %1890 = vmatprep.subr.mxu0 0.0
    %1891 = vmatpush1.msra.mxu0 0.0
    %1892 = vmatprep.subr.mxu0 0.0
    %1893 = vmatpush1.msra.mxu0 0.0
    %1894 = vmatprep.subr.mxu0 0.0
    %1895 = vmatpush1.msra.mxu0 0.0
    %1896 = vmatprep.subr.mxu0 0.0
    %1897 = vmatpush1.msra.mxu0 0.0
    %1898 = vmatprep.subr.mxu0 0.0
    %1899 = vmatpush1.msra.mxu0 0.0
    %1900 = vmatprep.subr.mxu0 0.0
    %1901 = vmatpush1.msra.mxu0 0.0
    %1902 = vmatprep.subr.mxu0 0.0
    %1903 = vmatpush1.msra.mxu0 0.0
    %1904 = vmatprep.subr.mxu0 0.0
    %1905 = vmatpush1.msra.mxu0 0.0
    %1906 = vmatprep.subr.mxu0 0.0
    %1907 = vmatpush1.msra.mxu0 0.0
    %1908 = vmatprep.subr.mxu0 0.0
    %1909 = vmatpush1.msra.mxu0 0.0
    %1910 = vmatprep.mubr.f32.mxu0 0.0
    %1911 = vmatmul.mubr.f32.gmra.mrb[0].mxu0 %v1844
    %v1912 = vpop.f32.mrb[0].mxu0
    %v1913 = vadd.f32 0.0, %v1912
    %v1914 = vpop.f32.mrb[0].mxu0
    %1915 = vdwg.mxu0
    %v1917 = vsel %vm378, %v1842, 0
    %1919 = vmatprep.subr.mxu0 0.0
    %1920 = vmatpush1.msra.mxu0 %v133
    %1921 = vmatprep.subr.mxu0 0.0
    %1922 = vmatpush1.msra.mxu0 0.0
    %1923 = vmatprep.subr.mxu0 0.0
    %1924 = vmatpush1.msra.mxu0 0.0
    %1925 = vmatprep.subr.mxu0 0.0
    %1926 = vmatpush1.msra.mxu0 0.0
    %1927 = vmatprep.subr.mxu0 0.0
    %1928 = vmatpush1.msra.mxu0 0.0
    %1929 = vmatprep.subr.mxu0 0.0
    %1930 = vmatpush1.msra.mxu0 0.0
    %1931 = vmatprep.subr.mxu0 0.0
    %1932 = vmatpush1.msra.mxu0 0.0
    %1933 = vmatprep.subr.mxu0 0.0
    %1934 = vmatpush1.msra.mxu0 0.0
    %1935 = vmatprep.subr.mxu0 0.0
    %1936 = vmatpush1.msra.mxu0 0.0
    %1937 = vmatprep.subr.mxu0 0.0
    %1938 = vmatpush1.msra.mxu0 0.0
    %1939 = vmatprep.subr.mxu0 0.0
    %1940 = vmatpush1.msra.mxu0 0.0
    %1941 = vmatprep.subr.mxu0 0.0
    %1942 = vmatpush1.msra.mxu0 0.0
    %1943 = vmatprep.subr.mxu0 0.0
    %1944 = vmatpush1.msra.mxu0 0.0
    %1945 = vmatprep.subr.mxu0 0.0
    %1946 = vmatpush1.msra.mxu0 0.0
    %1947 = vmatprep.subr.mxu0 0.0
    %1948 = vmatpush1.msra.mxu0 0.0
    %1949 = vmatprep.subr.mxu0 0.0
    %1950 = vmatpush1.msra.mxu0 0.0
    %1951 = vmatprep.subr.mxu0 0.0
    %1952 = vmatpush1.msra.mxu0 0.0
    %1953 = vmatprep.subr.mxu0 0.0
    %1954 = vmatpush1.msra.mxu0 0.0
    %1955 = vmatprep.subr.mxu0 0.0
    %1956 = vmatpush1.msra.mxu0 0.0
    %1957 = vmatprep.subr.mxu0 0.0
    %1958 = vmatpush1.msra.mxu0 0.0
    %1959 = vmatprep.subr.mxu0 0.0
    %1960 = vmatpush1.msra.mxu0 0.0
    %1961 = vmatprep.subr.mxu0 0.0
    %1962 = vmatpush1.msra.mxu0 0.0
    %1963 = vmatprep.subr.mxu0 0.0
    %1964 = vmatpush1.msra.mxu0 0.0
    %1965 = vmatprep.subr.mxu0 0.0
    %1966 = vmatpush1.msra.mxu0 0.0
    %1967 = vmatprep.subr.mxu0 0.0
    %1968 = vmatpush1.msra.mxu0 0.0
    %1969 = vmatprep.subr.mxu0 0.0
    %1970 = vmatpush1.msra.mxu0 0.0
    %1971 = vmatprep.subr.mxu0 0.0
    %1972 = vmatpush1.msra.mxu0 0.0
    %1973 = vmatprep.subr.mxu0 0.0
    %1974 = vmatpush1.msra.mxu0 0.0
    %1975 = vmatprep.subr.mxu0 0.0
    %1976 = vmatpush1.msra.mxu0 0.0
    %1977 = vmatprep.subr.mxu0 0.0
    %1978 = vmatpush1.msra.mxu0 0.0
    %1979 = vmatprep.subr.mxu0 0.0
    %1980 = vmatpush1.msra.mxu0 0.0
    %1981 = vmatprep.subr.mxu0 0.0
    %1982 = vmatpush1.msra.mxu0 0.0
    %1983 = vmatprep.mubr.f32.mxu0 0.0
    %1984 = vmatmul.mubr.f32.gmra.mrb[0].mxu0 %v1917
    %v1985 = vpop.f32.mrb[0].mxu0
    %v1986 = vadd.f32 0.0, %v1985
    %v1987 = vpop.f32.mrb[0].mxu0
    %1988 = vdwg.mxu0
    %v1990 = vsel %vm150, %v1913, 0
    %v1993 = vsel %vm150, %v1986, 0
    %1995 = vmatprep.subr.mxu0 0.0
    %1996 = vmatpush1.msra.mxu0 %v1596
    %1997 = vmatprep.subr.mxu0 0.0
    %1998 = vmatpush1.msra.mxu0 %v1597
    %1999 = vmatprep.subr.mxu0 0.0
    %2000 = vmatpush1.msra.mxu0 %v1598
    %2001 = vmatprep.subr.mxu0 0.0
    %2002 = vmatpush1.msra.mxu0 %v1599
    %2003 = vmatprep.subr.mxu0 0.0
    %2004 = vmatpush1.msra.mxu0 0.0
    %2005 = vmatprep.subr.mxu0 0.0
    %2006 = vmatpush1.msra.mxu0 0.0
    %2007 = vmatprep.subr.mxu0 0.0
    %2008 = vmatpush1.msra.mxu0 0.0
    %2009 = vmatprep.subr.mxu0 0.0
    %2010 = vmatpush1.msra.mxu0 0.0
    %2011 = vmatprep.subr.mxu0 0.0
    %2012 = vmatpush1.msra.mxu0 0.0
    %2013 = vmatprep.subr.mxu0 0.0
    %2014 = vmatpush1.msra.mxu0 0.0
    %2015 = vmatprep.subr.mxu0 0.0
    %2016 = vmatpush1.msra.mxu0 0.0
    %2017 = vmatprep.subr.mxu0 0.0
    %2018 = vmatpush1.msra.mxu0 0.0
    %2019 = vmatprep.subr.mxu0 0.0
    %2020 = vmatpush1.msra.mxu0 0.0
    %2021 = vmatprep.subr.mxu0 0.0
    %2022 = vmatpush1.msra.mxu0 0.0
    %2023 = vmatprep.subr.mxu0 0.0
    %2024 = vmatpush1.msra.mxu0 0.0
    %2025 = vmatprep.subr.mxu0 0.0
    %2026 = vmatpush1.msra.mxu0 0.0
    %2027 = vmatprep.subr.mxu0 0.0
    %2028 = vmatpush1.msra.mxu0 0.0
    %2029 = vmatprep.subr.mxu0 0.0
    %2030 = vmatpush1.msra.mxu0 0.0
    %2031 = vmatprep.subr.mxu0 0.0
    %2032 = vmatpush1.msra.mxu0 0.0
    %2033 = vmatprep.subr.mxu0 0.0
    %2034 = vmatpush1.msra.mxu0 0.0
    %2035 = vmatprep.subr.mxu0 0.0
    %2036 = vmatpush1.msra.mxu0 0.0
    %2037 = vmatprep.subr.mxu0 0.0
    %2038 = vmatpush1.msra.mxu0 0.0
    %2039 = vmatprep.subr.mxu0 0.0
    %2040 = vmatpush1.msra.mxu0 0.0
    %2041 = vmatprep.subr.mxu0 0.0
    %2042 = vmatpush1.msra.mxu0 0.0
    %2043 = vmatprep.subr.mxu0 0.0
    %2044 = vmatpush1.msra.mxu0 0.0
    %2045 = vmatprep.subr.mxu0 0.0
    %2046 = vmatpush1.msra.mxu0 0.0
    %2047 = vmatprep.subr.mxu0 0.0
    %2048 = vmatpush1.msra.mxu0 0.0
    %2049 = vmatprep.subr.mxu0 0.0
    %2050 = vmatpush1.msra.mxu0 0.0
    %2051 = vmatprep.subr.mxu0 0.0
    %2052 = vmatpush1.msra.mxu0 0.0
    %2053 = vmatprep.subr.mxu0 0.0
    %2054 = vmatpush1.msra.mxu0 0.0
    %2055 = vmatprep.subr.mxu0 0.0
    %2056 = vmatpush1.msra.mxu0 0.0
    %2057 = vmatprep.subr.mxu0 0.0
    %2058 = vmatpush1.msra.mxu0 0.0
    %2059 = vmatprep.mubr.f32.mxu0 0.0
    %2060 = vmatmul.mubr.f32.gmra.mrb[0].mxu0 %v1990
    %v2061 = vpop.f32.mrb[0].mxu0
    %v2062 = vadd.f32 0.0, %v2061
    %v2063 = vpop.f32.mrb[0].mxu0
    %2064 = vmatprep.mubr.f32.mxu0 0.0
    %2065 = vmatmul.mubr.f32.gmra.mrb[0].mxu0 %v1993
    %v2066 = vpop.f32.mrb[0].mxu0
    %v2067 = vadd.f32 0.0, %v2066
    %v2068 = vpop.f32.mrb[0].mxu0
    %2069 = vdwg.mxu0
    %v2070 = vadd.f32 %v1588, %v2062
    %v2071 = vadd.f32 %v1589, %v2067
    %v2072 = vlaneseq
    %v2073 = vshrl.u32 %v2072, 7
    %v2074 = vsub.s32 0, %v2073
    %v2075 = vrot.slane %v136, %v2074
    %v2076 = vadd.f32 %v2070, %v2075
    %v2077 = vadd.f32 %v2071, %v2075
    %v2078 = vadd.f32 %v2076, %v128
    %v2079 = vadd.f32 %v2077, %v133
    %v2080 = vsel %vm150, %v2078, 0.0
    %2081 = vadd.xlane.f32.xlu0 %v2080
    %v2082 = vpop.xlane.xlu0 %2081
    %v2083 = vsel %vm150, %v2079, 0.0
    %2084 = vadd.xlane.f32.xlu0 %v2083
    %v2085 = vpop.xlane.xlu0 %2084
    %v2086 = vrcp.pop 32.0
    %v2087 = vmul.f32 %v2082, %v2086
    %v2088 = vmul.f32 %v2085, %v2086
    %v2089 = vsub.f32 %v2078, %v2087
    %v2090 = vsub.f32 %v2079, %v2088
    %v2091 = vmul.f32 %v2089, %v2089
    %v2092 = vmul.f32 %v2090, %v2090
    %v2093 = vsel %vm150, %v2091, 0.0
    %2094 = vadd.xlane.f32.xlu0 %v2093
    %v2095 = vpop.xlane.xlu0 %2094
    %v2096 = vsel %vm150, %v2092, 0.0
    %2097 = vadd.xlane.f32.xlu0 %v2096
    %v2098 = vpop.xlane.xlu0 %2097
    %v2099 = vmul.f32 %v2095, %v2086
    %v2100 = vmul.f32 %v2098, %v2086
    %v2101 = vadd.f32 %v2099, 1e-05
    %v2102 = vadd.f32 %v2100, 1e-05
    %v2103 = vrsqrt.pop %v2101
    %v2104 = vrsqrt.pop %v2102
    %v2105 = vmul.f32 %v2089, %v2103
    %v2106 = vmul.f32 %v2090, %v2104
    %v2107 = vlaneseq
    %v2108 = vshrl.u32 %v2107, 7
    %v2109 = vsub.s32 0, %v2108
    %v2110 = vrot.slane %v137, %v2109
    %v2111 = vmul.f32 %v2105, %v2110
    %v2112 = vmul.f32 %v2106, %v2110
    %v2113 = vlaneseq
    %v2114 = vshrl.u32 %v2113, 7
    %v2115 = vsub.s32 0, %v2114
    %v2116 = vrot.slane %v138, %v2115
    %v2117 = vadd.f32 %v2111, %v2116
    %v2118 = vadd.f32 %v2112, %v2116
    %v2119 = vld [vmem:[%s3] sm:$0xff]
    %v2120 = vld [vmem:[%s3 + $0x8] sm:$0xff]
    %v2121 = vld [vmem:[%s3 + $0x10] sm:$0xff]
    %v2122 = vld [vmem:[%s3 + $0x18] sm:$0xff]
    %v2123 = vlaneseq
    %v2124 = vshrl.u32 %v2123, 7
    %v2125 = vsub.s32 0, %v2124
    %v2126 = vrot.slane %v139, %v2125
    %v2128 = vsel %vm150, %v2117, 0
    %v2131 = vsel %vm150, %v2118, 0
    %2133 = vmatprep.subr.mxu0 0.0
    %2134 = vmatpush1.msra.mxu0 %v2119
    %2135 = vmatprep.subr.mxu0 0.0
    %2136 = vmatpush1.msra.mxu0 %v2120
    %2137 = vmatprep.subr.mxu0 0.0
    %2138 = vmatpush1.msra.mxu0 %v2121
    %2139 = vmatprep.subr.mxu0 0.0
    %2140 = vmatpush1.msra.mxu0 %v2122
    %2141 = vmatprep.subr.mxu0 0.0
    %2142 = vmatpush1.msra.mxu0 0.0
    %2143 = vmatprep.subr.mxu0 0.0
    %2144 = vmatpush1.msra.mxu0 0.0
    %2145 = vmatprep.subr.mxu0 0.0
    %2146 = vmatpush1.msra.mxu0 0.0
    %2147 = vmatprep.subr.mxu0 0.0
    %2148 = vmatpush1.msra.mxu0 0.0
    %2149 = vmatprep.subr.mxu0 0.0
    %2150 = vmatpush1.msra.mxu0 0.0
    %2151 = vmatprep.subr.mxu0 0.0
    %2152 = vmatpush1.msra.mxu0 0.0
    %2153 = vmatprep.subr.mxu0 0.0
    %2154 = vmatpush1.msra.mxu0 0.0
    %2155 = vmatprep.subr.mxu0 0.0
    %2156 = vmatpush1.msra.mxu0 0.0
    %2157 = vmatprep.subr.mxu0 0.0
    %2158 = vmatpush1.msra.mxu0 0.0
    %2159 = vmatprep.subr.mxu0 0.0
    %2160 = vmatpush1.msra.mxu0 0.0
    %2161 = vmatprep.subr.mxu0 0.0
    %2162 = vmatpush1.msra.mxu0 0.0
    %2163 = vmatprep.subr.mxu0 0.0
    %2164 = vmatpush1.msra.mxu0 0.0
    %2165 = vmatprep.subr.mxu0 0.0
    %2166 = vmatpush1.msra.mxu0 0.0
    %2167 = vmatprep.subr.mxu0 0.0
    %2168 = vmatpush1.msra.mxu0 0.0
    %2169 = vmatprep.subr.mxu0 0.0
    %2170 = vmatpush1.msra.mxu0 0.0
    %2171 = vmatprep.subr.mxu0 0.0
    %2172 = vmatpush1.msra.mxu0 0.0
    %2173 = vmatprep.subr.mxu0 0.0
    %2174 = vmatpush1.msra.mxu0 0.0
    %2175 = vmatprep.subr.mxu0 0.0
    %2176 = vmatpush1.msra.mxu0 0.0
    %2177 = vmatprep.subr.mxu0 0.0
    %2178 = vmatpush1.msra.mxu0 0.0
    %2179 = vmatprep.subr.mxu0 0.0
    %2180 = vmatpush1.msra.mxu0 0.0
    %2181 = vmatprep.subr.mxu0 0.0
    %2182 = vmatpush1.msra.mxu0 0.0
    %2183 = vmatprep.subr.mxu0 0.0
    %2184 = vmatpush1.msra.mxu0 0.0
    %2185 = vmatprep.subr.mxu0 0.0
    %2186 = vmatpush1.msra.mxu0 0.0
    %2187 = vmatprep.subr.mxu0 0.0
    %2188 = vmatpush1.msra.mxu0 0.0
    %2189 = vmatprep.subr.mxu0 0.0
    %2190 = vmatpush1.msra.mxu0 0.0
    %2191 = vmatprep.subr.mxu0 0.0
    %2192 = vmatpush1.msra.mxu0 0.0
    %2193 = vmatprep.subr.mxu0 0.0
    %2194 = vmatpush1.msra.mxu0 0.0
    %2195 = vmatprep.subr.mxu0 0.0
    %2196 = vmatpush1.msra.mxu0 0.0
    %2197 = vmatprep.mubr.f32.mxu0 0.0
    %2198 = vmatmul.mubr.f32.gmra.mrb[0].mxu0 %v2128
    %v2199 = vpop.f32.mrb[0].mxu0
    %v2200 = vadd.f32 %v2126, %v2199
    %v2201 = vpop.f32.mrb[0].mxu0
    %2202 = vmatprep.mubr.f32.mxu0 0.0
    %2203 = vmatmul.mubr.f32.gmra.mrb[0].mxu0 %v2131
    %v2204 = vpop.f32.mrb[0].mxu0
    %v2205 = vadd.f32 %v2126, %v2204
    %v2206 = vpop.f32.mrb[0].mxu0
    %2207 = vdwg.mxu0
    %v2208 = vmax.f32 %v2200, 0.0
    %v2209 = vmax.f32 %v2205, 0.0
    %v2210 = vld [vmem:[%s4] sm:$0xff]
    %v2211 = vld [vmem:[%s4 + $0x8] sm:$0xff]
    %v2212 = vld [vmem:[%s4 + $0x10] sm:$0xff]
    %v2213 = vld [vmem:[%s4 + $0x18] sm:$0xff]
    %v2214 = vld [vmem:[%s4 + $0x20] sm:$0xff]
    %v2215 = vld [vmem:[%s4 + $0x28] sm:$0xff]
    %v2216 = vld [vmem:[%s4 + $0x30] sm:$0xff]
    %v2217 = vld [vmem:[%s4 + $0x38] sm:$0xff]
    %v2218 = vlaneseq
    %v2219 = vshrl.u32 %v2218, 7
    %v2220 = vsub.s32 0, %v2219
    %v2221 = vrot.slane %v140, %v2220
    %vm2222 = vcmask 523264
    %v2224 = vsel %vm2222, %v2208, 0
    %v2227 = vsel %vm2222, %v2209, 0
    %2229 = vmatprep.subr.mxu0 0.0
    %2230 = vmatpush1.msra.mxu0 %v2210
    %2231 = vmatprep.subr.mxu0 0.0
    %2232 = vmatpush1.msra.mxu0 %v2211
    %2233 = vmatprep.subr.mxu0 0.0
    %2234 = vmatpush1.msra.mxu0 %v2212
    %2235 = vmatprep.subr.mxu0 0.0
    %2236 = vmatpush1.msra.mxu0 %v2213
    %2237 = vmatprep.subr.mxu0 0.0
    %2238 = vmatpush1.msra.mxu0 %v2214
    %2239 = vmatprep.subr.mxu0 0.0
    %2240 = vmatpush1.msra.mxu0 %v2215
    %2241 = vmatprep.subr.mxu0 0.0
    %2242 = vmatpush1.msra.mxu0 %v2216
    %2243 = vmatprep.subr.mxu0 0.0
    %2244 = vmatpush1.msra.mxu0 %v2217
    %2245 = vmatprep.subr.mxu0 0.0
    %2246 = vmatpush1.msra.mxu0 0.0
    %2247 = vmatprep.subr.mxu0 0.0
    %2248 = vmatpush1.msra.mxu0 0.0
    %2249 = vmatprep.subr.mxu0 0.0
    %2250 = vmatpush1.msra.mxu0 0.0
    %2251 = vmatprep.subr.mxu0 0.0
    %2252 = vmatpush1.msra.mxu0 0.0
    %2253 = vmatprep.subr.mxu0 0.0
    %2254 = vmatpush1.msra.mxu0 0.0
    %2255 = vmatprep.subr.mxu0 0.0
    %2256 = vmatpush1.msra.mxu0 0.0
    %2257 = vmatprep.subr.mxu0 0.0
    %2258 = vmatpush1.msra.mxu0 0.0
    %2259 = vmatprep.subr.mxu0 0.0
    %2260 = vmatpush1.msra.mxu0 0.0
    %2261 = vmatprep.subr.mxu0 0.0
    %2262 = vmatpush1.msra.mxu0 0.0
    %2263 = vmatprep.subr.mxu0 0.0
    %2264 = vmatpush1.msra.mxu0 0.0
    %2265 = vmatprep.subr.mxu0 0.0
    %2266 = vmatpush1.msra.mxu0 0.0
    %2267 = vmatprep.subr.mxu0 0.0
    %2268 = vmatpush1.msra.mxu0 0.0
    %2269 = vmatprep.subr.mxu0 0.0
    %2270 = vmatpush1.msra.mxu0 0.0
    %2271 = vmatprep.subr.mxu0 0.0
    %2272 = vmatpush1.msra.mxu0 0.0
    %2273 = vmatprep.subr.mxu0 0.0
    %2274 = vmatpush1.msra.mxu0 0.0
    %2275 = vmatprep.subr.mxu0 0.0
    %2276 = vmatpush1.msra.mxu0 0.0
    %2277 = vmatprep.subr.mxu0 0.0
    %2278 = vmatpush1.msra.mxu0 0.0
    %2279 = vmatprep.subr.mxu0 0.0
    %2280 = vmatpush1.msra.mxu0 0.0
    %2281 = vmatprep.subr.mxu0 0.0
    %2282 = vmatpush1.msra.mxu0 0.0
    %2283 = vmatprep.subr.mxu0 0.0
    %2284 = vmatpush1.msra.mxu0 0.0
    %2285 = vmatprep.subr.mxu0 0.0
    %2286 = vmatpush1.msra.mxu0 0.0
    %2287 = vmatprep.subr.mxu0 0.0
    %2288 = vmatpush1.msra.mxu0 0.0
    %2289 = vmatprep.subr.mxu0 0.0
    %2290 = vmatpush1.msra.mxu0 0.0
    %2291 = vmatprep.subr.mxu0 0.0
    %2292 = vmatpush1.msra.mxu0 0.0
    %2293 = vmatprep.mubr.f32.mxu0 0.0
    %2294 = vmatmul.mubr.f32.gmra.mrb[0].mxu0 %v2224
    %v2295 = vpop.f32.mrb[0].mxu0
    %v2296 = vadd.f32 %v2221, %v2295
    %v2297 = vpop.f32.mrb[0].mxu0
    %2298 = vmatprep.mubr.f32.mxu0 0.0
    %2299 = vmatmul.mubr.f32.gmra.mrb[0].mxu0 %v2227
    %v2300 = vpop.f32.mrb[0].mxu0
    %v2301 = vadd.f32 %v2221, %v2300
    %v2302 = vpop.f32.mrb[0].mxu0
    %2303 = vdwg.mxu0
    %v2304 = vadd.f32 %v2296, %v2117
    %v2305 = vadd.f32 %v2301, %v2118
    %v2306 = vsel %vm150, %v2304, 0.0
    %2307 = vadd.xlane.f32.xlu0 %v2306
    %v2308 = vpop.xlane.xlu0 %2307
    %v2309 = vsel %vm150, %v2305, 0.0
    %2310 = vadd.xlane.f32.xlu0 %v2309
    %v2311 = vpop.xlane.xlu0 %2310
    %v2312 = vmul.f32 %v2308, %v2086
    %v2313 = vmul.f32 %v2311, %v2086
    %v2314 = vsub.f32 %v2304, %v2312
    %v2315 = vsub.f32 %v2305, %v2313
    %v2316 = vmul.f32 %v2314, %v2314
    %v2317 = vmul.f32 %v2315, %v2315
    %v2318 = vsel %vm150, %v2316, 0.0
    %2319 = vadd.xlane.f32.xlu0 %v2318
    %v2320 = vpop.xlane.xlu0 %2319
    %v2321 = vsel %vm150, %v2317, 0.0
    %2322 = vadd.xlane.f32.xlu0 %v2321
    %v2323 = vpop.xlane.xlu0 %2322
    %v2324 = vmul.f32 %v2320, %v2086
    %v2325 = vmul.f32 %v2323, %v2086
    %v2326 = vadd.f32 %v2324, 1e-05
    %v2327 = vadd.f32 %v2325, 1e-05
    %v2328 = vrsqrt.pop %v2326
    %v2329 = vrsqrt.pop %v2327
    %v2330 = vmul.f32 %v2314, %v2328
    %v2331 = vmul.f32 %v2315, %v2329
    %v2332 = vmul.f32 %v2330, %v2110
    %v2333 = vmul.f32 %v2331, %v2110
    %v2334 = vadd.f32 %v2332, %v2116
    %v2335 = vadd.f32 %v2333, %v2116
    %s2336 = scalar_lea.vmem %s5, 8
    %v2337 = vld [vmem:[%s2336] sm:$0x1]
    %v2338 = vld [vmem:[%s2336 + $0x1] sm:$0x1]
    %v2339 = vld [vmem:[%s2336 + $0x2] sm:$0x1]
    %v2340 = vld [vmem:[%s2336 + $0x3] sm:$0x1]
    %v2341 = vld [vmem:[%s2336 + $0x4] sm:$0x1]
    %s2342 = scalar_lea.vmem [#allocation2], 256
    %v2343 = vld [vmem:[%s2342] sm:$0xff]
    %v2344 = vld [vmem:[%s2342 + $0x8] sm:$0xff]
    %v2345 = vld [vmem:[%s2342 + $0x10] sm:$0xff]
    %v2346 = vld [vmem:[%s2342 + $0x18] sm:$0xff]
    %s2347 = scalar_lea.vmem [#allocation2], 384
    %v2348 = vld [vmem:[%s2347] sm:$0xff]
    %v2349 = vld [vmem:[%s2347 + $0x8] sm:$0xff]
    %v2350 = vld [vmem:[%s2347 + $0x10] sm:$0xff]
    %v2351 = vld [vmem:[%s2347 + $0x18] sm:$0xff]
    %v2353 = vsel %vm150, %v2334, 0
    %v2356 = vsel %vm150, %v2335, 0
    %2358 = vmatprep.subr.mxu0 0.0
    %2359 = vmatpush1.msra.mxu0 %v2343
    %2360 = vmatprep.subr.mxu0 0.0
    %2361 = vmatpush1.msra.mxu0 %v2344
    %2362 = vmatprep.subr.mxu0 0.0
    %2363 = vmatpush1.msra.mxu0 %v2345
    %2364 = vmatprep.subr.mxu0 0.0
    %2365 = vmatpush1.msra.mxu0 %v2346
    %2366 = vmatprep.subr.mxu0 0.0
    %2367 = vmatpush1.msra.mxu0 0.0
    %2368 = vmatprep.subr.mxu0 0.0
    %2369 = vmatpush1.msra.mxu0 0.0
    %2370 = vmatprep.subr.mxu0 0.0
    %2371 = vmatpush1.msra.mxu0 0.0
    %2372 = vmatprep.subr.mxu0 0.0
    %2373 = vmatpush1.msra.mxu0 0.0
    %2374 = vmatprep.subr.mxu0 0.0
    %2375 = vmatpush1.msra.mxu0 0.0
    %2376 = vmatprep.subr.mxu0 0.0
    %2377 = vmatpush1.msra.mxu0 0.0
    %2378 = vmatprep.subr.mxu0 0.0
    %2379 = vmatpush1.msra.mxu0 0.0
    %2380 = vmatprep.subr.mxu0 0.0
    %2381 = vmatpush1.msra.mxu0 0.0
    %2382 = vmatprep.subr.mxu0 0.0
    %2383 = vmatpush1.msra.mxu0 0.0
    %2384 = vmatprep.subr.mxu0 0.0
    %2385 = vmatpush1.msra.mxu0 0.0
    %2386 = vmatprep.subr.mxu0 0.0
    %2387 = vmatpush1.msra.mxu0 0.0
    %2388 = vmatprep.subr.mxu0 0.0
    %2389 = vmatpush1.msra.mxu0 0.0
    %2390 = vmatprep.subr.mxu0 0.0
    %2391 = vmatpush1.msra.mxu0 0.0
    %2392 = vmatprep.subr.mxu0 0.0
    %2393 = vmatpush1.msra.mxu0 0.0
    %2394 = vmatprep.subr.mxu0 0.0
    %2395 = vmatpush1.msra.mxu0 0.0
    %2396 = vmatprep.subr.mxu0 0.0
    %2397 = vmatpush1.msra.mxu0 0.0
    %2398 = vmatprep.subr.mxu0 0.0
    %2399 = vmatpush1.msra.mxu0 0.0
    %2400 = vmatprep.subr.mxu0 0.0
    %2401 = vmatpush1.msra.mxu0 0.0
    %2402 = vmatprep.subr.mxu0 0.0
    %2403 = vmatpush1.msra.mxu0 0.0
    %2404 = vmatprep.subr.mxu0 0.0
    %2405 = vmatpush1.msra.mxu0 0.0
    %2406 = vmatprep.subr.mxu0 0.0
    %2407 = vmatpush1.msra.mxu0 0.0
    %2408 = vmatprep.subr.mxu0 0.0
    %2409 = vmatpush1.msra.mxu0 0.0
    %2410 = vmatprep.subr.mxu0 0.0
    %2411 = vmatpush1.msra.mxu0 0.0
    %2412 = vmatprep.subr.mxu0 0.0
    %2413 = vmatpush1.msra.mxu0 0.0
    %2414 = vmatprep.subr.mxu0 0.0
    %2415 = vmatpush1.msra.mxu0 0.0
    %2416 = vmatprep.subr.mxu0 0.0
    %2417 = vmatpush1.msra.mxu0 0.0
    %2418 = vmatprep.subr.mxu0 0.0
    %2419 = vmatpush1.msra.mxu0 0.0
    %2420 = vmatprep.subr.mxu0 0.0
    %2421 = vmatpush1.msra.mxu0 0.0
    %2422 = vmatprep.mubr.f32.mxu0 0.0
    %2423 = vmatmul.mubr.f32.gmra.mrb[0].mxu0 %v2353
    %v2424 = vpop.f32.mrb[0].mxu0
    %v2425 = vadd.f32 0.0, %v2424
    %v2426 = vpop.f32.mrb[0].mxu0
    %2427 = vmatprep.mubr.f32.mxu0 0.0
    %2428 = vmatmul.mubr.f32.gmra.mrb[0].mxu0 %v2356
    %v2429 = vpop.f32.mrb[0].mxu0
    %v2430 = vadd.f32 0.0, %v2429
    %v2431 = vpop.f32.mrb[0].mxu0
    %2432 = vdwg.mxu0
    %v2434 = vsel %vm150, %v2425, 0
    %2436 = vmatprep.subr.mxu0 0.0
    %2437 = vmatpush1.xpose.msra.mxu0 %v2353
    %2438 = vmatprep.subr.mxu0 0.0
    %2439 = vmatpush1.xpose.msra.mxu0 0.0
    %2440 = vmatprep.subr.mxu0 0.0
    %2441 = vmatpush1.xpose.msra.mxu0 0.0
    %2442 = vmatprep.subr.mxu0 0.0
    %2443 = vmatpush1.xpose.msra.mxu0 0.0
    %2444 = vmatprep.subr.mxu0 0.0
    %2445 = vmatpush1.xpose.msra.mxu0 0.0
    %2446 = vmatprep.subr.mxu0 0.0
    %2447 = vmatpush1.xpose.msra.mxu0 0.0
    %2448 = vmatprep.subr.mxu0 0.0
    %2449 = vmatpush1.xpose.msra.mxu0 0.0
    %2450 = vmatprep.subr.mxu0 0.0
    %2451 = vmatpush1.xpose.msra.mxu0 0.0
    %2452 = vmatprep.subr.mxu0 0.0
    %2453 = vmatpush1.xpose.msra.mxu0 0.0
    %2454 = vmatprep.subr.mxu0 0.0
    %2455 = vmatpush1.xpose.msra.mxu0 0.0
    %2456 = vmatprep.subr.mxu0 0.0
    %2457 = vmatpush1.xpose.msra.mxu0 0.0
    %2458 = vmatprep.subr.mxu0 0.0
    %2459 = vmatpush1.xpose.msra.mxu0 0.0
    %2460 = vmatprep.subr.mxu0 0.0
    %2461 = vmatpush1.xpose.msra.mxu0 0.0
    %2462 = vmatprep.subr.mxu0 0.0
    %2463 = vmatpush1.xpose.msra.mxu0 0.0
    %2464 = vmatprep.subr.mxu0 0.0
    %2465 = vmatpush1.xpose.msra.mxu0 0.0
    %2466 = vmatprep.subr.mxu0 0.0
    %2467 = vmatpush1.xpose.msra.mxu0 0.0
    %2468 = vmatprep.subr.mxu0 0.0
    %2469 = vmatpush1.xpose.msra.mxu0 0.0
    %2470 = vmatprep.subr.mxu0 0.0
    %2471 = vmatpush1.xpose.msra.mxu0 0.0
    %2472 = vmatprep.subr.mxu0 0.0
    %2473 = vmatpush1.xpose.msra.mxu0 0.0
    %2474 = vmatprep.subr.mxu0 0.0
    %2475 = vmatpush1.xpose.msra.mxu0 0.0
    %2476 = vmatprep.subr.mxu0 0.0
    %2477 = vmatpush1.xpose.msra.mxu0 0.0
    %2478 = vmatprep.subr.mxu0 0.0
    %2479 = vmatpush1.xpose.msra.mxu0 0.0
    %2480 = vmatprep.subr.mxu0 0.0
    %2481 = vmatpush1.xpose.msra.mxu0 0.0
    %2482 = vmatprep.subr.mxu0 0.0
    %2483 = vmatpush1.xpose.msra.mxu0 0.0
    %2484 = vmatprep.subr.mxu0 0.0
    %2485 = vmatpush1.xpose.msra.mxu0 0.0
    %2486 = vmatprep.subr.mxu0 0.0
    %2487 = vmatpush1.xpose.msra.mxu0 0.0
    %2488 = vmatprep.subr.mxu0 0.0
    %2489 = vmatpush1.xpose.msra.mxu0 0.0
    %2490 = vmatprep.subr.mxu0 0.0
    %2491 = vmatpush1.xpose.msra.mxu0 0.0
    %2492 = vmatprep.subr.mxu0 0.0
    %2493 = vmatpush1.xpose.msra.mxu0 0.0
    %2494 = vmatprep.subr.mxu0 0.0
    %2495 = vmatpush1.xpose.msra.mxu0 0.0
    %2496 = vmatprep.subr.mxu0 0.0
    %2497 = vmatpush1.xpose.msra.mxu0 0.0
    %2498 = vmatprep.subr.mxu0 0.0
    %2499 = vmatpush1.xpose.msra.mxu0 0.0
    %2500 = vmatprep.mubr.f32.mxu0 0.0
    %2501 = vmatmul.mubr.f32.gmra.mrb[0].mxu0 %v2434
    %v2502 = vpop.f32.mrb[0].mxu0
    %v2503 = vadd.f32 0.0, %v2502
    %v2504 = vpop.f32.mrb[0].mxu0
    %2505 = vdwg.mxu0
    %v2507 = vsel %vm150, %v2430, 0
    %2509 = vmatprep.subr.mxu0 0.0
    %2510 = vmatpush1.xpose.msra.mxu0 %v2356
    %2511 = vmatprep.subr.mxu0 0.0
    %2512 = vmatpush1.xpose.msra.mxu0 0.0
    %2513 = vmatprep.subr.mxu0 0.0
    %2514 = vmatpush1.xpose.msra.mxu0 0.0
    %2515 = vmatprep.subr.mxu0 0.0
    %2516 = vmatpush1.xpose.msra.mxu0 0.0
    %2517 = vmatprep.subr.mxu0 0.0
    %2518 = vmatpush1.xpose.msra.mxu0 0.0
    %2519 = vmatprep.subr.mxu0 0.0
    %2520 = vmatpush1.xpose.msra.mxu0 0.0
    %2521 = vmatprep.subr.mxu0 0.0
    %2522 = vmatpush1.xpose.msra.mxu0 0.0
    %2523 = vmatprep.subr.mxu0 0.0
    %2524 = vmatpush1.xpose.msra.mxu0 0.0
    %2525 = vmatprep.subr.mxu0 0.0
    %2526 = vmatpush1.xpose.msra.mxu0 0.0
    %2527 = vmatprep.subr.mxu0 0.0
    %2528 = vmatpush1.xpose.msra.mxu0 0.0
    %2529 = vmatprep.subr.mxu0 0.0
    %2530 = vmatpush1.xpose.msra.mxu0 0.0
    %2531 = vmatprep.subr.mxu0 0.0
    %2532 = vmatpush1.xpose.msra.mxu0 0.0
    %2533 = vmatprep.subr.mxu0 0.0
    %2534 = vmatpush1.xpose.msra.mxu0 0.0
    %2535 = vmatprep.subr.mxu0 0.0
    %2536 = vmatpush1.xpose.msra.mxu0 0.0
    %2537 = vmatprep.subr.mxu0 0.0
    %2538 = vmatpush1.xpose.msra.mxu0 0.0
    %2539 = vmatprep.subr.mxu0 0.0
    %2540 = vmatpush1.xpose.msra.mxu0 0.0
    %2541 = vmatprep.subr.mxu0 0.0
    %2542 = vmatpush1.xpose.msra.mxu0 0.0
    %2543 = vmatprep.subr.mxu0 0.0
    %2544 = vmatpush1.xpose.msra.mxu0 0.0
    %2545 = vmatprep.subr.mxu0 0.0
    %2546 = vmatpush1.xpose.msra.mxu0 0.0
    %2547 = vmatprep.subr.mxu0 0.0
    %2548 = vmatpush1.xpose.msra.mxu0 0.0
    %2549 = vmatprep.subr.mxu0 0.0
    %2550 = vmatpush1.xpose.msra.mxu0 0.0
    %2551 = vmatprep.subr.mxu0 0.0
    %2552 = vmatpush1.xpose.msra.mxu0 0.0
    %2553 = vmatprep.subr.mxu0 0.0
    %2554 = vmatpush1.xpose.msra.mxu0 0.0
    %2555 = vmatprep.subr.mxu0 0.0
    %2556 = vmatpush1.xpose.msra.mxu0 0.0
    %2557 = vmatprep.subr.mxu0 0.0
    %2558 = vmatpush1.xpose.msra.mxu0 0.0
    %2559 = vmatprep.subr.mxu0 0.0
    %2560 = vmatpush1.xpose.msra.mxu0 0.0
    %2561 = vmatprep.subr.mxu0 0.0
    %2562 = vmatpush1.xpose.msra.mxu0 0.0
    %2563 = vmatprep.subr.mxu0 0.0
    %2564 = vmatpush1.xpose.msra.mxu0 0.0
    %2565 = vmatprep.subr.mxu0 0.0
    %2566 = vmatpush1.xpose.msra.mxu0 0.0
    %2567 = vmatprep.subr.mxu0 0.0
    %2568 = vmatpush1.xpose.msra.mxu0 0.0
    %2569 = vmatprep.subr.mxu0 0.0
    %2570 = vmatpush1.xpose.msra.mxu0 0.0
    %2571 = vmatprep.subr.mxu0 0.0
    %2572 = vmatpush1.xpose.msra.mxu0 0.0
    %2573 = vmatprep.mubr.f32.mxu0 0.0
    %2574 = vmatmul.mubr.f32.gmra.mrb[0].mxu0 %v2507
    %v2575 = vpop.f32.mrb[0].mxu0
    %v2576 = vadd.f32 0.0, %v2575
    %v2577 = vpop.f32.mrb[0].mxu0
    %2578 = vdwg.mxu0
    %v2579 = vsel %vm378, %v2503, -inf
    %2580 = vmax.xlane.f32.xlu0 %v2579
    %v2581 = vpop.xlane.xlu0 %2580
    %v2582 = vsel %vm378, %v2576, -inf
    %2583 = vmax.xlane.f32.xlu0 %v2582
    %v2584 = vpop.xlane.xlu0 %2583
    %v2585 = vsub.f32 %v2503, %v2581
    %v2586 = vsub.f32 %v2576, %v2584
    %v2587 = vmul.f32 %v2585, 1.442695
    %v2588 = vpow.pop %v2587
    %v2589 = vmul.f32 %v2586, 1.442695
    %v2590 = vpow.pop %v2589
    %v2591 = vsel %vm378, %v2588, 0.0
    %2592 = vadd.xlane.f32.xlu0 %v2591
    %v2593 = vpop.xlane.xlu0 %2592
    %v2594 = vsel %vm378, %v2590, 0.0
    %2595 = vadd.xlane.f32.xlu0 %v2594
    %v2596 = vpop.xlane.xlu0 %2595
    %v2597 = vrcp.pop %v2593
    %v2598 = vrcp.pop %v2596
    %v2599 = vmul.f32 %v2588, %v2597
    %v2600 = vmul.f32 %v2590, %v2598
    %v2602 = vsel %vm378, %v2599, 0
    %2604 = vmatprep.subr.mxu0 0.0
    %2605 = vmatpush1.msra.mxu0 %v2334
    %2606 = vmatprep.subr.mxu0 0.0
    %2607 = vmatpush1.msra.mxu0 0.0
    %2608 = vmatprep.subr.mxu0 0.0
    %2609 = vmatpush1.msra.mxu0 0.0
    %2610 = vmatprep.subr.mxu0 0.0
    %2611 = vmatpush1.msra.mxu0 0.0
    %2612 = vmatprep.subr.mxu0 0.0
    %2613 = vmatpush1.msra.mxu0 0.0
    %2614 = vmatprep.subr.mxu0 0.0
    %2615 = vmatpush1.msra.mxu0 0.0
    %2616 = vmatprep.subr.mxu0 0.0
    %2617 = vmatpush1.msra.mxu0 0.0
    %2618 = vmatprep.subr.mxu0 0.0
    %2619 = vmatpush1.msra.mxu0 0.0
    %2620 = vmatprep.subr.mxu0 0.0
    %2621 = vmatpush1.msra.mxu0 0.0
    %2622 = vmatprep.subr.mxu0 0.0
    %2623 = vmatpush1.msra.mxu0 0.0
    %2624 = vmatprep.subr.mxu0 0.0
    %2625 = vmatpush1.msra.mxu0 0.0
    %2626 = vmatprep.subr.mxu0 0.0
    %2627 = vmatpush1.msra.mxu0 0.0
    %2628 = vmatprep.subr.mxu0 0.0
    %2629 = vmatpush1.msra.mxu0 0.0
    %2630 = vmatprep.subr.mxu0 0.0
    %2631 = vmatpush1.msra.mxu0 0.0
    %2632 = vmatprep.subr.mxu0 0.0
    %2633 = vmatpush1.msra.mxu0 0.0
    %2634 = vmatprep.subr.mxu0 0.0
    %2635 = vmatpush1.msra.mxu0 0.0
    %2636 = vmatprep.subr.mxu0 0.0
    %2637 = vmatpush1.msra.mxu0 0.0
    %2638 = vmatprep.subr.mxu0 0.0
    %2639 = vmatpush1.msra.mxu0 0.0
    %2640 = vmatprep.subr.mxu0 0.0
    %2641 = vmatpush1.msra.mxu0 0.0
    %2642 = vmatprep.subr.mxu0 0.0
    %2643 = vmatpush1.msra.mxu0 0.0
    %2644 = vmatprep.subr.mxu0 0.0
    %2645 = vmatpush1.msra.mxu0 0.0
    %2646 = vmatprep.subr.mxu0 0.0
    %2647 = vmatpush1.msra.mxu0 0.0
    %2648 = vmatprep.subr.mxu0 0.0
    %2649 = vmatpush1.msra.mxu0 0.0
    %2650 = vmatprep.subr.mxu0 0.0
    %2651 = vmatpush1.msra.mxu0 0.0
    %2652 = vmatprep.subr.mxu0 0.0
    %2653 = vmatpush1.msra.mxu0 0.0
    %2654 = vmatprep.subr.mxu0 0.0
    %2655 = vmatpush1.msra.mxu0 0.0
    %2656 = vmatprep.subr.mxu0 0.0
    %2657 = vmatpush1.msra.mxu0 0.0
    %2658 = vmatprep.subr.mxu0 0.0
    %2659 = vmatpush1.msra.mxu0 0.0
    %2660 = vmatprep.subr.mxu0 0.0
    %2661 = vmatpush1.msra.mxu0 0.0
    %2662 = vmatprep.subr.mxu0 0.0
    %2663 = vmatpush1.msra.mxu0 0.0
    %2664 = vmatprep.subr.mxu0 0.0
    %2665 = vmatpush1.msra.mxu0 0.0
    %2666 = vmatprep.subr.mxu0 0.0
    %2667 = vmatpush1.msra.mxu0 0.0
    %2668 = vmatprep.mubr.f32.mxu0 0.0
    %2669 = vmatmul.mubr.f32.gmra.mrb[0].mxu0 %v2602
    %v2670 = vpop.f32.mrb[0].mxu0
    %v2671 = vadd.f32 0.0, %v2670
    %v2672 = vpop.f32.mrb[0].mxu0
    %2673 = vdwg.mxu0
    %v2675 = vsel %vm378, %v2600, 0
    %2677 = vmatprep.subr.mxu0 0.0
    %2678 = vmatpush1.msra.mxu0 %v2335
    %2679 = vmatprep.subr.mxu0 0.0
    %2680 = vmatpush1.msra.mxu0 0.0
    %2681 = vmatprep.subr.mxu0 0.0
    %2682 = vmatpush1.msra.mxu0 0.0
    %2683 = vmatprep.subr.mxu0 0.0
    %2684 = vmatpush1.msra.mxu0 0.0
    %2685 = vmatprep.subr.mxu0 0.0
    %2686 = vmatpush1.msra.mxu0 0.0
    %2687 = vmatprep.subr.mxu0 0.0
    %2688 = vmatpush1.msra.mxu0 0.0
    %2689 = vmatprep.subr.mxu0 0.0
    %2690 = vmatpush1.msra.mxu0 0.0
    %2691 = vmatprep.subr.mxu0 0.0
    %2692 = vmatpush1.msra.mxu0 0.0
    %2693 = vmatprep.subr.mxu0 0.0
    %2694 = vmatpush1.msra.mxu0 0.0
    %2695 = vmatprep.subr.mxu0 0.0
    %2696 = vmatpush1.msra.mxu0 0.0
    %2697 = vmatprep.subr.mxu0 0.0
    %2698 = vmatpush1.msra.mxu0 0.0
    %2699 = vmatprep.subr.mxu0 0.0
    %2700 = vmatpush1.msra.mxu0 0.0
    %2701 = vmatprep.subr.mxu0 0.0
    %2702 = vmatpush1.msra.mxu0 0.0
    %2703 = vmatprep.subr.mxu0 0.0
    %2704 = vmatpush1.msra.mxu0 0.0
    %2705 = vmatprep.subr.mxu0 0.0
    %2706 = vmatpush1.msra.mxu0 0.0
    %2707 = vmatprep.subr.mxu0 0.0
    %2708 = vmatpush1.msra.mxu0 0.0
    %2709 = vmatprep.subr.mxu0 0.0
    %2710 = vmatpush1.msra.mxu0 0.0
    %2711 = vmatprep.subr.mxu0 0.0
    %2712 = vmatpush1.msra.mxu0 0.0
    %2713 = vmatprep.subr.mxu0 0.0
    %2714 = vmatpush1.msra.mxu0 0.0
    %2715 = vmatprep.subr.mxu0 0.0
    %2716 = vmatpush1.msra.mxu0 0.0
    %2717 = vmatprep.subr.mxu0 0.0
    %2718 = vmatpush1.msra.mxu0 0.0
    %2719 = vmatprep.subr.mxu0 0.0
    %2720 = vmatpush1.msra.mxu0 0.0
    %2721 = vmatprep.subr.mxu0 0.0
    %2722 = vmatpush1.msra.mxu0 0.0
    %2723 = vmatprep.subr.mxu0 0.0
    %2724 = vmatpush1.msra.mxu0 0.0
    %2725 = vmatprep.subr.mxu0 0.0
    %2726 = vmatpush1.msra.mxu0 0.0
    %2727 = vmatprep.subr.mxu0 0.0
    %2728 = vmatpush1.msra.mxu0 0.0
    %2729 = vmatprep.subr.mxu0 0.0
    %2730 = vmatpush1.msra.mxu0 0.0
    %2731 = vmatprep.subr.mxu0 0.0
    %2732 = vmatpush1.msra.mxu0 0.0
    %2733 = vmatprep.subr.mxu0 0.0
    %2734 = vmatpush1.msra.mxu0 0.0
    %2735 = vmatprep.subr.mxu0 0.0
    %2736 = vmatpush1.msra.mxu0 0.0
    %2737 = vmatprep.subr.mxu0 0.0
    %2738 = vmatpush1.msra.mxu0 0.0
    %2739 = vmatprep.subr.mxu0 0.0
    %2740 = vmatpush1.msra.mxu0 0.0
    %2741 = vmatprep.mubr.f32.mxu0 0.0
    %2742 = vmatmul.mubr.f32.gmra.mrb[0].mxu0 %v2675
    %v2743 = vpop.f32.mrb[0].mxu0
    %v2744 = vadd.f32 0.0, %v2743
    %v2745 = vpop.f32.mrb[0].mxu0
    %2746 = vdwg.mxu0
    %s2747 = scalar_lea.vmem [#allocation2], 288
    %v2748 = vld [vmem:[%s2747] sm:$0xff]
    %v2749 = vld [vmem:[%s2747 + $0x8] sm:$0xff]
    %v2750 = vld [vmem:[%s2747 + $0x10] sm:$0xff]
    %v2751 = vld [vmem:[%s2747 + $0x18] sm:$0xff]
    %s2752 = scalar_lea.vmem [#allocation2], 416
    %v2753 = vld [vmem:[%s2752] sm:$0xff]
    %v2754 = vld [vmem:[%s2752 + $0x8] sm:$0xff]
    %v2755 = vld [vmem:[%s2752 + $0x10] sm:$0xff]
    %v2756 = vld [vmem:[%s2752 + $0x18] sm:$0xff]
    %2757 = vmatprep.subr.mxu0 0.0
    %2758 = vmatpush1.msra.mxu0 %v2748
    %2759 = vmatprep.subr.mxu0 0.0
    %2760 = vmatpush1.msra.mxu0 %v2749
    %2761 = vmatprep.subr.mxu0 0.0
    %2762 = vmatpush1.msra.mxu0 %v2750
    %2763 = vmatprep.subr.mxu0 0.0
    %2764 = vmatpush1.msra.mxu0 %v2751
    %2765 = vmatprep.subr.mxu0 0.0
    %2766 = vmatpush1.msra.mxu0 0.0
    %2767 = vmatprep.subr.mxu0 0.0
    %2768 = vmatpush1.msra.mxu0 0.0
    %2769 = vmatprep.subr.mxu0 0.0
    %2770 = vmatpush1.msra.mxu0 0.0
    %2771 = vmatprep.subr.mxu0 0.0
    %2772 = vmatpush1.msra.mxu0 0.0
    %2773 = vmatprep.subr.mxu0 0.0
    %2774 = vmatpush1.msra.mxu0 0.0
    %2775 = vmatprep.subr.mxu0 0.0
    %2776 = vmatpush1.msra.mxu0 0.0
    %2777 = vmatprep.subr.mxu0 0.0
    %2778 = vmatpush1.msra.mxu0 0.0
    %2779 = vmatprep.subr.mxu0 0.0
    %2780 = vmatpush1.msra.mxu0 0.0
    %2781 = vmatprep.subr.mxu0 0.0
    %2782 = vmatpush1.msra.mxu0 0.0
    %2783 = vmatprep.subr.mxu0 0.0
    %2784 = vmatpush1.msra.mxu0 0.0
    %2785 = vmatprep.subr.mxu0 0.0
    %2786 = vmatpush1.msra.mxu0 0.0
    %2787 = vmatprep.subr.mxu0 0.0
    %2788 = vmatpush1.msra.mxu0 0.0
    %2789 = vmatprep.subr.mxu0 0.0
    %2790 = vmatpush1.msra.mxu0 0.0
    %2791 = vmatprep.subr.mxu0 0.0
    %2792 = vmatpush1.msra.mxu0 0.0
    %2793 = vmatprep.subr.mxu0 0.0
    %2794 = vmatpush1.msra.mxu0 0.0
    %2795 = vmatprep.subr.mxu0 0.0
    %2796 = vmatpush1.msra.mxu0 0.0
    %2797 = vmatprep.subr.mxu0 0.0
    %2798 = vmatpush1.msra.mxu0 0.0
    %2799 = vmatprep.subr.mxu0 0.0
    %2800 = vmatpush1.msra.mxu0 0.0
    %2801 = vmatprep.subr.mxu0 0.0
    %2802 = vmatpush1.msra.mxu0 0.0
    %2803 = vmatprep.subr.mxu0 0.0
    %2804 = vmatpush1.msra.mxu0 0.0
    %2805 = vmatprep.subr.mxu0 0.0
    %2806 = vmatpush1.msra.mxu0 0.0
    %2807 = vmatprep.subr.mxu0 0.0
    %2808 = vmatpush1.msra.mxu0 0.0
    %2809 = vmatprep.subr.mxu0 0.0
    %2810 = vmatpush1.msra.mxu0 0.0
    %2811 = vmatprep.subr.mxu0 0.0
    %2812 = vmatpush1.msra.mxu0 0.0
    %2813 = vmatprep.subr.mxu0 0.0
    %2814 = vmatpush1.msra.mxu0 0.0
    %2815 = vmatprep.subr.mxu0 0.0
    %2816 = vmatpush1.msra.mxu0 0.0
    %2817 = vmatprep.subr.mxu0 0.0
    %2818 = vmatpush1.msra.mxu0 0.0
    %2819 = vmatprep.subr.mxu0 0.0
    %2820 = vmatpush1.msra.mxu0 0.0
    %2821 = vmatprep.mubr.f32.mxu0 0.0
    %2822 = vmatmul.mubr.f32.gmra.mrb[0].mxu0 %v2353
    %v2823 = vpop.f32.mrb[0].mxu0
    %v2824 = vadd.f32 0.0, %v2823
    %v2825 = vpop.f32.mrb[0].mxu0
    %2826 = vmatprep.mubr.f32.mxu0 0.0
    %2827 = vmatmul.mubr.f32.gmra.mrb[0].mxu0 %v2356
    %v2828 = vpop.f32.mrb[0].mxu0
    %v2829 = vadd.f32 0.0, %v2828
    %v2830 = vpop.f32.mrb[0].mxu0
    %2831 = vdwg.mxu0
    %v2833 = vsel %vm150, %v2824, 0
    %2835 = vmatprep.subr.mxu0 0.0
    %2836 = vmatpush1.xpose.msra.mxu0 %v2353
    %2837 = vmatprep.subr.mxu0 0.0
    %2838 = vmatpush1.xpose.msra.mxu0 0.0
    %2839 = vmatprep.subr.mxu0 0.0
    %2840 = vmatpush1.xpose.msra.mxu0 0.0
    %2841 = vmatprep.subr.mxu0 0.0
    %2842 = vmatpush1.xpose.msra.mxu0 0.0
    %2843 = vmatprep.subr.mxu0 0.0
    %2844 = vmatpush1.xpose.msra.mxu0 0.0
    %2845 = vmatprep.subr.mxu0 0.0
    %2846 = vmatpush1.xpose.msra.mxu0 0.0
    %2847 = vmatprep.subr.mxu0 0.0
    %2848 = vmatpush1.xpose.msra.mxu0 0.0
    %2849 = vmatprep.subr.mxu0 0.0
    %2850 = vmatpush1.xpose.msra.mxu0 0.0
    %2851 = vmatprep.subr.mxu0 0.0
    %2852 = vmatpush1.xpose.msra.mxu0 0.0
    %2853 = vmatprep.subr.mxu0 0.0
    %2854 = vmatpush1.xpose.msra.mxu0 0.0
    %2855 = vmatprep.subr.mxu0 0.0
    %2856 = vmatpush1.xpose.msra.mxu0 0.0
    %2857 = vmatprep.subr.mxu0 0.0
    %2858 = vmatpush1.xpose.msra.mxu0 0.0
    %2859 = vmatprep.subr.mxu0 0.0
    %2860 = vmatpush1.xpose.msra.mxu0 0.0
    %2861 = vmatprep.subr.mxu0 0.0
    %2862 = vmatpush1.xpose.msra.mxu0 0.0
    %2863 = vmatprep.subr.mxu0 0.0
    %2864 = vmatpush1.xpose.msra.mxu0 0.0
    %2865 = vmatprep.subr.mxu0 0.0
    %2866 = vmatpush1.xpose.msra.mxu0 0.0
    %2867 = vmatprep.subr.mxu0 0.0
    %2868 = vmatpush1.xpose.msra.mxu0 0.0
    %2869 = vmatprep.subr.mxu0 0.0
    %2870 = vmatpush1.xpose.msra.mxu0 0.0
    %2871 = vmatprep.subr.mxu0 0.0
    %2872 = vmatpush1.xpose.msra.mxu0 0.0
    %2873 = vmatprep.subr.mxu0 0.0
    %2874 = vmatpush1.xpose.msra.mxu0 0.0
    %2875 = vmatprep.subr.mxu0 0.0
    %2876 = vmatpush1.xpose.msra.mxu0 0.0
    %2877 = vmatprep.subr.mxu0 0.0
    %2878 = vmatpush1.xpose.msra.mxu0 0.0
    %2879 = vmatprep.subr.mxu0 0.0
    %2880 = vmatpush1.xpose.msra.mxu0 0.0
    %2881 = vmatprep.subr.mxu0 0.0
    %2882 = vmatpush1.xpose.msra.mxu0 0.0
    %2883 = vmatprep.subr.mxu0 0.0
    %2884 = vmatpush1.xpose.msra.mxu0 0.0
    %2885 = vmatprep.subr.mxu0 0.0
    %2886 = vmatpush1.xpose.msra.mxu0 0.0
    %2887 = vmatprep.subr.mxu0 0.0
    %2888 = vmatpush1.xpose.msra.mxu0 0.0
    %2889 = vmatprep.subr.mxu0 0.0
    %2890 = vmatpush1.xpose.msra.mxu0 0.0
    %2891 = vmatprep.subr.mxu0 0.0
    %2892 = vmatpush1.xpose.msra.mxu0 0.0
    %2893 = vmatprep.subr.mxu0 0.0
    %2894 = vmatpush1.xpose.msra.mxu0 0.0
    %2895 = vmatprep.subr.mxu0 0.0
    %2896 = vmatpush1.xpose.msra.mxu0 0.0
    %2897 = vmatprep.subr.mxu0 0.0
    %2898 = vmatpush1.xpose.msra.mxu0 0.0
    %2899 = vmatprep.mubr.f32.mxu0 0.0
    %2900 = vmatmul.mubr.f32.gmra.mrb[0].mxu0 %v2833
    %v2901 = vpop.f32.mrb[0].mxu0
    %v2902 = vadd.f32 0.0, %v2901
    %v2903 = vpop.f32.mrb[0].mxu0
    %2904 = vdwg.mxu0
    %v2906 = vsel %vm150, %v2829, 0
    %2908 = vmatprep.subr.mxu0 0.0
    %2909 = vmatpush1.xpose.msra.mxu0 %v2356
    %2910 = vmatprep.subr.mxu0 0.0
    %2911 = vmatpush1.xpose.msra.mxu0 0.0
    %2912 = vmatprep.subr.mxu0 0.0
    %2913 = vmatpush1.xpose.msra.mxu0 0.0
    %2914 = vmatprep.subr.mxu0 0.0
    %2915 = vmatpush1.xpose.msra.mxu0 0.0
    %2916 = vmatprep.subr.mxu0 0.0
    %2917 = vmatpush1.xpose.msra.mxu0 0.0
    %2918 = vmatprep.subr.mxu0 0.0
    %2919 = vmatpush1.xpose.msra.mxu0 0.0
    %2920 = vmatprep.subr.mxu0 0.0
    %2921 = vmatpush1.xpose.msra.mxu0 0.0
    %2922 = vmatprep.subr.mxu0 0.0
    %2923 = vmatpush1.xpose.msra.mxu0 0.0
    %2924 = vmatprep.subr.mxu0 0.0
    %2925 = vmatpush1.xpose.msra.mxu0 0.0
    %2926 = vmatprep.subr.mxu0 0.0
    %2927 = vmatpush1.xpose.msra.mxu0 0.0
    %2928 = vmatprep.subr.mxu0 0.0
    %2929 = vmatpush1.xpose.msra.mxu0 0.0
    %2930 = vmatprep.subr.mxu0 0.0
    %2931 = vmatpush1.xpose.msra.mxu0 0.0
    %2932 = vmatprep.subr.mxu0 0.0
    %2933 = vmatpush1.xpose.msra.mxu0 0.0
    %2934 = vmatprep.subr.mxu0 0.0
    %2935 = vmatpush1.xpose.msra.mxu0 0.0
    %2936 = vmatprep.subr.mxu0 0.0
    %2937 = vmatpush1.xpose.msra.mxu0 0.0
    %2938 = vmatprep.subr.mxu0 0.0
    %2939 = vmatpush1.xpose.msra.mxu0 0.0
    %2940 = vmatprep.subr.mxu0 0.0
    %2941 = vmatpush1.xpose.msra.mxu0 0.0
    %2942 = vmatprep.subr.mxu0 0.0
    %2943 = vmatpush1.xpose.msra.mxu0 0.0
    %2944 = vmatprep.subr.mxu0 0.0
    %2945 = vmatpush1.xpose.msra.mxu0 0.0
    %2946 = vmatprep.subr.mxu0 0.0
    %2947 = vmatpush1.xpose.msra.mxu0 0.0
    %2948 = vmatprep.subr.mxu0 0.0
    %2949 = vmatpush1.xpose.msra.mxu0 0.0
    %2950 = vmatprep.subr.mxu0 0.0
    %2951 = vmatpush1.xpose.msra.mxu0 0.0
    %2952 = vmatprep.subr.mxu0 0.0
    %2953 = vmatpush1.xpose.msra.mxu0 0.0
    %2954 = vmatprep.subr.mxu0 0.0
    %2955 = vmatpush1.xpose.msra.mxu0 0.0
    %2956 = vmatprep.subr.mxu0 0.0
    %2957 = vmatpush1.xpose.msra.mxu0 0.0
    %2958 = vmatprep.subr.mxu0 0.0
    %2959 = vmatpush1.xpose.msra.mxu0 0.0
    %2960 = vmatprep.subr.mxu0 0.0
    %2961 = vmatpush1.xpose.msra.mxu0 0.0
    %2962 = vmatprep.subr.mxu0 0.0
    %2963 = vmatpush1.xpose.msra.mxu0 0.0
    %2964 = vmatprep.subr.mxu0 0.0
    %2965 = vmatpush1.xpose.msra.mxu0 0.0
    %2966 = vmatprep.subr.mxu0 0.0
    %2967 = vmatpush1.xpose.msra.mxu0 0.0
    %2968 = vmatprep.subr.mxu0 0.0
    %2969 = vmatpush1.xpose.msra.mxu0 0.0
    %2970 = vmatprep.subr.mxu0 0.0
    %2971 = vmatpush1.xpose.msra.mxu0 0.0
    %2972 = vmatprep.mubr.f32.mxu0 0.0
    %2973 = vmatmul.mubr.f32.gmra.mrb[0].mxu0 %v2906
    %v2974 = vpop.f32.mrb[0].mxu0
    %v2975 = vadd.f32 0.0, %v2974
    %v2976 = vpop.f32.mrb[0].mxu0
    %2977 = vdwg.mxu0
    %v2978 = vsel %vm378, %v2902, -inf
    %2979 = vmax.xlane.f32.xlu0 %v2978
    %v2980 = vpop.xlane.xlu0 %2979
    %v2981 = vsel %vm378, %v2975, -inf
    %2982 = vmax.xlane.f32.xlu0 %v2981
    %v2983 = vpop.xlane.xlu0 %2982
    %v2984 = vsub.f32 %v2902, %v2980
    %v2985 = vsub.f32 %v2975, %v2983
    %v2986 = vmul.f32 %v2984, 1.442695
    %v2987 = vpow.pop %v2986
    %v2988 = vmul.f32 %v2985, 1.442695
    %v2989 = vpow.pop %v2988
    %v2990 = vsel %vm378, %v2987, 0.0
    %2991 = vadd.xlane.f32.xlu0 %v2990
    %v2992 = vpop.xlane.xlu0 %2991
    %v2993 = vsel %vm378, %v2989, 0.0
    %2994 = vadd.xlane.f32.xlu0 %v2993
    %v2995 = vpop.xlane.xlu0 %2994
    %v2996 = vrcp.pop %v2992
    %v2997 = vrcp.pop %v2995
    %v2998 = vmul.f32 %v2987, %v2996
    %v2999 = vmul.f32 %v2989, %v2997
    %v3001 = vsel %vm378, %v2998, 0
    %3003 = vmatprep.subr.mxu0 0.0
    %3004 = vmatpush1.msra.mxu0 %v2334
    %3005 = vmatprep.subr.mxu0 0.0
    %3006 = vmatpush1.msra.mxu0 0.0
    %3007 = vmatprep.subr.mxu0 0.0
    %3008 = vmatpush1.msra.mxu0 0.0
    %3009 = vmatprep.subr.mxu0 0.0
    %3010 = vmatpush1.msra.mxu0 0.0
    %3011 = vmatprep.subr.mxu0 0.0
    %3012 = vmatpush1.msra.mxu0 0.0
    %3013 = vmatprep.subr.mxu0 0.0
    %3014 = vmatpush1.msra.mxu0 0.0
    %3015 = vmatprep.subr.mxu0 0.0
    %3016 = vmatpush1.msra.mxu0 0.0
    %3017 = vmatprep.subr.mxu0 0.0
    %3018 = vmatpush1.msra.mxu0 0.0
    %3019 = vmatprep.subr.mxu0 0.0
    %3020 = vmatpush1.msra.mxu0 0.0
    %3021 = vmatprep.subr.mxu0 0.0
    %3022 = vmatpush1.msra.mxu0 0.0
    %3023 = vmatprep.subr.mxu0 0.0
    %3024 = vmatpush1.msra.mxu0 0.0
    %3025 = vmatprep.subr.mxu0 0.0
    %3026 = vmatpush1.msra.mxu0 0.0
    %3027 = vmatprep.subr.mxu0 0.0
    %3028 = vmatpush1.msra.mxu0 0.0
    %3029 = vmatprep.subr.mxu0 0.0
    %3030 = vmatpush1.msra.mxu0 0.0
    %3031 = vmatprep.subr.mxu0 0.0
    %3032 = vmatpush1.msra.mxu0 0.0
    %3033 = vmatprep.subr.mxu0 0.0
    %3034 = vmatpush1.msra.mxu0 0.0
    %3035 = vmatprep.subr.mxu0 0.0
    %3036 = vmatpush1.msra.mxu0 0.0
    %3037 = vmatprep.subr.mxu0 0.0
    %3038 = vmatpush1.msra.mxu0 0.0
    %3039 = vmatprep.subr.mxu0 0.0
    %3040 = vmatpush1.msra.mxu0 0.0
    %3041 = vmatprep.subr.mxu0 0.0
    %3042 = vmatpush1.msra.mxu0 0.0
    %3043 = vmatprep.subr.mxu0 0.0
    %3044 = vmatpush1.msra.mxu0 0.0
    %3045 = vmatprep.subr.mxu0 0.0
    %3046 = vmatpush1.msra.mxu0 0.0
    %3047 = vmatprep.subr.mxu0 0.0
    %3048 = vmatpush1.msra.mxu0 0.0
    %3049 = vmatprep.subr.mxu0 0.0
    %3050 = vmatpush1.msra.mxu0 0.0
    %3051 = vmatprep.subr.mxu0 0.0
    %3052 = vmatpush1.msra.mxu0 0.0
    %3053 = vmatprep.subr.mxu0 0.0
    %3054 = vmatpush1.msra.mxu0 0.0
    %3055 = vmatprep.subr.mxu0 0.0
    %3056 = vmatpush1.msra.mxu0 0.0
    %3057 = vmatprep.subr.mxu0 0.0
    %3058 = vmatpush1.msra.mxu0 0.0
    %3059 = vmatprep.subr.mxu0 0.0
    %3060 = vmatpush1.msra.mxu0 0.0
    %3061 = vmatprep.subr.mxu0 0.0
    %3062 = vmatpush1.msra.mxu0 0.0
    %3063 = vmatprep.subr.mxu0 0.0
    %3064 = vmatpush1.msra.mxu0 0.0
    %3065 = vmatprep.subr.mxu0 0.0
    %3066 = vmatpush1.msra.mxu0 0.0
    %3067 = vmatprep.mubr.f32.mxu0 0.0
    %3068 = vmatmul.mubr.f32.gmra.mrb[0].mxu0 %v3001
    %v3069 = vpop.f32.mrb[0].mxu0
    %v3070 = vadd.f32 0.0, %v3069
    %v3071 = vpop.f32.mrb[0].mxu0
    %3072 = vdwg.mxu0
    %v3074 = vsel %vm378, %v2999, 0
    %3076 = vmatprep.subr.mxu0 0.0
    %3077 = vmatpush1.msra.mxu0 %v2335
    %3078 = vmatprep.subr.mxu0 0.0
    %3079 = vmatpush1.msra.mxu0 0.0
    %3080 = vmatprep.subr.mxu0 0.0
    %3081 = vmatpush1.msra.mxu0 0.0
    %3082 = vmatprep.subr.mxu0 0.0
    %3083 = vmatpush1.msra.mxu0 0.0
    %3084 = vmatprep.subr.mxu0 0.0
    %3085 = vmatpush1.msra.mxu0 0.0
    %3086 = vmatprep.subr.mxu0 0.0
    %3087 = vmatpush1.msra.mxu0 0.0
    %3088 = vmatprep.subr.mxu0 0.0
    %3089 = vmatpush1.msra.mxu0 0.0
    %3090 = vmatprep.subr.mxu0 0.0
    %3091 = vmatpush1.msra.mxu0 0.0
    %3092 = vmatprep.subr.mxu0 0.0
    %3093 = vmatpush1.msra.mxu0 0.0
    %3094 = vmatprep.subr.mxu0 0.0
    %3095 = vmatpush1.msra.mxu0 0.0
    %3096 = vmatprep.subr.mxu0 0.0
    %3097 = vmatpush1.msra.mxu0 0.0
    %3098 = vmatprep.subr.mxu0 0.0
    %3099 = vmatpush1.msra.mxu0 0.0
    %3100 = vmatprep.subr.mxu0 0.0
    %3101 = vmatpush1.msra.mxu0 0.0
    %3102 = vmatprep.subr.mxu0 0.0
    %3103 = vmatpush1.msra.mxu0 0.0
    %3104 = vmatprep.subr.mxu0 0.0
    %3105 = vmatpush1.msra.mxu0 0.0
    %3106 = vmatprep.subr.mxu0 0.0
    %3107 = vmatpush1.msra.mxu0 0.0
    %3108 = vmatprep.subr.mxu0 0.0
    %3109 = vmatpush1.msra.mxu0 0.0
    %3110 = vmatprep.subr.mxu0 0.0
    %3111 = vmatpush1.msra.mxu0 0.0
    %3112 = vmatprep.subr.mxu0 0.0
    %3113 = vmatpush1.msra.mxu0 0.0
    %3114 = vmatprep.subr.mxu0 0.0
    %3115 = vmatpush1.msra.mxu0 0.0
    %3116 = vmatprep.subr.mxu0 0.0
    %3117 = vmatpush1.msra.mxu0 0.0
    %3118 = vmatprep.subr.mxu0 0.0
    %3119 = vmatpush1.msra.mxu0 0.0
    %3120 = vmatprep.subr.mxu0 0.0
    %3121 = vmatpush1.msra.mxu0 0.0
    %3122 = vmatprep.subr.mxu0 0.0
    %3123 = vmatpush1.msra.mxu0 0.0
    %3124 = vmatprep.subr.mxu0 0.0
    %3125 = vmatpush1.msra.mxu0 0.0
    %3126 = vmatprep.subr.mxu0 0.0
    %3127 = vmatpush1.msra.mxu0 0.0
    %3128 = vmatprep.subr.mxu0 0.0
    %3129 = vmatpush1.msra.mxu0 0.0
    %3130 = vmatprep.subr.mxu0 0.0
    %3131 = vmatpush1.msra.mxu0 0.0
    %3132 = vmatprep.subr.mxu0 0.0
    %3133 = vmatpush1.msra.mxu0 0.0
    %3134 = vmatprep.subr.mxu0 0.0
    %3135 = vmatpush1.msra.mxu0 0.0
    %3136 = vmatprep.subr.mxu0 0.0
    %3137 = vmatpush1.msra.mxu0 0.0
    %3138 = vmatprep.subr.mxu0 0.0
    %3139 = vmatpush1.msra.mxu0 0.0
    %3140 = vmatprep.mubr.f32.mxu0 0.0
    %3141 = vmatmul.mubr.f32.gmra.mrb[0].mxu0 %v3074
    %v3142 = vpop.f32.mrb[0].mxu0
    %v3143 = vadd.f32 0.0, %v3142
    %v3144 = vpop.f32.mrb[0].mxu0
    %3145 = vdwg.mxu0
    %v3147 = vsel %vm150, %v3070, 0
    %v3150 = vsel %vm150, %v3143, 0
    %3152 = vmatprep.subr.mxu0 0.0
    %3153 = vmatpush1.msra.mxu0 %v2753
    %3154 = vmatprep.subr.mxu0 0.0
    %3155 = vmatpush1.msra.mxu0 %v2754
    %3156 = vmatprep.subr.mxu0 0.0
    %3157 = vmatpush1.msra.mxu0 %v2755
    %3158 = vmatprep.subr.mxu0 0.0
    %3159 = vmatpush1.msra.mxu0 %v2756
    %3160 = vmatprep.subr.mxu0 0.0
    %3161 = vmatpush1.msra.mxu0 0.0
    %3162 = vmatprep.subr.mxu0 0.0
    %3163 = vmatpush1.msra.mxu0 0.0
    %3164 = vmatprep.subr.mxu0 0.0
    %3165 = vmatpush1.msra.mxu0 0.0
    %3166 = vmatprep.subr.mxu0 0.0
    %3167 = vmatpush1.msra.mxu0 0.0
    %3168 = vmatprep.subr.mxu0 0.0
    %3169 = vmatpush1.msra.mxu0 0.0
    %3170 = vmatprep.subr.mxu0 0.0
    %3171 = vmatpush1.msra.mxu0 0.0
    %3172 = vmatprep.subr.mxu0 0.0
    %3173 = vmatpush1.msra.mxu0 0.0
    %3174 = vmatprep.subr.mxu0 0.0
    %3175 = vmatpush1.msra.mxu0 0.0
    %3176 = vmatprep.subr.mxu0 0.0
    %3177 = vmatpush1.msra.mxu0 0.0
    %3178 = vmatprep.subr.mxu0 0.0
    %3179 = vmatpush1.msra.mxu0 0.0
    %3180 = vmatprep.subr.mxu0 0.0
    %3181 = vmatpush1.msra.mxu0 0.0
    %3182 = vmatprep.subr.mxu0 0.0
    %3183 = vmatpush1.msra.mxu0 0.0
    %3184 = vmatprep.subr.mxu0 0.0
    %3185 = vmatpush1.msra.mxu0 0.0
    %3186 = vmatprep.subr.mxu0 0.0
    %3187 = vmatpush1.msra.mxu0 0.0
    %3188 = vmatprep.subr.mxu0 0.0
    %3189 = vmatpush1.msra.mxu0 0.0
    %3190 = vmatprep.subr.mxu0 0.0
    %3191 = vmatpush1.msra.mxu0 0.0
    %3192 = vmatprep.subr.mxu0 0.0
    %3193 = vmatpush1.msra.mxu0 0.0
    %3194 = vmatprep.subr.mxu0 0.0
    %3195 = vmatpush1.msra.mxu0 0.0
    %3196 = vmatprep.subr.mxu0 0.0
    %3197 = vmatpush1.msra.mxu0 0.0
    %3198 = vmatprep.subr.mxu0 0.0
    %3199 = vmatpush1.msra.mxu0 0.0
    %3200 = vmatprep.subr.mxu0 0.0
    %3201 = vmatpush1.msra.mxu0 0.0
    %3202 = vmatprep.subr.mxu0 0.0
    %3203 = vmatpush1.msra.mxu0 0.0
    %3204 = vmatprep.subr.mxu0 0.0
    %3205 = vmatpush1.msra.mxu0 0.0
    %3206 = vmatprep.subr.mxu0 0.0
    %3207 = vmatpush1.msra.mxu0 0.0
    %3208 = vmatprep.subr.mxu0 0.0
    %3209 = vmatpush1.msra.mxu0 0.0
    %3210 = vmatprep.subr.mxu0 0.0
    %3211 = vmatpush1.msra.mxu0 0.0
    %3212 = vmatprep.subr.mxu0 0.0
    %3213 = vmatpush1.msra.mxu0 0.0
    %3214 = vmatprep.subr.mxu0 0.0
    %3215 = vmatpush1.msra.mxu0 0.0
    %3216 = vmatprep.mubr.f32.mxu0 0.0
    %3217 = vmatmul.mubr.f32.gmra.mrb[0].mxu0 %v3147
    %v3218 = vpop.f32.mrb[0].mxu0
    %v3219 = vadd.f32 0.0, %v3218
    %v3220 = vpop.f32.mrb[0].mxu0
    %3221 = vmatprep.mubr.f32.mxu0 0.0
    %3222 = vmatmul.mubr.f32.gmra.mrb[0].mxu0 %v3150
    %v3223 = vpop.f32.mrb[0].mxu0
    %v3224 = vadd.f32 0.0, %v3223
    %v3225 = vpop.f32.mrb[0].mxu0
    %3226 = vdwg.mxu0
    %v3228 = vsel %vm150, %v2671, 0
    %v3231 = vsel %vm150, %v2744, 0
    %3233 = vmatprep.subr.mxu0 0.0
    %3234 = vmatpush1.msra.mxu0 %v2348
    %3235 = vmatprep.subr.mxu0 0.0
    %3236 = vmatpush1.msra.mxu0 %v2349
    %3237 = vmatprep.subr.mxu0 0.0
    %3238 = vmatpush1.msra.mxu0 %v2350
    %3239 = vmatprep.subr.mxu0 0.0
    %3240 = vmatpush1.msra.mxu0 %v2351
    %3241 = vmatprep.subr.mxu0 0.0
    %3242 = vmatpush1.msra.mxu0 0.0
    %3243 = vmatprep.subr.mxu0 0.0
    %3244 = vmatpush1.msra.mxu0 0.0
    %3245 = vmatprep.subr.mxu0 0.0
    %3246 = vmatpush1.msra.mxu0 0.0
    %3247 = vmatprep.subr.mxu0 0.0
    %3248 = vmatpush1.msra.mxu0 0.0
    %3249 = vmatprep.subr.mxu0 0.0
    %3250 = vmatpush1.msra.mxu0 0.0
    %3251 = vmatprep.subr.mxu0 0.0
    %3252 = vmatpush1.msra.mxu0 0.0
    %3253 = vmatprep.subr.mxu0 0.0
    %3254 = vmatpush1.msra.mxu0 0.0
    %3255 = vmatprep.subr.mxu0 0.0
    %3256 = vmatpush1.msra.mxu0 0.0
    %3257 = vmatprep.subr.mxu0 0.0
    %3258 = vmatpush1.msra.mxu0 0.0
    %3259 = vmatprep.subr.mxu0 0.0
    %3260 = vmatpush1.msra.mxu0 0.0
    %3261 = vmatprep.subr.mxu0 0.0
    %3262 = vmatpush1.msra.mxu0 0.0
    %3263 = vmatprep.subr.mxu0 0.0
    %3264 = vmatpush1.msra.mxu0 0.0
    %3265 = vmatprep.subr.mxu0 0.0
    %3266 = vmatpush1.msra.mxu0 0.0
    %3267 = vmatprep.subr.mxu0 0.0
    %3268 = vmatpush1.msra.mxu0 0.0
    %3269 = vmatprep.subr.mxu0 0.0
    %3270 = vmatpush1.msra.mxu0 0.0
    %3271 = vmatprep.subr.mxu0 0.0
    %3272 = vmatpush1.msra.mxu0 0.0
    %3273 = vmatprep.subr.mxu0 0.0
    %3274 = vmatpush1.msra.mxu0 0.0
    %3275 = vmatprep.subr.mxu0 0.0
    %3276 = vmatpush1.msra.mxu0 0.0
    %3277 = vmatprep.subr.mxu0 0.0
    %3278 = vmatpush1.msra.mxu0 0.0
    %3279 = vmatprep.subr.mxu0 0.0
    %3280 = vmatpush1.msra.mxu0 0.0
    %3281 = vmatprep.subr.mxu0 0.0
    %3282 = vmatpush1.msra.mxu0 0.0
    %3283 = vmatprep.subr.mxu0 0.0
    %3284 = vmatpush1.msra.mxu0 0.0
    %3285 = vmatprep.subr.mxu0 0.0
    %3286 = vmatpush1.msra.mxu0 0.0
    %3287 = vmatprep.subr.mxu0 0.0
    %3288 = vmatpush1.msra.mxu0 0.0
    %3289 = vmatprep.subr.mxu0 0.0
    %3290 = vmatpush1.msra.mxu0 0.0
    %3291 = vmatprep.subr.mxu0 0.0
    %3292 = vmatpush1.msra.mxu0 0.0
    %3293 = vmatprep.subr.mxu0 0.0
    %3294 = vmatpush1.msra.mxu0 0.0
    %3295 = vmatprep.subr.mxu0 0.0
    %3296 = vmatpush1.msra.mxu0 0.0
    %3297 = vmatprep.mubr.f32.mxu0 0.0
    %3298 = vmatmul.mubr.f32.gmra.mrb[0].mxu0 %v3228
    %v3299 = vpop.f32.mrb[0].mxu0
    %v3300 = vadd.f32 %v3219, %v3299
    %v3301 = vpop.f32.mrb[0].mxu0
    %3302 = vmatprep.mubr.f32.mxu0 0.0
    %3303 = vmatmul.mubr.f32.gmra.mrb[0].mxu0 %v3231
    %v3304 = vpop.f32.mrb[0].mxu0
    %v3305 = vadd.f32 %v3224, %v3304
    %v3306 = vpop.f32.mrb[0].mxu0
    %3307 = vdwg.mxu0
    %s3308 = scalar_lea.vmem [#allocation2], 320
    %v3309 = vld [vmem:[%s3308] sm:$0xff]
    %v3310 = vld [vmem:[%s3308 + $0x8] sm:$0xff]
    %v3311 = vld [vmem:[%s3308 + $0x10] sm:$0xff]
    %v3312 = vld [vmem:[%s3308 + $0x18] sm:$0xff]
    %s3313 = scalar_lea.vmem [#allocation2], 448
    %v3314 = vld [vmem:[%s3313] sm:$0xff]
    %v3315 = vld [vmem:[%s3313 + $0x8] sm:$0xff]
    %v3316 = vld [vmem:[%s3313 + $0x10] sm:$0xff]
    %v3317 = vld [vmem:[%s3313 + $0x18] sm:$0xff]
    %3318 = vmatprep.subr.mxu0 0.0
    %3319 = vmatpush1.msra.mxu0 %v3309
    %3320 = vmatprep.subr.mxu0 0.0
    %3321 = vmatpush1.msra.mxu0 %v3310
    %3322 = vmatprep.subr.mxu0 0.0
    %3323 = vmatpush1.msra.mxu0 %v3311
    %3324 = vmatprep.subr.mxu0 0.0
    %3325 = vmatpush1.msra.mxu0 %v3312
    %3326 = vmatprep.subr.mxu0 0.0
    %3327 = vmatpush1.msra.mxu0 0.0
    %3328 = vmatprep.subr.mxu0 0.0
    %3329 = vmatpush1.msra.mxu0 0.0
    %3330 = vmatprep.subr.mxu0 0.0
    %3331 = vmatpush1.msra.mxu0 0.0
    %3332 = vmatprep.subr.mxu0 0.0
    %3333 = vmatpush1.msra.mxu0 0.0
    %3334 = vmatprep.subr.mxu0 0.0
    %3335 = vmatpush1.msra.mxu0 0.0
    %3336 = vmatprep.subr.mxu0 0.0
    %3337 = vmatpush1.msra.mxu0 0.0
    %3338 = vmatprep.subr.mxu0 0.0
    %3339 = vmatpush1.msra.mxu0 0.0
    %3340 = vmatprep.subr.mxu0 0.0
    %3341 = vmatpush1.msra.mxu0 0.0
    %3342 = vmatprep.subr.mxu0 0.0
    %3343 = vmatpush1.msra.mxu0 0.0
    %3344 = vmatprep.subr.mxu0 0.0
    %3345 = vmatpush1.msra.mxu0 0.0
    %3346 = vmatprep.subr.mxu0 0.0
    %3347 = vmatpush1.msra.mxu0 0.0
    %3348 = vmatprep.subr.mxu0 0.0
    %3349 = vmatpush1.msra.mxu0 0.0
    %3350 = vmatprep.subr.mxu0 0.0
    %3351 = vmatpush1.msra.mxu0 0.0
    %3352 = vmatprep.subr.mxu0 0.0
    %3353 = vmatpush1.msra.mxu0 0.0
    %3354 = vmatprep.subr.mxu0 0.0
    %3355 = vmatpush1.msra.mxu0 0.0
    %3356 = vmatprep.subr.mxu0 0.0
    %3357 = vmatpush1.msra.mxu0 0.0
    %3358 = vmatprep.subr.mxu0 0.0
    %3359 = vmatpush1.msra.mxu0 0.0
    %3360 = vmatprep.subr.mxu0 0.0
    %3361 = vmatpush1.msra.mxu0 0.0
    %3362 = vmatprep.subr.mxu0 0.0
    %3363 = vmatpush1.msra.mxu0 0.0
    %3364 = vmatprep.subr.mxu0 0.0
    %3365 = vmatpush1.msra.mxu0 0.0
    %3366 = vmatprep.subr.mxu0 0.0
    %3367 = vmatpush1.msra.mxu0 0.0
    %3368 = vmatprep.subr.mxu0 0.0
    %3369 = vmatpush1.msra.mxu0 0.0
    %3370 = vmatprep.subr.mxu0 0.0
    %3371 = vmatpush1.msra.mxu0 0.0
    %3372 = vmatprep.subr.mxu0 0.0
    %3373 = vmatpush1.msra.mxu0 0.0
    %3374 = vmatprep.subr.mxu0 0.0
    %3375 = vmatpush1.msra.mxu0 0.0
    %3376 = vmatprep.subr.mxu0 0.0
    %3377 = vmatpush1.msra.mxu0 0.0
    %3378 = vmatprep.subr.mxu0 0.0
    %3379 = vmatpush1.msra.mxu0 0.0
    %3380 = vmatprep.subr.mxu0 0.0
    %3381 = vmatpush1.msra.mxu0 0.0
    %3382 = vmatprep.mubr.f32.mxu0 0.0
    %3383 = vmatmul.mubr.f32.gmra.mrb[0].mxu0 %v2353
    %v3384 = vpop.f32.mrb[0].mxu0
    %v3385 = vadd.f32 0.0, %v3384
    %v3386 = vpop.f32.mrb[0].mxu0
    %3387 = vmatprep.mubr.f32.mxu0 0.0
    %3388 = vmatmul.mubr.f32.gmra.mrb[0].mxu0 %v2356
    %v3389 = vpop.f32.mrb[0].mxu0
    %v3390 = vadd.f32 0.0, %v3389
    %v3391 = vpop.f32.mrb[0].mxu0
    %3392 = vdwg.mxu0
    %v3394 = vsel %vm150, %v3385, 0
    %3396 = vmatprep.subr.mxu0 0.0
    %3397 = vmatpush1.xpose.msra.mxu0 %v2353
    %3398 = vmatprep.subr.mxu0 0.0
    %3399 = vmatpush1.xpose.msra.mxu0 0.0
    %3400 = vmatprep.subr.mxu0 0.0
    %3401 = vmatpush1.xpose.msra.mxu0 0.0
    %3402 = vmatprep.subr.mxu0 0.0
    %3403 = vmatpush1.xpose.msra.mxu0 0.0
    %3404 = vmatprep.subr.mxu0 0.0
    %3405 = vmatpush1.xpose.msra.mxu0 0.0
    %3406 = vmatprep.subr.mxu0 0.0
    %3407 = vmatpush1.xpose.msra.mxu0 0.0
    %3408 = vmatprep.subr.mxu0 0.0
    %3409 = vmatpush1.xpose.msra.mxu0 0.0
    %3410 = vmatprep.subr.mxu0 0.0
    %3411 = vmatpush1.xpose.msra.mxu0 0.0
    %3412 = vmatprep.subr.mxu0 0.0
    %3413 = vmatpush1.xpose.msra.mxu0 0.0
    %3414 = vmatprep.subr.mxu0 0.0
    %3415 = vmatpush1.xpose.msra.mxu0 0.0
    %3416 = vmatprep.subr.mxu0 0.0
    %3417 = vmatpush1.xpose.msra.mxu0 0.0
    %3418 = vmatprep.subr.mxu0 0.0
    %3419 = vmatpush1.xpose.msra.mxu0 0.0
    %3420 = vmatprep.subr.mxu0 0.0
    %3421 = vmatpush1.xpose.msra.mxu0 0.0
    %3422 = vmatprep.subr.mxu0 0.0
    %3423 = vmatpush1.xpose.msra.mxu0 0.0
    %3424 = vmatprep.subr.mxu0 0.0
    %3425 = vmatpush1.xpose.msra.mxu0 0.0
    %3426 = vmatprep.subr.mxu0 0.0
    %3427 = vmatpush1.xpose.msra.mxu0 0.0
    %3428 = vmatprep.subr.mxu0 0.0
    %3429 = vmatpush1.xpose.msra.mxu0 0.0
    %3430 = vmatprep.subr.mxu0 0.0
    %3431 = vmatpush1.xpose.msra.mxu0 0.0
    %3432 = vmatprep.subr.mxu0 0.0
    %3433 = vmatpush1.xpose.msra.mxu0 0.0
    %3434 = vmatprep.subr.mxu0 0.0
    %3435 = vmatpush1.xpose.msra.mxu0 0.0
    %3436 = vmatprep.subr.mxu0 0.0
    %3437 = vmatpush1.xpose.msra.mxu0 0.0
    %3438 = vmatprep.subr.mxu0 0.0
    %3439 = vmatpush1.xpose.msra.mxu0 0.0
    %3440 = vmatprep.subr.mxu0 0.0
    %3441 = vmatpush1.xpose.msra.mxu0 0.0
    %3442 = vmatprep.subr.mxu0 0.0
    %3443 = vmatpush1.xpose.msra.mxu0 0.0
    %3444 = vmatprep.subr.mxu0 0.0
    %3445 = vmatpush1.xpose.msra.mxu0 0.0
    %3446 = vmatprep.subr.mxu0 0.0
    %3447 = vmatpush1.xpose.msra.mxu0 0.0
    %3448 = vmatprep.subr.mxu0 0.0
    %3449 = vmatpush1.xpose.msra.mxu0 0.0
    %3450 = vmatprep.subr.mxu0 0.0
    %3451 = vmatpush1.xpose.msra.mxu0 0.0
    %3452 = vmatprep.subr.mxu0 0.0
    %3453 = vmatpush1.xpose.msra.mxu0 0.0
    %3454 = vmatprep.subr.mxu0 0.0
    %3455 = vmatpush1.xpose.msra.mxu0 0.0
    %3456 = vmatprep.subr.mxu0 0.0
    %3457 = vmatpush1.xpose.msra.mxu0 0.0
    %3458 = vmatprep.subr.mxu0 0.0
    %3459 = vmatpush1.xpose.msra.mxu0 0.0
    %3460 = vmatprep.mubr.f32.mxu0 0.0
    %3461 = vmatmul.mubr.f32.gmra.mrb[0].mxu0 %v3394
    %v3462 = vpop.f32.mrb[0].mxu0
    %v3463 = vadd.f32 0.0, %v3462
    %v3464 = vpop.f32.mrb[0].mxu0
    %3465 = vdwg.mxu0
    %v3467 = vsel %vm150, %v3390, 0
    %3469 = vmatprep.subr.mxu0 0.0
    %3470 = vmatpush1.xpose.msra.mxu0 %v2356
    %3471 = vmatprep.subr.mxu0 0.0
    %3472 = vmatpush1.xpose.msra.mxu0 0.0
    %3473 = vmatprep.subr.mxu0 0.0
    %3474 = vmatpush1.xpose.msra.mxu0 0.0
    %3475 = vmatprep.subr.mxu0 0.0
    %3476 = vmatpush1.xpose.msra.mxu0 0.0
    %3477 = vmatprep.subr.mxu0 0.0
    %3478 = vmatpush1.xpose.msra.mxu0 0.0
    %3479 = vmatprep.subr.mxu0 0.0
    %3480 = vmatpush1.xpose.msra.mxu0 0.0
    %3481 = vmatprep.subr.mxu0 0.0
    %3482 = vmatpush1.xpose.msra.mxu0 0.0
    %3483 = vmatprep.subr.mxu0 0.0
    %3484 = vmatpush1.xpose.msra.mxu0 0.0
    %3485 = vmatprep.subr.mxu0 0.0
    %3486 = vmatpush1.xpose.msra.mxu0 0.0
    %3487 = vmatprep.subr.mxu0 0.0
    %3488 = vmatpush1.xpose.msra.mxu0 0.0
    %3489 = vmatprep.subr.mxu0 0.0
    %3490 = vmatpush1.xpose.msra.mxu0 0.0
    %3491 = vmatprep.subr.mxu0 0.0
    %3492 = vmatpush1.xpose.msra.mxu0 0.0
    %3493 = vmatprep.subr.mxu0 0.0
    %3494 = vmatpush1.xpose.msra.mxu0 0.0
    %3495 = vmatprep.subr.mxu0 0.0
    %3496 = vmatpush1.xpose.msra.mxu0 0.0
    %3497 = vmatprep.subr.mxu0 0.0
    %3498 = vmatpush1.xpose.msra.mxu0 0.0
    %3499 = vmatprep.subr.mxu0 0.0
    %3500 = vmatpush1.xpose.msra.mxu0 0.0
    %3501 = vmatprep.subr.mxu0 0.0
    %3502 = vmatpush1.xpose.msra.mxu0 0.0
    %3503 = vmatprep.subr.mxu0 0.0
    %3504 = vmatpush1.xpose.msra.mxu0 0.0
    %3505 = vmatprep.subr.mxu0 0.0
    %3506 = vmatpush1.xpose.msra.mxu0 0.0
    %3507 = vmatprep.subr.mxu0 0.0
    %3508 = vmatpush1.xpose.msra.mxu0 0.0
    %3509 = vmatprep.subr.mxu0 0.0
    %3510 = vmatpush1.xpose.msra.mxu0 0.0
    %3511 = vmatprep.subr.mxu0 0.0
    %3512 = vmatpush1.xpose.msra.mxu0 0.0
    %3513 = vmatprep.subr.mxu0 0.0
    %3514 = vmatpush1.xpose.msra.mxu0 0.0
    %3515 = vmatprep.subr.mxu0 0.0
    %3516 = vmatpush1.xpose.msra.mxu0 0.0
    %3517 = vmatprep.subr.mxu0 0.0
    %3518 = vmatpush1.xpose.msra.mxu0 0.0
    %3519 = vmatprep.subr.mxu0 0.0
    %3520 = vmatpush1.xpose.msra.mxu0 0.0
    %3521 = vmatprep.subr.mxu0 0.0
    %3522 = vmatpush1.xpose.msra.mxu0 0.0
    %3523 = vmatprep.subr.mxu0 0.0
    %3524 = vmatpush1.xpose.msra.mxu0 0.0
    %3525 = vmatprep.subr.mxu0 0.0
    %3526 = vmatpush1.xpose.msra.mxu0 0.0
    %3527 = vmatprep.subr.mxu0 0.0
    %3528 = vmatpush1.xpose.msra.mxu0 0.0
    %3529 = vmatprep.subr.mxu0 0.0
    %3530 = vmatpush1.xpose.msra.mxu0 0.0
    %3531 = vmatprep.subr.mxu0 0.0
    %3532 = vmatpush1.xpose.msra.mxu0 0.0
    %3533 = vmatprep.mubr.f32.mxu0 0.0
    %3534 = vmatmul.mubr.f32.gmra.mrb[0].mxu0 %v3467
    %v3535 = vpop.f32.mrb[0].mxu0
    %v3536 = vadd.f32 0.0, %v3535
    %v3537 = vpop.f32.mrb[0].mxu0
    %3538 = vdwg.mxu0
    %v3539 = vsel %vm378, %v3463, -inf
    %3540 = vmax.xlane.f32.xlu0 %v3539
    %v3541 = vpop.xlane.xlu0 %3540
    %v3542 = vsel %vm378, %v3536, -inf
    %3543 = vmax.xlane.f32.xlu0 %v3542
    %v3544 = vpop.xlane.xlu0 %3543
    %v3545 = vsub.f32 %v3463, %v3541
    %v3546 = vsub.f32 %v3536, %v3544
    %v3547 = vmul.f32 %v3545, 1.442695
    %v3548 = vpow.pop %v3547
    %v3549 = vmul.f32 %v3546, 1.442695
    %v3550 = vpow.pop %v3549
    %v3551 = vsel %vm378, %v3548, 0.0
    %3552 = vadd.xlane.f32.xlu0 %v3551
    %v3553 = vpop.xlane.xlu0 %3552
    %v3554 = vsel %vm378, %v3550, 0.0
    %3555 = vadd.xlane.f32.xlu0 %v3554
    %v3556 = vpop.xlane.xlu0 %3555
    %v3557 = vrcp.pop %v3553
    %v3558 = vrcp.pop %v3556
    %v3559 = vmul.f32 %v3548, %v3557
    %v3560 = vmul.f32 %v3550, %v3558
    %v3562 = vsel %vm378, %v3559, 0
    %3564 = vmatprep.subr.mxu0 0.0
    %3565 = vmatpush1.msra.mxu0 %v2334
    %3566 = vmatprep.subr.mxu0 0.0
    %3567 = vmatpush1.msra.mxu0 0.0
    %3568 = vmatprep.subr.mxu0 0.0
    %3569 = vmatpush1.msra.mxu0 0.0
    %3570 = vmatprep.subr.mxu0 0.0
    %3571 = vmatpush1.msra.mxu0 0.0
    %3572 = vmatprep.subr.mxu0 0.0
    %3573 = vmatpush1.msra.mxu0 0.0
    %3574 = vmatprep.subr.mxu0 0.0
    %3575 = vmatpush1.msra.mxu0 0.0
    %3576 = vmatprep.subr.mxu0 0.0
    %3577 = vmatpush1.msra.mxu0 0.0
    %3578 = vmatprep.subr.mxu0 0.0
    %3579 = vmatpush1.msra.mxu0 0.0
    %3580 = vmatprep.subr.mxu0 0.0
    %3581 = vmatpush1.msra.mxu0 0.0
    %3582 = vmatprep.subr.mxu0 0.0
    %3583 = vmatpush1.msra.mxu0 0.0
    %3584 = vmatprep.subr.mxu0 0.0
    %3585 = vmatpush1.msra.mxu0 0.0
    %3586 = vmatprep.subr.mxu0 0.0
    %3587 = vmatpush1.msra.mxu0 0.0
    %3588 = vmatprep.subr.mxu0 0.0
    %3589 = vmatpush1.msra.mxu0 0.0
    %3590 = vmatprep.subr.mxu0 0.0
    %3591 = vmatpush1.msra.mxu0 0.0
    %3592 = vmatprep.subr.mxu0 0.0
    %3593 = vmatpush1.msra.mxu0 0.0
    %3594 = vmatprep.subr.mxu0 0.0
    %3595 = vmatpush1.msra.mxu0 0.0
    %3596 = vmatprep.subr.mxu0 0.0
    %3597 = vmatpush1.msra.mxu0 0.0
    %3598 = vmatprep.subr.mxu0 0.0
    %3599 = vmatpush1.msra.mxu0 0.0
    %3600 = vmatprep.subr.mxu0 0.0
    %3601 = vmatpush1.msra.mxu0 0.0
    %3602 = vmatprep.subr.mxu0 0.0
    %3603 = vmatpush1.msra.mxu0 0.0
    %3604 = vmatprep.subr.mxu0 0.0
    %3605 = vmatpush1.msra.mxu0 0.0
    %3606 = vmatprep.subr.mxu0 0.0
    %3607 = vmatpush1.msra.mxu0 0.0
    %3608 = vmatprep.subr.mxu0 0.0
    %3609 = vmatpush1.msra.mxu0 0.0
    %3610 = vmatprep.subr.mxu0 0.0
    %3611 = vmatpush1.msra.mxu0 0.0
    %3612 = vmatprep.subr.mxu0 0.0
    %3613 = vmatpush1.msra.mxu0 0.0
    %3614 = vmatprep.subr.mxu0 0.0
    %3615 = vmatpush1.msra.mxu0 0.0
    %3616 = vmatprep.subr.mxu0 0.0
    %3617 = vmatpush1.msra.mxu0 0.0
    %3618 = vmatprep.subr.mxu0 0.0
    %3619 = vmatpush1.msra.mxu0 0.0
    %3620 = vmatprep.subr.mxu0 0.0
    %3621 = vmatpush1.msra.mxu0 0.0
    %3622 = vmatprep.subr.mxu0 0.0
    %3623 = vmatpush1.msra.mxu0 0.0
    %3624 = vmatprep.subr.mxu0 0.0
    %3625 = vmatpush1.msra.mxu0 0.0
    %3626 = vmatprep.subr.mxu0 0.0
    %3627 = vmatpush1.msra.mxu0 0.0
    %3628 = vmatprep.mubr.f32.mxu0 0.0
    %3629 = vmatmul.mubr.f32.gmra.mrb[0].mxu0 %v3562
    %v3630 = vpop.f32.mrb[0].mxu0
    %v3631 = vadd.f32 0.0, %v3630
    %v3632 = vpop.f32.mrb[0].mxu0
    %3633 = vdwg.mxu0
    %v3635 = vsel %vm378, %v3560, 0
    %3637 = vmatprep.subr.mxu0 0.0
    %3638 = vmatpush1.msra.mxu0 %v2335
    %3639 = vmatprep.subr.mxu0 0.0
    %3640 = vmatpush1.msra.mxu0 0.0
    %3641 = vmatprep.subr.mxu0 0.0
    %3642 = vmatpush1.msra.mxu0 0.0
    %3643 = vmatprep.subr.mxu0 0.0
    %3644 = vmatpush1.msra.mxu0 0.0
    %3645 = vmatprep.subr.mxu0 0.0
    %3646 = vmatpush1.msra.mxu0 0.0
    %3647 = vmatprep.subr.mxu0 0.0
    %3648 = vmatpush1.msra.mxu0 0.0
    %3649 = vmatprep.subr.mxu0 0.0
    %3650 = vmatpush1.msra.mxu0 0.0
    %3651 = vmatprep.subr.mxu0 0.0
    %3652 = vmatpush1.msra.mxu0 0.0
    %3653 = vmatprep.subr.mxu0 0.0
    %3654 = vmatpush1.msra.mxu0 0.0
    %3655 = vmatprep.subr.mxu0 0.0
    %3656 = vmatpush1.msra.mxu0 0.0
    %3657 = vmatprep.subr.mxu0 0.0
    %3658 = vmatpush1.msra.mxu0 0.0
    %3659 = vmatprep.subr.mxu0 0.0
    %3660 = vmatpush1.msra.mxu0 0.0
    %3661 = vmatprep.subr.mxu0 0.0
    %3662 = vmatpush1.msra.mxu0 0.0
    %3663 = vmatprep.subr.mxu0 0.0
    %3664 = vmatpush1.msra.mxu0 0.0
    %3665 = vmatprep.subr.mxu0 0.0
    %3666 = vmatpush1.msra.mxu0 0.0
    %3667 = vmatprep.subr.mxu0 0.0
    %3668 = vmatpush1.msra.mxu0 0.0
    %3669 = vmatprep.subr.mxu0 0.0
    %3670 = vmatpush1.msra.mxu0 0.0
    %3671 = vmatprep.subr.mxu0 0.0
    %3672 = vmatpush1.msra.mxu0 0.0
    %3673 = vmatprep.subr.mxu0 0.0
    %3674 = vmatpush1.msra.mxu0 0.0
    %3675 = vmatprep.subr.mxu0 0.0
    %3676 = vmatpush1.msra.mxu0 0.0
    %3677 = vmatprep.subr.mxu0 0.0
    %3678 = vmatpush1.msra.mxu0 0.0
    %3679 = vmatprep.subr.mxu0 0.0
    %3680 = vmatpush1.msra.mxu0 0.0
    %3681 = vmatprep.subr.mxu0 0.0
    %3682 = vmatpush1.msra.mxu0 0.0
    %3683 = vmatprep.subr.mxu0 0.0
    %3684 = vmatpush1.msra.mxu0 0.0
    %3685 = vmatprep.subr.mxu0 0.0
    %3686 = vmatpush1.msra.mxu0 0.0
    %3687 = vmatprep.subr.mxu0 0.0
    %3688 = vmatpush1.msra.mxu0 0.0
    %3689 = vmatprep.subr.mxu0 0.0
    %3690 = vmatpush1.msra.mxu0 0.0
    %3691 = vmatprep.subr.mxu0 0.0
    %3692 = vmatpush1.msra.mxu0 0.0
    %3693 = vmatprep.subr.mxu0 0.0
    %3694 = vmatpush1.msra.mxu0 0.0
    %3695 = vmatprep.subr.mxu0 0.0
    %3696 = vmatpush1.msra.mxu0 0.0
    %3697 = vmatprep.subr.mxu0 0.0
    %3698 = vmatpush1.msra.mxu0 0.0
    %3699 = vmatprep.subr.mxu0 0.0
    %3700 = vmatpush1.msra.mxu0 0.0
    %3701 = vmatprep.mubr.f32.mxu0 0.0
    %3702 = vmatmul.mubr.f32.gmra.mrb[0].mxu0 %v3635
    %v3703 = vpop.f32.mrb[0].mxu0
    %v3704 = vadd.f32 0.0, %v3703
    %v3705 = vpop.f32.mrb[0].mxu0
    %3706 = vdwg.mxu0
    %v3708 = vsel %vm150, %v3631, 0
    %v3711 = vsel %vm150, %v3704, 0
    %3713 = vmatprep.subr.mxu0 0.0
    %3714 = vmatpush1.msra.mxu0 %v3314
    %3715 = vmatprep.subr.mxu0 0.0
    %3716 = vmatpush1.msra.mxu0 %v3315
    %3717 = vmatprep.subr.mxu0 0.0
    %3718 = vmatpush1.msra.mxu0 %v3316
    %3719 = vmatprep.subr.mxu0 0.0
    %3720 = vmatpush1.msra.mxu0 %v3317
    %3721 = vmatprep.subr.mxu0 0.0
    %3722 = vmatpush1.msra.mxu0 0.0
    %3723 = vmatprep.subr.mxu0 0.0
    %3724 = vmatpush1.msra.mxu0 0.0
    %3725 = vmatprep.subr.mxu0 0.0
    %3726 = vmatpush1.msra.mxu0 0.0
    %3727 = vmatprep.subr.mxu0 0.0
    %3728 = vmatpush1.msra.mxu0 0.0
    %3729 = vmatprep.subr.mxu0 0.0
    %3730 = vmatpush1.msra.mxu0 0.0
    %3731 = vmatprep.subr.mxu0 0.0
    %3732 = vmatpush1.msra.mxu0 0.0
    %3733 = vmatprep.subr.mxu0 0.0
    %3734 = vmatpush1.msra.mxu0 0.0
    %3735 = vmatprep.subr.mxu0 0.0
    %3736 = vmatpush1.msra.mxu0 0.0
    %3737 = vmatprep.subr.mxu0 0.0
    %3738 = vmatpush1.msra.mxu0 0.0
    %3739 = vmatprep.subr.mxu0 0.0
    %3740 = vmatpush1.msra.mxu0 0.0
    %3741 = vmatprep.subr.mxu0 0.0
    %3742 = vmatpush1.msra.mxu0 0.0
    %3743 = vmatprep.subr.mxu0 0.0
    %3744 = vmatpush1.msra.mxu0 0.0
    %3745 = vmatprep.subr.mxu0 0.0
    %3746 = vmatpush1.msra.mxu0 0.0
    %3747 = vmatprep.subr.mxu0 0.0
    %3748 = vmatpush1.msra.mxu0 0.0
    %3749 = vmatprep.subr.mxu0 0.0
    %3750 = vmatpush1.msra.mxu0 0.0
    %3751 = vmatprep.subr.mxu0 0.0
    %3752 = vmatpush1.msra.mxu0 0.0
    %3753 = vmatprep.subr.mxu0 0.0
    %3754 = vmatpush1.msra.mxu0 0.0
    %3755 = vmatprep.subr.mxu0 0.0
    %3756 = vmatpush1.msra.mxu0 0.0
    %3757 = vmatprep.subr.mxu0 0.0
    %3758 = vmatpush1.msra.mxu0 0.0
    %3759 = vmatprep.subr.mxu0 0.0
    %3760 = vmatpush1.msra.mxu0 0.0
    %3761 = vmatprep.subr.mxu0 0.0
    %3762 = vmatpush1.msra.mxu0 0.0
    %3763 = vmatprep.subr.mxu0 0.0
    %3764 = vmatpush1.msra.mxu0 0.0
    %3765 = vmatprep.subr.mxu0 0.0
    %3766 = vmatpush1.msra.mxu0 0.0
    %3767 = vmatprep.subr.mxu0 0.0
    %3768 = vmatpush1.msra.mxu0 0.0
    %3769 = vmatprep.subr.mxu0 0.0
    %3770 = vmatpush1.msra.mxu0 0.0
    %3771 = vmatprep.subr.mxu0 0.0
    %3772 = vmatpush1.msra.mxu0 0.0
    %3773 = vmatprep.subr.mxu0 0.0
    %3774 = vmatpush1.msra.mxu0 0.0
    %3775 = vmatprep.subr.mxu0 0.0
    %3776 = vmatpush1.msra.mxu0 0.0
    %3777 = vmatprep.mubr.f32.mxu0 0.0
    %3778 = vmatmul.mubr.f32.gmra.mrb[0].mxu0 %v3708
    %v3779 = vpop.f32.mrb[0].mxu0
    %v3780 = vadd.f32 0.0, %v3779
    %v3781 = vpop.f32.mrb[0].mxu0
    %3782 = vmatprep.mubr.f32.mxu0 0.0
    %3783 = vmatmul.mubr.f32.gmra.mrb[0].mxu0 %v3711
    %v3784 = vpop.f32.mrb[0].mxu0
    %v3785 = vadd.f32 0.0, %v3784
    %v3786 = vpop.f32.mrb[0].mxu0
    %3787 = vdwg.mxu0
    %v3788 = vadd.f32 %v3300, %v3780
    %v3789 = vadd.f32 %v3305, %v3785
    %s3790 = scalar_lea.vmem [#allocation2], 352
    %v3791 = vld [vmem:[%s3790] sm:$0xff]
    %v3792 = vld [vmem:[%s3790 + $0x8] sm:$0xff]
    %v3793 = vld [vmem:[%s3790 + $0x10] sm:$0xff]
    %v3794 = vld [vmem:[%s3790 + $0x18] sm:$0xff]
    %s3795 = scalar_lea.vmem [#allocation2], 480
    %v3796 = vld [vmem:[%s3795] sm:$0xff]
    %v3797 = vld [vmem:[%s3795 + $0x8] sm:$0xff]
    %v3798 = vld [vmem:[%s3795 + $0x10] sm:$0xff]
    %v3799 = vld [vmem:[%s3795 + $0x18] sm:$0xff]
    %3800 = vmatprep.subr.mxu0 0.0
    %3801 = vmatpush1.msra.mxu0 %v3791
    %3802 = vmatprep.subr.mxu0 0.0
    %3803 = vmatpush1.msra.mxu0 %v3792
    %3804 = vmatprep.subr.mxu0 0.0
    %3805 = vmatpush1.msra.mxu0 %v3793
    %3806 = vmatprep.subr.mxu0 0.0
    %3807 = vmatpush1.msra.mxu0 %v3794
    %3808 = vmatprep.subr.mxu0 0.0
    %3809 = vmatpush1.msra.mxu0 0.0
    %3810 = vmatprep.subr.mxu0 0.0
    %3811 = vmatpush1.msra.mxu0 0.0
    %3812 = vmatprep.subr.mxu0 0.0
    %3813 = vmatpush1.msra.mxu0 0.0
    %3814 = vmatprep.subr.mxu0 0.0
    %3815 = vmatpush1.msra.mxu0 0.0
    %3816 = vmatprep.subr.mxu0 0.0
    %3817 = vmatpush1.msra.mxu0 0.0
    %3818 = vmatprep.subr.mxu0 0.0
    %3819 = vmatpush1.msra.mxu0 0.0
    %3820 = vmatprep.subr.mxu0 0.0
    %3821 = vmatpush1.msra.mxu0 0.0
    %3822 = vmatprep.subr.mxu0 0.0
    %3823 = vmatpush1.msra.mxu0 0.0
    %3824 = vmatprep.subr.mxu0 0.0
    %3825 = vmatpush1.msra.mxu0 0.0
    %3826 = vmatprep.subr.mxu0 0.0
    %3827 = vmatpush1.msra.mxu0 0.0
    %3828 = vmatprep.subr.mxu0 0.0
    %3829 = vmatpush1.msra.mxu0 0.0
    %3830 = vmatprep.subr.mxu0 0.0
    %3831 = vmatpush1.msra.mxu0 0.0
    %3832 = vmatprep.subr.mxu0 0.0
    %3833 = vmatpush1.msra.mxu0 0.0
    %3834 = vmatprep.subr.mxu0 0.0
    %3835 = vmatpush1.msra.mxu0 0.0
    %3836 = vmatprep.subr.mxu0 0.0
    %3837 = vmatpush1.msra.mxu0 0.0
    %3838 = vmatprep.subr.mxu0 0.0
    %3839 = vmatpush1.msra.mxu0 0.0
    %3840 = vmatprep.subr.mxu0 0.0
    %3841 = vmatpush1.msra.mxu0 0.0
    %3842 = vmatprep.subr.mxu0 0.0
    %3843 = vmatpush1.msra.mxu0 0.0
    %3844 = vmatprep.subr.mxu0 0.0
    %3845 = vmatpush1.msra.mxu0 0.0
    %3846 = vmatprep.subr.mxu0 0.0
    %3847 = vmatpush1.msra.mxu0 0.0
    %3848 = vmatprep.subr.mxu0 0.0
    %3849 = vmatpush1.msra.mxu0 0.0
    %3850 = vmatprep.subr.mxu0 0.0
    %3851 = vmatpush1.msra.mxu0 0.0
    %3852 = vmatprep.subr.mxu0 0.0
    %3853 = vmatpush1.msra.mxu0 0.0
    %3854 = vmatprep.subr.mxu0 0.0
    %3855 = vmatpush1.msra.mxu0 0.0
    %3856 = vmatprep.subr.mxu0 0.0
    %3857 = vmatpush1.msra.mxu0 0.0
    %3858 = vmatprep.subr.mxu0 0.0
    %3859 = vmatpush1.msra.mxu0 0.0
    %3860 = vmatprep.subr.mxu0 0.0
    %3861 = vmatpush1.msra.mxu0 0.0
    %3862 = vmatprep.subr.mxu0 0.0
    %3863 = vmatpush1.msra.mxu0 0.0
    %3864 = vmatprep.mubr.f32.mxu0 0.0
    %3865 = vmatmul.mubr.f32.gmra.mrb[0].mxu0 %v2353
    %v3866 = vpop.f32.mrb[0].mxu0
    %v3867 = vadd.f32 0.0, %v3866
    %v3868 = vpop.f32.mrb[0].mxu0
    %3869 = vmatprep.mubr.f32.mxu0 0.0
    %3870 = vmatmul.mubr.f32.gmra.mrb[0].mxu0 %v2356
    %v3871 = vpop.f32.mrb[0].mxu0
    %v3872 = vadd.f32 0.0, %v3871
    %v3873 = vpop.f32.mrb[0].mxu0
    %3874 = vdwg.mxu0
    %v3876 = vsel %vm150, %v3867, 0
    %3878 = vmatprep.subr.mxu0 0.0
    %3879 = vmatpush1.xpose.msra.mxu0 %v2353
    %3880 = vmatprep.subr.mxu0 0.0
    %3881 = vmatpush1.xpose.msra.mxu0 0.0
    %3882 = vmatprep.subr.mxu0 0.0
    %3883 = vmatpush1.xpose.msra.mxu0 0.0
    %3884 = vmatprep.subr.mxu0 0.0
    %3885 = vmatpush1.xpose.msra.mxu0 0.0
    %3886 = vmatprep.subr.mxu0 0.0
    %3887 = vmatpush1.xpose.msra.mxu0 0.0
    %3888 = vmatprep.subr.mxu0 0.0
    %3889 = vmatpush1.xpose.msra.mxu0 0.0
    %3890 = vmatprep.subr.mxu0 0.0
    %3891 = vmatpush1.xpose.msra.mxu0 0.0
    %3892 = vmatprep.subr.mxu0 0.0
    %3893 = vmatpush1.xpose.msra.mxu0 0.0
    %3894 = vmatprep.subr.mxu0 0.0
    %3895 = vmatpush1.xpose.msra.mxu0 0.0
    %3896 = vmatprep.subr.mxu0 0.0
    %3897 = vmatpush1.xpose.msra.mxu0 0.0
    %3898 = vmatprep.subr.mxu0 0.0
    %3899 = vmatpush1.xpose.msra.mxu0 0.0
    %3900 = vmatprep.subr.mxu0 0.0
    %3901 = vmatpush1.xpose.msra.mxu0 0.0
    %3902 = vmatprep.subr.mxu0 0.0
    %3903 = vmatpush1.xpose.msra.mxu0 0.0
    %3904 = vmatprep.subr.mxu0 0.0
    %3905 = vmatpush1.xpose.msra.mxu0 0.0
    %3906 = vmatprep.subr.mxu0 0.0
    %3907 = vmatpush1.xpose.msra.mxu0 0.0
    %3908 = vmatprep.subr.mxu0 0.0
    %3909 = vmatpush1.xpose.msra.mxu0 0.0
    %3910 = vmatprep.subr.mxu0 0.0
    %3911 = vmatpush1.xpose.msra.mxu0 0.0
    %3912 = vmatprep.subr.mxu0 0.0
    %3913 = vmatpush1.xpose.msra.mxu0 0.0
    %3914 = vmatprep.subr.mxu0 0.0
    %3915 = vmatpush1.xpose.msra.mxu0 0.0
    %3916 = vmatprep.subr.mxu0 0.0
    %3917 = vmatpush1.xpose.msra.mxu0 0.0
    %3918 = vmatprep.subr.mxu0 0.0
    %3919 = vmatpush1.xpose.msra.mxu0 0.0
    %3920 = vmatprep.subr.mxu0 0.0
    %3921 = vmatpush1.xpose.msra.mxu0 0.0
    %3922 = vmatprep.subr.mxu0 0.0
    %3923 = vmatpush1.xpose.msra.mxu0 0.0
    %3924 = vmatprep.subr.mxu0 0.0
    %3925 = vmatpush1.xpose.msra.mxu0 0.0
    %3926 = vmatprep.subr.mxu0 0.0
    %3927 = vmatpush1.xpose.msra.mxu0 0.0
    %3928 = vmatprep.subr.mxu0 0.0
    %3929 = vmatpush1.xpose.msra.mxu0 0.0
    %3930 = vmatprep.subr.mxu0 0.0
    %3931 = vmatpush1.xpose.msra.mxu0 0.0
    %3932 = vmatprep.subr.mxu0 0.0
    %3933 = vmatpush1.xpose.msra.mxu0 0.0
    %3934 = vmatprep.subr.mxu0 0.0
    %3935 = vmatpush1.xpose.msra.mxu0 0.0
    %3936 = vmatprep.subr.mxu0 0.0
    %3937 = vmatpush1.xpose.msra.mxu0 0.0
    %3938 = vmatprep.subr.mxu0 0.0
    %3939 = vmatpush1.xpose.msra.mxu0 0.0
    %3940 = vmatprep.subr.mxu0 0.0
    %3941 = vmatpush1.xpose.msra.mxu0 0.0
    %3942 = vmatprep.mubr.f32.mxu0 0.0
    %3943 = vmatmul.mubr.f32.gmra.mrb[0].mxu0 %v3876
    %v3944 = vpop.f32.mrb[0].mxu0
    %v3945 = vadd.f32 0.0, %v3944
    %v3946 = vpop.f32.mrb[0].mxu0
    %3947 = vdwg.mxu0
    %v3949 = vsel %vm150, %v3872, 0
    %3951 = vmatprep.subr.mxu0 0.0
    %3952 = vmatpush1.xpose.msra.mxu0 %v2356
    %3953 = vmatprep.subr.mxu0 0.0
    %3954 = vmatpush1.xpose.msra.mxu0 0.0
    %3955 = vmatprep.subr.mxu0 0.0
    %3956 = vmatpush1.xpose.msra.mxu0 0.0
    %3957 = vmatprep.subr.mxu0 0.0
    %3958 = vmatpush1.xpose.msra.mxu0 0.0
    %3959 = vmatprep.subr.mxu0 0.0
    %3960 = vmatpush1.xpose.msra.mxu0 0.0
    %3961 = vmatprep.subr.mxu0 0.0
    %3962 = vmatpush1.xpose.msra.mxu0 0.0
    %3963 = vmatprep.subr.mxu0 0.0
    %3964 = vmatpush1.xpose.msra.mxu0 0.0
    %3965 = vmatprep.subr.mxu0 0.0
    %3966 = vmatpush1.xpose.msra.mxu0 0.0
    %3967 = vmatprep.subr.mxu0 0.0
    %3968 = vmatpush1.xpose.msra.mxu0 0.0
    %3969 = vmatprep.subr.mxu0 0.0
    %3970 = vmatpush1.xpose.msra.mxu0 0.0
    %3971 = vmatprep.subr.mxu0 0.0
    %3972 = vmatpush1.xpose.msra.mxu0 0.0
    %3973 = vmatprep.subr.mxu0 0.0
    %3974 = vmatpush1.xpose.msra.mxu0 0.0
    %3975 = vmatprep.subr.mxu0 0.0
    %3976 = vmatpush1.xpose.msra.mxu0 0.0
    %3977 = vmatprep.subr.mxu0 0.0
    %3978 = vmatpush1.xpose.msra.mxu0 0.0
    %3979 = vmatprep.subr.mxu0 0.0
    %3980 = vmatpush1.xpose.msra.mxu0 0.0
    %3981 = vmatprep.subr.mxu0 0.0
    %3982 = vmatpush1.xpose.msra.mxu0 0.0
    %3983 = vmatprep.subr.mxu0 0.0
    %3984 = vmatpush1.xpose.msra.mxu0 0.0
    %3985 = vmatprep.subr.mxu0 0.0
    %3986 = vmatpush1.xpose.msra.mxu0 0.0
    %3987 = vmatprep.subr.mxu0 0.0
    %3988 = vmatpush1.xpose.msra.mxu0 0.0
    %3989 = vmatprep.subr.mxu0 0.0
    %3990 = vmatpush1.xpose.msra.mxu0 0.0
    %3991 = vmatprep.subr.mxu0 0.0
    %3992 = vmatpush1.xpose.msra.mxu0 0.0
    %3993 = vmatprep.subr.mxu0 0.0
    %3994 = vmatpush1.xpose.msra.mxu0 0.0
    %3995 = vmatprep.subr.mxu0 0.0
    %3996 = vmatpush1.xpose.msra.mxu0 0.0
    %3997 = vmatprep.subr.mxu0 0.0
    %3998 = vmatpush1.xpose.msra.mxu0 0.0
    %3999 = vmatprep.subr.mxu0 0.0
    %4000 = vmatpush1.xpose.msra.mxu0 0.0
    %4001 = vmatprep.subr.mxu0 0.0
    %4002 = vmatpush1.xpose.msra.mxu0 0.0
    %4003 = vmatprep.subr.mxu0 0.0
    %4004 = vmatpush1.xpose.msra.mxu0 0.0
    %4005 = vmatprep.subr.mxu0 0.0
    %4006 = vmatpush1.xpose.msra.mxu0 0.0
    %4007 = vmatprep.subr.mxu0 0.0
    %4008 = vmatpush1.xpose.msra.mxu0 0.0
    %4009 = vmatprep.subr.mxu0 0.0
    %4010 = vmatpush1.xpose.msra.mxu0 0.0
    %4011 = vmatprep.subr.mxu0 0.0
    %4012 = vmatpush1.xpose.msra.mxu0 0.0
    %4013 = vmatprep.subr.mxu0 0.0
    %4014 = vmatpush1.xpose.msra.mxu0 0.0
    %4015 = vmatprep.mubr.f32.mxu0 0.0
    %4016 = vmatmul.mubr.f32.gmra.mrb[0].mxu0 %v3949
    %v4017 = vpop.f32.mrb[0].mxu0
    %v4018 = vadd.f32 0.0, %v4017
    %v4019 = vpop.f32.mrb[0].mxu0
    %4020 = vdwg.mxu0
    %v4021 = vsel %vm378, %v3945, -inf
    %4022 = vmax.xlane.f32.xlu0 %v4021
    %v4023 = vpop.xlane.xlu0 %4022
    %v4024 = vsel %vm378, %v4018, -inf
    %4025 = vmax.xlane.f32.xlu0 %v4024
    %v4026 = vpop.xlane.xlu0 %4025
    %v4027 = vsub.f32 %v3945, %v4023
    %v4028 = vsub.f32 %v4018, %v4026
    %v4029 = vmul.f32 %v4027, 1.442695
    %v4030 = vpow.pop %v4029
    %v4031 = vmul.f32 %v4028, 1.442695
    %v4032 = vpow.pop %v4031
    %v4033 = vsel %vm378, %v4030, 0.0
    %4034 = vadd.xlane.f32.xlu0 %v4033
    %v4035 = vpop.xlane.xlu0 %4034
    %v4036 = vsel %vm378, %v4032, 0.0
    %4037 = vadd.xlane.f32.xlu0 %v4036
    %v4038 = vpop.xlane.xlu0 %4037
    %v4039 = vrcp.pop %v4035
    %v4040 = vrcp.pop %v4038
    %v4041 = vmul.f32 %v4030, %v4039
    %v4042 = vmul.f32 %v4032, %v4040
    %v4044 = vsel %vm378, %v4041, 0
    %4046 = vmatprep.subr.mxu0 0.0
    %4047 = vmatpush1.msra.mxu0 %v2334
    %4048 = vmatprep.subr.mxu0 0.0
    %4049 = vmatpush1.msra.mxu0 0.0
    %4050 = vmatprep.subr.mxu0 0.0
    %4051 = vmatpush1.msra.mxu0 0.0
    %4052 = vmatprep.subr.mxu0 0.0
    %4053 = vmatpush1.msra.mxu0 0.0
    %4054 = vmatprep.subr.mxu0 0.0
    %4055 = vmatpush1.msra.mxu0 0.0
    %4056 = vmatprep.subr.mxu0 0.0
    %4057 = vmatpush1.msra.mxu0 0.0
    %4058 = vmatprep.subr.mxu0 0.0
    %4059 = vmatpush1.msra.mxu0 0.0
    %4060 = vmatprep.subr.mxu0 0.0
    %4061 = vmatpush1.msra.mxu0 0.0
    %4062 = vmatprep.subr.mxu0 0.0
    %4063 = vmatpush1.msra.mxu0 0.0
    %4064 = vmatprep.subr.mxu0 0.0
    %4065 = vmatpush1.msra.mxu0 0.0
    %4066 = vmatprep.subr.mxu0 0.0
    %4067 = vmatpush1.msra.mxu0 0.0
    %4068 = vmatprep.subr.mxu0 0.0
    %4069 = vmatpush1.msra.mxu0 0.0
    %4070 = vmatprep.subr.mxu0 0.0
    %4071 = vmatpush1.msra.mxu0 0.0
    %4072 = vmatprep.subr.mxu0 0.0
    %4073 = vmatpush1.msra.mxu0 0.0
    %4074 = vmatprep.subr.mxu0 0.0
    %4075 = vmatpush1.msra.mxu0 0.0
    %4076 = vmatprep.subr.mxu0 0.0
    %4077 = vmatpush1.msra.mxu0 0.0
    %4078 = vmatprep.subr.mxu0 0.0
    %4079 = vmatpush1.msra.mxu0 0.0
    %4080 = vmatprep.subr.mxu0 0.0
    %4081 = vmatpush1.msra.mxu0 0.0
    %4082 = vmatprep.subr.mxu0 0.0
    %4083 = vmatpush1.msra.mxu0 0.0
    %4084 = vmatprep.subr.mxu0 0.0
    %4085 = vmatpush1.msra.mxu0 0.0
    %4086 = vmatprep.subr.mxu0 0.0
    %4087 = vmatpush1.msra.mxu0 0.0
    %4088 = vmatprep.subr.mxu0 0.0
    %4089 = vmatpush1.msra.mxu0 0.0
    %4090 = vmatprep.subr.mxu0 0.0
    %4091 = vmatpush1.msra.mxu0 0.0
    %4092 = vmatprep.subr.mxu0 0.0
    %4093 = vmatpush1.msra.mxu0 0.0
    %4094 = vmatprep.subr.mxu0 0.0
    %4095 = vmatpush1.msra.mxu0 0.0
    %4096 = vmatprep.subr.mxu0 0.0
    %4097 = vmatpush1.msra.mxu0 0.0
    %4098 = vmatprep.subr.mxu0 0.0
    %4099 = vmatpush1.msra.mxu0 0.0
    %4100 = vmatprep.subr.mxu0 0.0
    %4101 = vmatpush1.msra.mxu0 0.0
    %4102 = vmatprep.subr.mxu0 0.0
    %4103 = vmatpush1.msra.mxu0 0.0
    %4104 = vmatprep.subr.mxu0 0.0
    %4105 = vmatpush1.msra.mxu0 0.0
    %4106 = vmatprep.subr.mxu0 0.0
    %4107 = vmatpush1.msra.mxu0 0.0
    %4108 = vmatprep.subr.mxu0 0.0
    %4109 = vmatpush1.msra.mxu0 0.0
    %4110 = vmatprep.mubr.f32.mxu0 0.0
    %4111 = vmatmul.mubr.f32.gmra.mrb[0].mxu0 %v4044
    %v4112 = vpop.f32.mrb[0].mxu0
    %v4113 = vadd.f32 0.0, %v4112
    %v4114 = vpop.f32.mrb[0].mxu0
    %4115 = vdwg.mxu0
    %v4117 = vsel %vm378, %v4042, 0
    %4119 = vmatprep.subr.mxu0 0.0
    %4120 = vmatpush1.msra.mxu0 %v2335
    %4121 = vmatprep.subr.mxu0 0.0
    %4122 = vmatpush1.msra.mxu0 0.0
    %4123 = vmatprep.subr.mxu0 0.0
    %4124 = vmatpush1.msra.mxu0 0.0
    %4125 = vmatprep.subr.mxu0 0.0
    %4126 = vmatpush1.msra.mxu0 0.0
    %4127 = vmatprep.subr.mxu0 0.0
    %4128 = vmatpush1.msra.mxu0 0.0
    %4129 = vmatprep.subr.mxu0 0.0
    %4130 = vmatpush1.msra.mxu0 0.0
    %4131 = vmatprep.subr.mxu0 0.0
    %4132 = vmatpush1.msra.mxu0 0.0
    %4133 = vmatprep.subr.mxu0 0.0
    %4134 = vmatpush1.msra.mxu0 0.0
    %4135 = vmatprep.subr.mxu0 0.0
    %4136 = vmatpush1.msra.mxu0 0.0
    %4137 = vmatprep.subr.mxu0 0.0
    %4138 = vmatpush1.msra.mxu0 0.0
    %4139 = vmatprep.subr.mxu0 0.0
    %4140 = vmatpush1.msra.mxu0 0.0
    %4141 = vmatprep.subr.mxu0 0.0
    %4142 = vmatpush1.msra.mxu0 0.0
    %4143 = vmatprep.subr.mxu0 0.0
    %4144 = vmatpush1.msra.mxu0 0.0
    %4145 = vmatprep.subr.mxu0 0.0
    %4146 = vmatpush1.msra.mxu0 0.0
    %4147 = vmatprep.subr.mxu0 0.0
    %4148 = vmatpush1.msra.mxu0 0.0
    %4149 = vmatprep.subr.mxu0 0.0
    %4150 = vmatpush1.msra.mxu0 0.0
    %4151 = vmatprep.subr.mxu0 0.0
    %4152 = vmatpush1.msra.mxu0 0.0
    %4153 = vmatprep.subr.mxu0 0.0
    %4154 = vmatpush1.msra.mxu0 0.0
    %4155 = vmatprep.subr.mxu0 0.0
    %4156 = vmatpush1.msra.mxu0 0.0
    %4157 = vmatprep.subr.mxu0 0.0
    %4158 = vmatpush1.msra.mxu0 0.0
    %4159 = vmatprep.subr.mxu0 0.0
    %4160 = vmatpush1.msra.mxu0 0.0
    %4161 = vmatprep.subr.mxu0 0.0
    %4162 = vmatpush1.msra.mxu0 0.0
    %4163 = vmatprep.subr.mxu0 0.0
    %4164 = vmatpush1.msra.mxu0 0.0
    %4165 = vmatprep.subr.mxu0 0.0
    %4166 = vmatpush1.msra.mxu0 0.0
    %4167 = vmatprep.subr.mxu0 0.0
    %4168 = vmatpush1.msra.mxu0 0.0
    %4169 = vmatprep.subr.mxu0 0.0
    %4170 = vmatpush1.msra.mxu0 0.0
    %4171 = vmatprep.subr.mxu0 0.0
    %4172 = vmatpush1.msra.mxu0 0.0
    %4173 = vmatprep.subr.mxu0 0.0
    %4174 = vmatpush1.msra.mxu0 0.0
    %4175 = vmatprep.subr.mxu0 0.0
    %4176 = vmatpush1.msra.mxu0 0.0
    %4177 = vmatprep.subr.mxu0 0.0
    %4178 = vmatpush1.msra.mxu0 0.0
    %4179 = vmatprep.subr.mxu0 0.0
    %4180 = vmatpush1.msra.mxu0 0.0
    %4181 = vmatprep.subr.mxu0 0.0
    %4182 = vmatpush1.msra.mxu0 0.0
    %4183 = vmatprep.mubr.f32.mxu0 0.0
    %4184 = vmatmul.mubr.f32.gmra.mrb[0].mxu0 %v4117
    %v4185 = vpop.f32.mrb[0].mxu0
    %v4186 = vadd.f32 0.0, %v4185
    %v4187 = vpop.f32.mrb[0].mxu0
    %4188 = vdwg.mxu0
    %v4190 = vsel %vm150, %v4113, 0
    %v4193 = vsel %vm150, %v4186, 0
    %4195 = vmatprep.subr.mxu0 0.0
    %4196 = vmatpush1.msra.mxu0 %v3796
    %4197 = vmatprep.subr.mxu0 0.0
    %4198 = vmatpush1.msra.mxu0 %v3797
    %4199 = vmatprep.subr.mxu0 0.0
    %4200 = vmatpush1.msra.mxu0 %v3798
    %4201 = vmatprep.subr.mxu0 0.0
    %4202 = vmatpush1.msra.mxu0 %v3799
    %4203 = vmatprep.subr.mxu0 0.0
    %4204 = vmatpush1.msra.mxu0 0.0
    %4205 = vmatprep.subr.mxu0 0.0
    %4206 = vmatpush1.msra.mxu0 0.0
    %4207 = vmatprep.subr.mxu0 0.0
    %4208 = vmatpush1.msra.mxu0 0.0
    %4209 = vmatprep.subr.mxu0 0.0
    %4210 = vmatpush1.msra.mxu0 0.0
    %4211 = vmatprep.subr.mxu0 0.0
    %4212 = vmatpush1.msra.mxu0 0.0
    %4213 = vmatprep.subr.mxu0 0.0
    %4214 = vmatpush1.msra.mxu0 0.0
    %4215 = vmatprep.subr.mxu0 0.0
    %4216 = vmatpush1.msra.mxu0 0.0
    %4217 = vmatprep.subr.mxu0 0.0
    %4218 = vmatpush1.msra.mxu0 0.0
    %4219 = vmatprep.subr.mxu0 0.0
    %4220 = vmatpush1.msra.mxu0 0.0
    %4221 = vmatprep.subr.mxu0 0.0
    %4222 = vmatpush1.msra.mxu0 0.0
    %4223 = vmatprep.subr.mxu0 0.0
    %4224 = vmatpush1.msra.mxu0 0.0
    %4225 = vmatprep.subr.mxu0 0.0
    %4226 = vmatpush1.msra.mxu0 0.0
    %4227 = vmatprep.subr.mxu0 0.0
    %4228 = vmatpush1.msra.mxu0 0.0
    %4229 = vmatprep.subr.mxu0 0.0
    %4230 = vmatpush1.msra.mxu0 0.0
    %4231 = vmatprep.subr.mxu0 0.0
    %4232 = vmatpush1.msra.mxu0 0.0
    %4233 = vmatprep.subr.mxu0 0.0
    %4234 = vmatpush1.msra.mxu0 0.0
    %4235 = vmatprep.subr.mxu0 0.0
    %4236 = vmatpush1.msra.mxu0 0.0
    %4237 = vmatprep.subr.mxu0 0.0
    %4238 = vmatpush1.msra.mxu0 0.0
    %4239 = vmatprep.subr.mxu0 0.0
    %4240 = vmatpush1.msra.mxu0 0.0
    %4241 = vmatprep.subr.mxu0 0.0
    %4242 = vmatpush1.msra.mxu0 0.0
    %4243 = vmatprep.subr.mxu0 0.0
    %4244 = vmatpush1.msra.mxu0 0.0
    %4245 = vmatprep.subr.mxu0 0.0
    %4246 = vmatpush1.msra.mxu0 0.0
    %4247 = vmatprep.subr.mxu0 0.0
    %4248 = vmatpush1.msra.mxu0 0.0
    %4249 = vmatprep.subr.mxu0 0.0
    %4250 = vmatpush1.msra.mxu0 0.0
    %4251 = vmatprep.subr.mxu0 0.0
    %4252 = vmatpush1.msra.mxu0 0.0
    %4253 = vmatprep.subr.mxu0 0.0
    %4254 = vmatpush1.msra.mxu0 0.0
    %4255 = vmatprep.subr.mxu0 0.0
    %4256 = vmatpush1.msra.mxu0 0.0
    %4257 = vmatprep.subr.mxu0 0.0
    %4258 = vmatpush1.msra.mxu0 0.0
    %4259 = vmatprep.mubr.f32.mxu0 0.0
    %4260 = vmatmul.mubr.f32.gmra.mrb[0].mxu0 %v4190
    %v4261 = vpop.f32.mrb[0].mxu0
    %v4262 = vadd.f32 0.0, %v4261
    %v4263 = vpop.f32.mrb[0].mxu0
    %4264 = vmatprep.mubr.f32.mxu0 0.0
    %4265 = vmatmul.mubr.f32.gmra.mrb[0].mxu0 %v4193
    %v4266 = vpop.f32.mrb[0].mxu0
    %v4267 = vadd.f32 0.0, %v4266
    %v4268 = vpop.f32.mrb[0].mxu0
    %4269 = vdwg.mxu0
    %v4270 = vadd.f32 %v3788, %v4262
    %v4271 = vadd.f32 %v3789, %v4267
    %v4272 = vlaneseq
    %v4273 = vshrl.u32 %v4272, 7
    %v4274 = vsub.s32 0, %v4273
    %v4275 = vrot.slane %v2337, %v4274
    %v4276 = vadd.f32 %v4270, %v4275
    %v4277 = vadd.f32 %v4271, %v4275
    %v4278 = vadd.f32 %v4276, %v2334
    %v4279 = vadd.f32 %v4277, %v2335
    %v4280 = vsel %vm150, %v4278, 0.0
    %4281 = vadd.xlane.f32.xlu0 %v4280
    %v4282 = vpop.xlane.xlu0 %4281
    %v4283 = vsel %vm150, %v4279, 0.0
    %4284 = vadd.xlane.f32.xlu0 %v4283
    %v4285 = vpop.xlane.xlu0 %4284
    %v4286 = vmul.f32 %v4282, %v2086
    %v4287 = vmul.f32 %v4285, %v2086
    %v4288 = vsub.f32 %v4278, %v4286
    %v4289 = vsub.f32 %v4279, %v4287
    %v4290 = vmul.f32 %v4288, %v4288
    %v4291 = vmul.f32 %v4289, %v4289
    %v4292 = vsel %vm150, %v4290, 0.0
    %4293 = vadd.xlane.f32.xlu0 %v4292
    %v4294 = vpop.xlane.xlu0 %4293
    %v4295 = vsel %vm150, %v4291, 0.0
    %4296 = vadd.xlane.f32.xlu0 %v4295
    %v4297 = vpop.xlane.xlu0 %4296
    %v4298 = vmul.f32 %v4294, %v2086
    %v4299 = vmul.f32 %v4297, %v2086
    %v4300 = vadd.f32 %v4298, 1e-05
    %v4301 = vadd.f32 %v4299, 1e-05
    %v4302 = vrsqrt.pop %v4300
    %v4303 = vrsqrt.pop %v4301
    %v4304 = vmul.f32 %v4288, %v4302
    %v4305 = vmul.f32 %v4289, %v4303
    %v4306 = vlaneseq
    %v4307 = vshrl.u32 %v4306, 7
    %v4308 = vsub.s32 0, %v4307
    %v4309 = vrot.slane %v2338, %v4308
    %v4310 = vmul.f32 %v4304, %v4309
    %v4311 = vmul.f32 %v4305, %v4309
    %v4312 = vlaneseq
    %v4313 = vshrl.u32 %v4312, 7
    %v4314 = vsub.s32 0, %v4313
    %v4315 = vrot.slane %v2339, %v4314
    %v4316 = vadd.f32 %v4310, %v4315
    %v4317 = vadd.f32 %v4311, %v4315
    %s4318 = scalar_lea.vmem %s3, 32
    %v4319 = vld [vmem:[%s4318] sm:$0xff]
    %v4320 = vld [vmem:[%s4318 + $0x8] sm:$0xff]
    %v4321 = vld [vmem:[%s4318 + $0x10] sm:$0xff]
    %v4322 = vld [vmem:[%s4318 + $0x18] sm:$0xff]
    %v4323 = vlaneseq
    %v4324 = vshrl.u32 %v4323, 7
    %v4325 = vsub.s32 0, %v4324
    %v4326 = vrot.slane %v2340, %v4325
    %v4328 = vsel %vm150, %v4316, 0
    %v4331 = vsel %vm150, %v4317, 0
    %4333 = vmatprep.subr.mxu0 0.0
    %4334 = vmatpush1.msra.mxu0 %v4319
    %4335 = vmatprep.subr.mxu0 0.0
    %4336 = vmatpush1.msra.mxu0 %v4320
    %4337 = vmatprep.subr.mxu0 0.0
    %4338 = vmatpush1.msra.mxu0 %v4321
    %4339 = vmatprep.subr.mxu0 0.0
    %4340 = vmatpush1.msra.mxu0 %v4322
    %4341 = vmatprep.subr.mxu0 0.0
    %4342 = vmatpush1.msra.mxu0 0.0
    %4343 = vmatprep.subr.mxu0 0.0
    %4344 = vmatpush1.msra.mxu0 0.0
    %4345 = vmatprep.subr.mxu0 0.0
    %4346 = vmatpush1.msra.mxu0 0.0
    %4347 = vmatprep.subr.mxu0 0.0
    %4348 = vmatpush1.msra.mxu0 0.0
    %4349 = vmatprep.subr.mxu0 0.0
    %4350 = vmatpush1.msra.mxu0 0.0
    %4351 = vmatprep.subr.mxu0 0.0
    %4352 = vmatpush1.msra.mxu0 0.0
    %4353 = vmatprep.subr.mxu0 0.0
    %4354 = vmatpush1.msra.mxu0 0.0
    %4355 = vmatprep.subr.mxu0 0.0
    %4356 = vmatpush1.msra.mxu0 0.0
    %4357 = vmatprep.subr.mxu0 0.0
    %4358 = vmatpush1.msra.mxu0 0.0
    %4359 = vmatprep.subr.mxu0 0.0
    %4360 = vmatpush1.msra.mxu0 0.0
    %4361 = vmatprep.subr.mxu0 0.0
    %4362 = vmatpush1.msra.mxu0 0.0
    %4363 = vmatprep.subr.mxu0 0.0
    %4364 = vmatpush1.msra.mxu0 0.0
    %4365 = vmatprep.subr.mxu0 0.0
    %4366 = vmatpush1.msra.mxu0 0.0
    %4367 = vmatprep.subr.mxu0 0.0
    %4368 = vmatpush1.msra.mxu0 0.0
    %4369 = vmatprep.subr.mxu0 0.0
    %4370 = vmatpush1.msra.mxu0 0.0
    %4371 = vmatprep.subr.mxu0 0.0
    %4372 = vmatpush1.msra.mxu0 0.0
    %4373 = vmatprep.subr.mxu0 0.0
    %4374 = vmatpush1.msra.mxu0 0.0
    %4375 = vmatprep.subr.mxu0 0.0
    %4376 = vmatpush1.msra.mxu0 0.0
    %4377 = vmatprep.subr.mxu0 0.0
    %4378 = vmatpush1.msra.mxu0 0.0
    %4379 = vmatprep.subr.mxu0 0.0
    %4380 = vmatpush1.msra.mxu0 0.0
    %4381 = vmatprep.subr.mxu0 0.0
    %4382 = vmatpush1.msra.mxu0 0.0
    %4383 = vmatprep.subr.mxu0 0.0
    %4384 = vmatpush1.msra.mxu0 0.0
    %4385 = vmatprep.subr.mxu0 0.0
    %4386 = vmatpush1.msra.mxu0 0.0
    %4387 = vmatprep.subr.mxu0 0.0
    %4388 = vmatpush1.msra.mxu0 0.0
    %4389 = vmatprep.subr.mxu0 0.0
    %4390 = vmatpush1.msra.mxu0 0.0
    %4391 = vmatprep.subr.mxu0 0.0
    %4392 = vmatpush1.msra.mxu0 0.0
    %4393 = vmatprep.subr.mxu0 0.0
    %4394 = vmatpush1.msra.mxu0 0.0
    %4395 = vmatprep.subr.mxu0 0.0
    %4396 = vmatpush1.msra.mxu0 0.0
    %4397 = vmatprep.mubr.f32.mxu0 0.0
    %4398 = vmatmul.mubr.f32.gmra.mrb[0].mxu0 %v4328
    %v4399 = vpop.f32.mrb[0].mxu0
    %v4400 = vadd.f32 %v4326, %v4399
    %v4401 = vpop.f32.mrb[0].mxu0
    %4402 = vmatprep.mubr.f32.mxu0 0.0
    %4403 = vmatmul.mubr.f32.gmra.mrb[0].mxu0 %v4331
    %v4404 = vpop.f32.mrb[0].mxu0
    %v4405 = vadd.f32 %v4326, %v4404
    %v4406 = vpop.f32.mrb[0].mxu0
    %4407 = vdwg.mxu0
    %v4408 = vmax.f32 %v4400, 0.0
    %v4409 = vmax.f32 %v4405, 0.0
    %s4410 = scalar_lea.vmem %s4, 64
    %v4411 = vld [vmem:[%s4410] sm:$0xff]
    %v4412 = vld [vmem:[%s4410 + $0x8] sm:$0xff]
    %v4413 = vld [vmem:[%s4410 + $0x10] sm:$0xff]
    %v4414 = vld [vmem:[%s4410 + $0x18] sm:$0xff]
    %v4415 = vld [vmem:[%s4410 + $0x20] sm:$0xff]
    %v4416 = vld [vmem:[%s4410 + $0x28] sm:$0xff]
    %v4417 = vld [vmem:[%s4410 + $0x30] sm:$0xff]
    %v4418 = vld [vmem:[%s4410 + $0x38] sm:$0xff]
    %v4419 = vlaneseq
    %v4420 = vshrl.u32 %v4419, 7
    %v4421 = vsub.s32 0, %v4420
    %v4422 = vrot.slane %v2341, %v4421
    %v4424 = vsel %vm2222, %v4408, 0
    %v4427 = vsel %vm2222, %v4409, 0
    %4429 = vmatprep.subr.mxu0 0.0
    %4430 = vmatpush1.msra.mxu0 %v4411
    %4431 = vmatprep.subr.mxu0 0.0
    %4432 = vmatpush1.msra.mxu0 %v4412
    %4433 = vmatprep.subr.mxu0 0.0
    %4434 = vmatpush1.msra.mxu0 %v4413
    %4435 = vmatprep.subr.mxu0 0.0
    %4436 = vmatpush1.msra.mxu0 %v4414
    %4437 = vmatprep.subr.mxu0 0.0
    %4438 = vmatpush1.msra.mxu0 %v4415
    %4439 = vmatprep.subr.mxu0 0.0
    %4440 = vmatpush1.msra.mxu0 %v4416
    %4441 = vmatprep.subr.mxu0 0.0
    %4442 = vmatpush1.msra.mxu0 %v4417
    %4443 = vmatprep.subr.mxu0 0.0
    %4444 = vmatpush1.msra.mxu0 %v4418
    %4445 = vmatprep.subr.mxu0 0.0
    %4446 = vmatpush1.msra.mxu0 0.0
    %4447 = vmatprep.subr.mxu0 0.0
    %4448 = vmatpush1.msra.mxu0 0.0
    %4449 = vmatprep.subr.mxu0 0.0
    %4450 = vmatpush1.msra.mxu0 0.0
    %4451 = vmatprep.subr.mxu0 0.0
    %4452 = vmatpush1.msra.mxu0 0.0
    %4453 = vmatprep.subr.mxu0 0.0
    %4454 = vmatpush1.msra.mxu0 0.0
    %4455 = vmatprep.subr.mxu0 0.0
    %4456 = vmatpush1.msra.mxu0 0.0
    %4457 = vmatprep.subr.mxu0 0.0
    %4458 = vmatpush1.msra.mxu0 0.0
    %4459 = vmatprep.subr.mxu0 0.0
    %4460 = vmatpush1.msra.mxu0 0.0
    %4461 = vmatprep.subr.mxu0 0.0
    %4462 = vmatpush1.msra.mxu0 0.0
    %4463 = vmatprep.subr.mxu0 0.0
    %4464 = vmatpush1.msra.mxu0 0.0
    %4465 = vmatprep.subr.mxu0 0.0
    %4466 = vmatpush1.msra.mxu0 0.0
    %4467 = vmatprep.subr.mxu0 0.0
    %4468 = vmatpush1.msra.mxu0 0.0
    %4469 = vmatprep.subr.mxu0 0.0
    %4470 = vmatpush1.msra.mxu0 0.0
    %4471 = vmatprep.subr.mxu0 0.0
    %4472 = vmatpush1.msra.mxu0 0.0
    %4473 = vmatprep.subr.mxu0 0.0
    %4474 = vmatpush1.msra.mxu0 0.0
    %4475 = vmatprep.subr.mxu0 0.0
    %4476 = vmatpush1.msra.mxu0 0.0
    %4477 = vmatprep.subr.mxu0 0.0
    %4478 = vmatpush1.msra.mxu0 0.0
    %4479 = vmatprep.subr.mxu0 0.0
    %4480 = vmatpush1.msra.mxu0 0.0
    %4481 = vmatprep.subr.mxu0 0.0
    %4482 = vmatpush1.msra.mxu0 0.0
    %4483 = vmatprep.subr.mxu0 0.0
    %4484 = vmatpush1.msra.mxu0 0.0
    %4485 = vmatprep.subr.mxu0 0.0
    %4486 = vmatpush1.msra.mxu0 0.0
    %4487 = vmatprep.subr.mxu0 0.0
    %4488 = vmatpush1.msra.mxu0 0.0
    %4489 = vmatprep.subr.mxu0 0.0
    %4490 = vmatpush1.msra.mxu0 0.0
    %4491 = vmatprep.subr.mxu0 0.0
    %4492 = vmatpush1.msra.mxu0 0.0
    %4493 = vmatprep.mubr.f32.mxu0 0.0
    %4494 = vmatmul.mubr.f32.gmra.mrb[0].mxu0 %v4424
    %v4495 = vpop.f32.mrb[0].mxu0
    %v4496 = vadd.f32 %v4422, %v4495
    %v4497 = vpop.f32.mrb[0].mxu0
    %4498 = vmatprep.mubr.f32.mxu0 0.0
    %4499 = vmatmul.mubr.f32.gmra.mrb[0].mxu0 %v4427
    %v4500 = vpop.f32.mrb[0].mxu0
    %v4501 = vadd.f32 %v4422, %v4500
    %v4502 = vpop.f32.mrb[0].mxu0
    %4503 = vdwg.mxu0
    %v4504 = vadd.f32 %v4496, %v4316
    %v4505 = vadd.f32 %v4501, %v4317
    %v4506 = vsel %vm150, %v4504, 0.0
    %4507 = vadd.xlane.f32.xlu0 %v4506
    %v4508 = vpop.xlane.xlu0 %4507
    %v4509 = vsel %vm150, %v4505, 0.0
    %4510 = vadd.xlane.f32.xlu0 %v4509
    %v4511 = vpop.xlane.xlu0 %4510
    %v4512 = vmul.f32 %v4508, %v2086
    %v4513 = vmul.f32 %v4511, %v2086
    %v4514 = vsub.f32 %v4504, %v4512
    %v4515 = vsub.f32 %v4505, %v4513
    %v4516 = vmul.f32 %v4514, %v4514
    %v4517 = vmul.f32 %v4515, %v4515
    %v4518 = vsel %vm150, %v4516, 0.0
    %4519 = vadd.xlane.f32.xlu0 %v4518
    %v4520 = vpop.xlane.xlu0 %4519
    %v4521 = vsel %vm150, %v4517, 0.0
    %4522 = vadd.xlane.f32.xlu0 %v4521
    %v4523 = vpop.xlane.xlu0 %4522
    %v4524 = vmul.f32 %v4520, %v2086
    %v4525 = vmul.f32 %v4523, %v2086
    %v4526 = vadd.f32 %v4524, 1e-05
    %v4527 = vadd.f32 %v4525, 1e-05
    %v4528 = vrsqrt.pop %v4526
    %v4529 = vrsqrt.pop %v4527
    %v4530 = vmul.f32 %v4514, %v4528
    %v4531 = vmul.f32 %v4515, %v4529
    %v4532 = vmul.f32 %v4530, %v4309
    %v4533 = vmul.f32 %v4531, %v4309
    %v4534 = vadd.f32 %v4532, %v4315
    %v4535 = vadd.f32 %v4533, %v4315
    %4536 = vst.msk [vmem:[#allocation5] sm:$0xff] %vm150, %v4534
    %4537 = vst.msk [vmem:[#allocation5 + $0x8] sm:$0xff] %vm150, %v4535
    // Predicated region
    $region30: #{encoder_forward.1} parent=1 // pred_check
      _
    $region31: #{encoder_forward.1} parent=1 // pred_check_branch
      %4539 = sbr.rel (0) target = $region33
    $region32: #{encoder_forward.1} parent=1 // pred_region
      %s4541 = ssub.s32 256, 256
      %4542 = vsyncadd [#allocation4], %s4541
      %s4543 = sshll.u32 [#allocation5], 4
      %s4544 = int_to_ptr.vmem [resolvable:$true] %s4543
      %4549 = dma.vmem_to_hbm [thread:$0]  %s4544, 256, %s6, [#allocation4], 128, 128, 8
    $region33: #{encoder_forward.1} parent=1 // pred_fallthru
      _
    // Predicated region
    $region34: #{encoder_forward.1} parent=1 // pred_check
      _
    $region35: #{encoder_forward.1} parent=1 // pred_check_branch
      %4551 = sbr.rel (0) target = $region37
    $region36: #{encoder_forward.1} parent=1 // pred_region
      %4552 = dma.done [#allocation4], 256
    $region37: #{encoder_forward.1} parent=1 // pred_fallthru
      _
    %4553 = vsyncpa [#allocation3], 1
    %4554 = vsyncpa [#allocation4], 1

</llo_original>
